<compile_context>
chip_gen: v7x
topology: tpu7x:2x2x1
jax: 0.10.0
libtpu: 0.0.40
codegen_flags: <defaults>
</compile_context>

<pallas_src>
import math
import functools

import jax
import jax.numpy as jnp
from jax import lax
from jax.experimental import pallas as pl
from jax.experimental.pallas import tpu as pltpu


# ----------------------------- small helpers (used in-kernel) -----------------------------

def _sigmoid(x):
    return 1.0 / (1.0 + jnp.exp(-x))


def _softplus(x):
    # matches torch.nn.functional.softplus (threshold=20); the discarded where-branch may
    # overflow to inf but never produces NaN.
    return jnp.where(x > 20.0, x, jnp.log1p(jnp.exp(x)))


# --------------------- fused whole-stack kernel: grid = (batch, layer) ---------------------

def _mixer_kernel(x_ref, g_ref, b_ref, w_in_ref, convw_ref, convb_ref, w_xp_ref,
                  w_dt_ref, dtb_ref, aneg_ref, dvec_ref, w_out_ref, gf_ref, bf_ref,
                  o_ref,
                  res_s, hid_s, dlt_s, du_s, bc_s, y_s,
                  *, eps, seq_len, seq_pad, d_conv, d_inner, d_state, p_bc, tchunk):
    l = pl.program_id(1)
    n_layer = pl.num_programs(1)

    # ---- residual update, carried in VMEM scratch across the layer axis ----
    @pl.when(l == 0)
    def _():                                     # layer 0: residual is None -> residual = hidden
        res_s[...] = x_ref[...]

    @pl.when(l > 0)
    def _():
        res_s[...] = hid_s[...] + res_s[...]

    r = res_s[...]                               # (L, D) f32

    # ---- LayerNorm prologue (pure VPU work, hides under the in_proj matmul) ----
    mean = jnp.mean(r, axis=-1, keepdims=True)
    cen = r - mean
    var = jnp.mean(cen * cen, axis=-1, keepdims=True)
    u = cen * lax.rsqrt(var + eps) * g_ref[...] + b_ref[...]

    # ---- fused in_proj: one (L, D) @ (D, 2*d_inner) bf16 matmul, layout [x | z] ----
    xz = jnp.dot(u.astype(jnp.bfloat16), w_in_ref[...],
                 preferred_element_type=jnp.float32)                # (L, 2*d_inner) f32
    x = xz[:, :d_inner]
    z = xz[:, d_inner:]

    # ---- causal depthwise conv (pad once, d_conv static shifted FMAs) + SiLU ----
    # TODO(synk): swap the pad/concat for pltpu.roll + first-row masking once validated on HW.
    convw = convw_ref[...]                                          # (d_conv, d_inner) f32
    xpad = jnp.concatenate(
        [jnp.zeros((d_conv - 1, d_inner), jnp.float32), x], axis=0)
    acc = convb_ref[...]                                            # (1, d_inner)
    for k in range(d_conv):
        acc = acc + convw[k:k + 1, :] * xpad[k:k + seq_len, :]
    xc = acc * _sigmoid(acc)                                        # (L, d_inner) f32

    # ---- fused x_proj: lane-dense padded output columns [B | C | dt | 0] (width p_bc) ----
    xdbc = jnp.dot(xc.astype(jnp.bfloat16), w_xp_ref[...],
                   preferred_element_type=jnp.float32)              # (L, p_bc) f32
    bc_s[pl.ds(0, seq_len), :] = xdbc                               # full-lane store

    # ---- dt_proj (weight rows over B|C|pad are zero -> no unaligned slice) + softplus ----
    dt = jnp.dot(xdbc.astype(jnp.bfloat16), w_dt_ref[...],
                 preferred_element_type=jnp.float32)                # (L, d_inner)
    delta = _softplus(dt + dtb_ref[...])
    dlt_s[pl.ds(0, seq_len), :] = delta
    du_s[pl.ds(0, seq_len), :] = delta * xc

    # zero the scan tail rows (static branch; emitted only when L is not a multiple of 8)
    pad = seq_pad - seq_len
    if pad:
        zi = jnp.zeros((pad, d_inner), jnp.float32)
        dlt_s[pl.ds(seq_len, pad), :] = zi
        du_s[pl.ds(seq_len, pad), :] = zi
        bc_s[pl.ds(seq_len, pad), :] = jnp.zeros((pad, p_bc), jnp.float32)

    # ---- selective scan: state h is (d_state, d_inner), lane-dense over d_inner ----
    at = aneg_ref[...]                           # (d_state, d_inner) = -exp(A_log)^T (host side)
    n_chunks = seq_pad // tchunk

    def chunk_body(ci, h):
        base = pl.multiple_of(ci * tchunk, tchunk)
        dlt_blk = dlt_s[pl.ds(base, tchunk), :]                     # (tchunk, d_inner)
        du_blk = du_s[pl.ds(base, tchunk), :]                       # (tchunk, d_inner)
        bcT = bc_s[pl.ds(base, tchunk), :].T                        # (p_bc, tchunk)
        # Hoisted off the serial chain: the EUP exps, B/C lane broadcasts and the transpose
        # have no dependence on h, so they pipeline ahead of the recurrence.
        dA, dBu, cc = [], [], []
        for j in range(tchunk):
            dlt = dlt_blk[j:j + 1, :]                               # (1, d_inner)
            du = du_blk[j:j + 1, :]                                 # (1, d_inner)
            dA.append(jnp.exp(dlt * at))                            # (d_state, d_inner)
            dBu.append(du * bcT[:d_state, j:j + 1])                 # (d_state, d_inner)
            cc.append(bcT[d_state:2 * d_state, j:j + 1])            # (d_state, 1)
        # Serial chain: 2 VALU FMAs per vreg per timestep; the C contraction feeds only y.
        rows = []
        for j in range(tchunk):
            h = dA[j] * h + dBu[j]
            rows.append(jnp.sum(h * cc[j], axis=0, keepdims=True))  # (1, d_inner)
        y_s[pl.ds(base, tchunk), :] = jnp.concatenate(rows, axis=0)  # lane-dense row store
        return h

    h0 = jnp.zeros((d_state, d_inner), jnp.float32)
    lax.fori_loop(0, n_chunks, chunk_body, h0)

    # ---- skip connection, SiLU(z) gate, out_proj ----
    y = y_s[pl.ds(0, seq_len), :] + xc * dvec_ref[...]              # (L, d_inner)
    y = y * (z * _sigmoid(z))
    h_new = jnp.dot(y.astype(jnp.bfloat16), w_out_ref[...],
                    preferred_element_type=jnp.float32)             # (L, D)
    hid_s[...] = h_new

    # ---- last layer: fold the final residual-add + LayerNorm_f straight into the output ----
    @pl.when(l == n_layer - 1)
    def _():
        rf = h_new + r
        mf = jnp.mean(rf, axis=-1, keepdims=True)
        cf = rf - mf
        vf = jnp.mean(cf * cf, axis=-1, keepdims=True)
        o_ref[...] = cf * lax.rsqrt(vf + eps) * gf_ref[...] + bf_ref[...]


def mixer_model_forward(x, params):
    """Full MixerModel forward in a single fused pallas_call."""
    B, L, D = x.shape
    eps = params['eps']
    n_layer = params['w_in'].shape[0]
    d_inner = params['w_in'].shape[2] // 2
    d_conv = params['convw'].shape[1]
    d_state = params['a_neg'].shape[1]
    p_bc = params['w_xp'].shape[2]
    L_pad = ((L + 7) // 8) * 8
    tchunk = 8

    weight_names = ['ln_g', 'ln_b', 'w_in', 'convw', 'convb', 'w_xp', 'w_dt',
                    'dtb', 'a_neg', 'dvec', 'w_out']
    weights = [params[n] for n in weight_names]

    def wspec(w):
        rest = w.shape[1:]
        zeros = (0,) * len(rest)
        return pl.BlockSpec((None,) + rest, lambda b, l: (l,) + zeros)

    act_in_spec = pl.BlockSpec((None, L, D), lambda b, l: (b, 0, 0))
    act_out_spec = pl.BlockSpec((None, L, D), lambda b, l: (b, 0, 0))
    const_spec = pl.BlockSpec((1, D), lambda b, l: (0, 0))

    kernel = functools.partial(
        _mixer_kernel, eps=eps, seq_len=L, seq_pad=L_pad, d_conv=d_conv,
        d_inner=d_inner, d_state=d_state, p_bc=p_bc, tchunk=tchunk)

    return pl.pallas_call(
        kernel,
        out_shape=jax.ShapeDtypeStruct((B, L, D), jnp.float32),
        grid=(B, n_layer),
        in_specs=[act_in_spec] + [wspec(w) for w in weights] + [const_spec, const_spec],
        out_specs=act_out_spec,
        scratch_shapes=[pltpu.VMEM((L, D), jnp.float32),            # residual carry
                        pltpu.VMEM((L, D), jnp.float32),            # hidden carry
                        pltpu.VMEM((L_pad, d_inner), jnp.float32),  # delta
                        pltpu.VMEM((L_pad, d_inner), jnp.float32),  # delta * u
                        pltpu.VMEM((L_pad, p_bc), jnp.float32),     # [B | C | dt | 0] rows
                        pltpu.VMEM((L_pad, d_inner), jnp.float32)], # scan output y
        compiler_params=pltpu.CompilerParams(
            dimension_semantics=("parallel", "arbitrary")),
    )(x, *weights, params['norm_f_g'], params['norm_f_b'])


# --------------------------------- parameter construction ---------------------------------

def init_mixer_params(key, d_model, d_state, d_conv, expand, n_layer, eps=1e-5):
    d_inner = expand * d_model
    dt_rank = math.ceil(d_model / 16)
    p_bc = ((2 * d_state + dt_rank + 127) // 128) * 128   # lane-dense padded x_proj width
    std = 0.02
    keys = jax.random.split(key, n_layer)

    def one_layer(k):
        ks = jax.random.split(k, 9)
        wx = jax.random.normal(ks[0], (d_model, d_inner), jnp.float32) * std   # in_proj x half .T
        wz = jax.random.normal(ks[1], (d_model, d_inner), jnp.float32) * std   # in_proj z half .T
        convw = jax.random.normal(ks[2], (d_conv, d_inner), jnp.float32) / math.sqrt(d_conv)
        wdtx = jax.random.normal(ks[3], (d_inner, dt_rank), jnp.float32) * std  # x_proj dt rows .T
        wb = jax.random.normal(ks[4], (d_inner, d_state), jnp.float32) * std    # x_proj B rows .T
        wc = jax.random.normal(ks[5], (d_inner, d_state), jnp.float32) * std    # x_proj C rows .T
        dt_scale = dt_rank ** -0.5
        wdt = jax.random.uniform(ks[6], (dt_rank, d_inner), jnp.float32, -dt_scale, dt_scale)
        dt = jnp.exp(jax.random.uniform(ks[7], (d_inner,), jnp.float32)
                     * (math.log(0.1) - math.log(0.001)) + math.log(0.001))
        dt = jnp.maximum(dt, 1e-4)
        w_out = jax.random.normal(ks[8], (d_inner, d_model), jnp.float32) * std

        lp = {}
        lp['ln_g'] = jnp.ones((1, d_model), jnp.float32)
        lp['ln_b'] = jnp.zeros((1, d_model), jnp.float32)
        lp['w_in'] = jnp.concatenate([wx, wz], axis=1).astype(jnp.bfloat16)     # (D, 2*d_inner)
        lp['convw'] = convw
        lp['convb'] = jnp.zeros((1, d_inner), jnp.float32)
        xp = jnp.concatenate([wb, wc, wdtx], axis=1)                            # (d_inner, 40)
        lp['w_xp'] = jnp.pad(xp, ((0, 0), (0, p_bc - xp.shape[1]))).astype(jnp.bfloat16)
        wdt_full = jnp.zeros((p_bc, d_inner), jnp.float32)
        wdt_full = wdt_full.at[2 * d_state:2 * d_state + dt_rank, :].set(wdt)
        lp['w_dt'] = wdt_full.astype(jnp.bfloat16)                              # (p_bc, d_inner)
        lp['dtb'] = jnp.log(jnp.expm1(dt)).reshape(1, d_inner)                  # inverse softplus
        # A = -exp(A_log), transposed to (d_state, d_inner), precomputed on the host
        lp['a_neg'] = -jnp.broadcast_to(
            jnp.arange(1, d_state + 1, dtype=jnp.float32)[:, None], (d_state, d_inner))
        lp['dvec'] = jnp.ones((1, d_inner), jnp.float32)
        lp['w_out'] = w_out.astype(jnp.bfloat16)                                # (d_inner, D)
        return lp

    layers = [one_layer(k) for k in keys]
    stacked = {name: jnp.stack([lp[name] for lp in layers], axis=0) for name in layers[0]}
    stacked['eps'] = eps
    stacked['norm_f_g'] = jnp.ones((1, d_model), jnp.float32)
    stacked['norm_f_b'] = jnp.zeros((1, d_model), jnp.float32)
    return stacked


# ----------------------------------- pure-JAX reference -----------------------------------

def _ln_ref(x, g, b, eps):
    m = jnp.mean(x, -1, keepdims=True)
    v = jnp.mean((x - m) ** 2, -1, keepdims=True)
    return (x - m) * lax.rsqrt(v + eps) * g + b


def _mamba_ref(u, p, li):
    Bsz, L, _ = u.shape
    w_in = p['w_in'][li].astype(jnp.float32)
    d_inner = w_in.shape[1] // 2
    d_state = p['a_neg'].shape[1]
    w_xp = p['w_xp'][li].astype(jnp.float32)
    w_dt = p['w_dt'][li].astype(jnp.float32)
    convw = p['convw'][li]
    convb = p['convb'][li]

    xz = u @ w_in
    x, z = xz[..., :d_inner], xz[..., d_inner:]
    K = convw.shape[0]
    acc = jnp.zeros_like(x) + convb[0]
    for k in range(K):
        shift = K - 1 - k
        xs = jnp.pad(x, ((0, 0), (shift, 0), (0, 0)))[:, :L, :]
        acc = acc + convw[k] * xs
    xc = acc * _sigmoid(acc)

    xdbc = xc @ w_xp
    Bm = xdbc[..., :d_state]
    Cm = xdbc[..., d_state:2 * d_state]
    delta = _softplus(xdbc @ w_dt + p['dtb'][li][0])
    A = p['a_neg'][li].T                      # (d_inner, d_state)

    def step(h, inp):
        d_t, u_t, B_t, C_t = inp
        h = jnp.exp(d_t[..., None] * A) * h + (d_t * u_t)[..., None] * B_t[:, None, :]
        return h, jnp.sum(h * C_t[:, None, :], axis=-1)

    h0 = jnp.zeros((Bsz, d_inner, d_state), jnp.float32)
    _, ys = lax.scan(step, h0, (jnp.transpose(delta, (1, 0, 2)),
                                jnp.transpose(xc, (1, 0, 2)),
                                jnp.transpose(Bm, (1, 0, 2)),
                                jnp.transpose(Cm, (1, 0, 2))))
    y = jnp.transpose(ys, (1, 0, 2)) + xc * p['dvec'][li][0]
    y = y * (z * _sigmoid(z))
    return y @ p['w_out'][li].astype(jnp.float32)


def mixer_ref(x, params):
    eps = params['eps']
    n_layer = params['w_in'].shape[0]
    hidden, residual = x, None
    for li in range(n_layer):
        residual = hidden + residual if residual is not None else hidden
        u = _ln_ref(residual, params['ln_g'][li], params['ln_b'][li], eps)
        hidden = _mamba_ref(u, params, li)
    residual = hidden + residual
    return _ln_ref(residual, params['norm_f_g'], params['norm_f_b'], eps)


# ------------------------------------------- main ------------------------------------------

if __name__ == "__main__":
    B, L = 2, 16
    d_model, d_state, d_conv, expand, n_layer = 128, 16, 4, 2, 2

    key = jax.random.PRNGKey(0)
    kx, kp = jax.random.split(key)
    x = jax.random.normal(kx, (B, L, d_model), jnp.float32)
    params = init_mixer_params(kp, d_model, d_state, d_conv, expand, n_layer)

    out = mixer_model_forward(x, params)
    out = jax.block_until_ready(out)
    assert out.shape == (B, L, d_model)

    ref = mixer_ref(x, params)
    err = float(jnp.max(jnp.abs(out - ref)))
    assert err < 4e-2, f"max abs err vs reference: {err}"

    print("KERNEL_OK")
</pallas_src>

<mosaic_0001>
module attributes {stable_mosaic.version = 11 : i64} {
  func.func @_mixer_kernel(%arg0: i32, %arg1: i32, %arg2: memref<1x16x128xf32, #tpu.memory_space<vmem>>, %arg3: memref<1x1x128xf32, #tpu.memory_space<vmem>>, %arg4: memref<1x1x128xf32, #tpu.memory_space<vmem>>, %arg5: memref<1x128x512xbf16, #tpu.memory_space<vmem>>, %arg6: memref<1x4x256xf32, #tpu.memory_space<vmem>>, %arg7: memref<1x1x256xf32, #tpu.memory_space<vmem>>, %arg8: memref<1x256x128xbf16, #tpu.memory_space<vmem>>, %arg9: memref<1x128x256xbf16, #tpu.memory_space<vmem>>, %arg10: memref<1x1x256xf32, #tpu.memory_space<vmem>>, %arg11: memref<1x16x256xf32, #tpu.memory_space<vmem>>, %arg12: memref<1x1x256xf32, #tpu.memory_space<vmem>>, %arg13: memref<1x256x128xbf16, #tpu.memory_space<vmem>>, %arg14: memref<1x128xf32, #tpu.memory_space<vmem>>, %arg15: memref<1x128xf32, #tpu.memory_space<vmem>>, %arg16: memref<1x16x128xf32, #tpu.memory_space<vmem>>, %arg17: memref<16x128xf32, #tpu.memory_space<vmem>>, %arg18: memref<16x128xf32, #tpu.memory_space<vmem>>, %arg19: memref<16x256xf32, #tpu.memory_space<vmem>>, %arg20: memref<16x256xf32, #tpu.memory_space<vmem>>, %arg21: memref<16x128xf32, #tpu.memory_space<vmem>>, %arg22: memref<16x256xf32, #tpu.memory_space<vmem>>) attributes {dimension_semantics = [#tpu.dimension_semantics<parallel>, #tpu.dimension_semantics<arbitrary>], iteration_bounds = array<i64: 2, 2>, scalar_prefetch = 0 : i64, scratch_operands = 6 : i64, tpu.core_type = #tpu.core_type<tc>, window_params = [{transform_indices = @transform_0, window_bounds = array<i64: 1, 16, 128>}, {transform_indices = @transform_1, window_bounds = array<i64: 1, 1, 128>}, {transform_indices = @transform_2, window_bounds = array<i64: 1, 1, 128>}, {transform_indices = @transform_3, window_bounds = array<i64: 1, 128, 512>}, {transform_indices = @transform_4, window_bounds = array<i64: 1, 4, 256>}, {transform_indices = @transform_5, window_bounds = array<i64: 1, 1, 256>}, {transform_indices = @transform_6, window_bounds = array<i64: 1, 256, 128>}, {transform_indices = @transform_7, window_bounds = array<i64: 1, 128, 256>}, {transform_indices = @transform_8, window_bounds = array<i64: 1, 1, 256>}, {transform_indices = @transform_9, window_bounds = array<i64: 1, 16, 256>}, {transform_indices = @transform_10, window_bounds = array<i64: 1, 1, 256>}, {transform_indices = @transform_11, window_bounds = array<i64: 1, 256, 128>}, {pipeline_mode = #tpu.pipeline_mode<synchronous>, transform_indices = @transform_12, window_bounds = array<i64: 1, 128>}, {pipeline_mode = #tpu.pipeline_mode<synchronous>, transform_indices = @transform_13, window_bounds = array<i64: 1, 128>}, {transform_indices = @transform_14, window_bounds = array<i64: 1, 16, 128>}]} {
    %c0_i32 = arith.constant 0 : i32
    %0 = arith.cmpi eq, %arg1, %c0_i32 : i32
    %1 = arith.extui %0 : i1 to i32
    %c0_i32_0 = arith.constant 0 : i32
    %2 = arith.cmpi ne, %1, %c0_i32_0 : i32
    scf.if %2 {
      %c0_68 = arith.constant 0 : index
      %c0_69 = arith.constant 0 : index
      %c0_70 = arith.constant 0 : index
      %121 = vector.load %arg2[%c0_68, %c0_69, %c0_70] : memref<1x16x128xf32, #tpu.memory_space<vmem>>, vector<1x16x128xf32>
      %122 = vector.shape_cast %121 : vector<1x16x128xf32> to vector<16x128xf32>
      %c0_71 = arith.constant 0 : index
      %c0_72 = arith.constant 0 : index
      %123 = vector.load %arg17[%c0_71, %c0_72] : memref<16x128xf32, #tpu.memory_space<vmem>>, vector<16x128xf32>
      tpu.vector_store %arg17[%c0_71, %c0_72], %122 {strides = array<i32>} : memref<16x128xf32, #tpu.memory_space<vmem>>, vector<16x128xf32>,
    } else {
    }
    %c0_i32_1 = arith.constant 0 : i32
    %3 = arith.cmpi sgt, %arg1, %c0_i32_1 : i32
    %4 = arith.extui %3 : i1 to i32
    %c0_i32_2 = arith.constant 0 : i32
    %5 = arith.cmpi ne, %4, %c0_i32_2 : i32
    scf.if %5 {
      %c0_68 = arith.constant 0 : index
      %c0_69 = arith.constant 0 : index
      %121 = vector.load %arg18[%c0_68, %c0_69] : memref<16x128xf32, #tpu.memory_space<vmem>>, vector<16x128xf32>
      %c0_70 = arith.constant 0 : index
      %c0_71 = arith.constant 0 : index
      %122 = vector.load %arg17[%c0_70, %c0_71] : memref<16x128xf32, #tpu.memory_space<vmem>>, vector<16x128xf32>
      %123 = arith.addf %121, %122 : vector<16x128xf32>
      %c0_72 = arith.constant 0 : index
      %c0_73 = arith.constant 0 : index
      %124 = vector.load %arg17[%c0_72, %c0_73] : memref<16x128xf32, #tpu.memory_space<vmem>>, vector<16x128xf32>
      tpu.vector_store %arg17[%c0_72, %c0_73], %123 {strides = array<i32>} : memref<16x128xf32, #tpu.memory_space<vmem>>, vector<16x128xf32>,
    } else {
    }
    %c0 = arith.constant 0 : index
    %c0_3 = arith.constant 0 : index
    %6 = vector.load %arg17[%c0, %c0_3] : memref<16x128xf32, #tpu.memory_space<vmem>>, vector<16x128xf32>
    %cst = arith.constant dense<0.000000e+00> : vector<16xf32>
    %7 = vector.multi_reduction <add>, %6, %cst [1] : vector<16x128xf32> to vector<16xf32>
    %8 = vector.shape_cast %7 : vector<16xf32> to vector<16x1xf32>
    %cst_4 = arith.constant 1.280000e+02 : f32
    %9 = vector.broadcast %cst_4 : f32 to vector<16x1xf32>
    %10 = arith.divf %8, %9 : vector<16x1xf32>
    %11 = vector.broadcast %10 : vector<16x1xf32> to vector<16x128xf32>
    %12 = arith.subf %6, %11 : vector<16x128xf32>
    %13 = arith.mulf %12, %12 : vector<16x128xf32>
    %cst_5 = arith.constant dense<0.000000e+00> : vector<16xf32>
    %14 = vector.multi_reduction <add>, %13, %cst_5 [1] : vector<16x128xf32> to vector<16xf32>
    %15 = vector.shape_cast %14 : vector<16xf32> to vector<16x1xf32>
    %cst_6 = arith.constant 1.280000e+02 : f32
    %16 = vector.broadcast %cst_6 : f32 to vector<16x1xf32>
    %17 = arith.divf %15, %16 : vector<16x1xf32>
    %cst_7 = arith.constant 9.99999974E-6 : f32
    %18 = vector.broadcast %cst_7 : f32 to vector<16x1xf32>
    %19 = arith.addf %17, %18 : vector<16x1xf32>
    %20 = math.rsqrt %19 : vector<16x1xf32>
    %21 = vector.broadcast %20 : vector<16x1xf32> to vector<16x128xf32>
    %22 = arith.mulf %12, %21 : vector<16x128xf32>
    %c0_8 = arith.constant 0 : index
    %c0_9 = arith.constant 0 : index
    %c0_10 = arith.constant 0 : index
    %23 = vector.load %arg3[%c0_8, %c0_9, %c0_10] : memref<1x1x128xf32, #tpu.memory_space<vmem>>, vector<1x1x128xf32>
    %24 = vector.shape_cast %23 : vector<1x1x128xf32> to vector<1x128xf32>
    %25 = vector.broadcast %24 : vector<1x128xf32> to vector<16x128xf32>
    %26 = arith.mulf %22, %25 : vector<16x128xf32>
    %c0_11 = arith.constant 0 : index
    %c0_12 = arith.constant 0 : index
    %c0_13 = arith.constant 0 : index
    %27 = vector.load %arg4[%c0_11, %c0_12, %c0_13] : memref<1x1x128xf32, #tpu.memory_space<vmem>>, vector<1x1x128xf32>
    %28 = vector.shape_cast %27 : vector<1x1x128xf32> to vector<1x128xf32>
    %29 = vector.broadcast %28 : vector<1x128xf32> to vector<16x128xf32>
    %30 = arith.addf %26, %29 : vector<16x128xf32>
    %31 = arith.truncf %30 : vector<16x128xf32> to vector<16x128xbf16>
    %c0_14 = arith.constant 0 : index
    %c0_15 = arith.constant 0 : index
    %c0_16 = arith.constant 0 : index
    %32 = vector.load %arg5[%c0_14, %c0_15, %c0_16] : memref<1x128x512xbf16, #tpu.memory_space<vmem>>, vector<1x128x512xbf16>
    %33 = vector.shape_cast %32 : vector<1x128x512xbf16> to vector<128x512xbf16>
    %cst_17 = arith.constant dense<0.000000e+00> : vector<16x512xf32>
    %34 = tpu.matmul %31, %33, %cst_17 {dimension_numbers = #tpu.dot_dimension_numbers<[1], [0], [0], [1], [0, 0, 1, 1], [], []>} : vector<16x128xbf16>, vector<128x512xbf16>, vector<16x512xf32> -> vector<16x512xf32>
    %35 = vector.extract_strided_slice %34 {offsets = [0, 0], sizes = [16, 256], strides = [1, 1]} : vector<16x512xf32> to vector<16x256xf32>
    %36 = vector.extract_strided_slice %34 {offsets = [0, 256], sizes = [16, 256], strides = [1, 1]} : vector<16x512xf32> to vector<16x256xf32>
    %c0_18 = arith.constant 0 : index
    %c0_19 = arith.constant 0 : index
    %c0_20 = arith.constant 0 : index
    %37 = vector.load %arg6[%c0_18, %c0_19, %c0_20] : memref<1x4x256xf32, #tpu.memory_space<vmem>>, vector<1x4x256xf32>
    %38 = vector.shape_cast %37 : vector<1x4x256xf32> to vector<4x256xf32>
    %cst_21 = arith.constant 0.000000e+00 : f32
    %39 = vector.broadcast %cst_21 : f32 to vector<3x256xf32>
    %40 = tpu.concatenate %39, %35 in 0 : vector<3x256xf32>, vector<16x256xf32> -> vector<19x256xf32>
    %c0_22 = arith.constant 0 : index
    %c0_23 = arith.constant 0 : index
    %c0_24 = arith.constant 0 : index
    %41 = vector.load %arg7[%c0_22, %c0_23, %c0_24] : memref<1x1x256xf32, #tpu.memory_space<vmem>>, vector<1x1x256xf32>
    %42 = vector.shape_cast %41 : vector<1x1x256xf32> to vector<1x256xf32>
    %43 = vector.extract_strided_slice %38 {offsets = [0, 0], sizes = [1, 256], strides = [1, 1]} : vector<4x256xf32> to vector<1x256xf32>
    %44 = vector.extract_strided_slice %40 {offsets = [0, 0], sizes = [16, 256], strides = [1, 1]} : vector<19x256xf32> to vector<16x256xf32>
    %45 = vector.broadcast %43 : vector<1x256xf32> to vector<16x256xf32>
    %46 = arith.mulf %45, %44 : vector<16x256xf32>
    %47 = vector.broadcast %42 : vector<1x256xf32> to vector<16x256xf32>
    %48 = arith.addf %47, %46 : vector<16x256xf32>
    %49 = vector.extract_strided_slice %38 {offsets = [1, 0], sizes = [1, 256], strides = [1, 1]} : vector<4x256xf32> to vector<1x256xf32>
    %50 = vector.extract_strided_slice %40 {offsets = [1, 0], sizes = [16, 256], strides = [1, 1]} : vector<19x256xf32> to vector<16x256xf32>
    %51 = vector.broadcast %49 : vector<1x256xf32> to vector<16x256xf32>
    %52 = arith.mulf %51, %50 : vector<16x256xf32>
    %53 = arith.addf %48, %52 : vector<16x256xf32>
    %54 = vector.extract_strided_slice %38 {offsets = [2, 0], sizes = [1, 256], strides = [1, 1]} : vector<4x256xf32> to vector<1x256xf32>
    %55 = vector.extract_strided_slice %40 {offsets = [2, 0], sizes = [16, 256], strides = [1, 1]} : vector<19x256xf32> to vector<16x256xf32>
    %56 = vector.broadcast %54 : vector<1x256xf32> to vector<16x256xf32>
    %57 = arith.mulf %56, %55 : vector<16x256xf32>
    %58 = arith.addf %53, %57 : vector<16x256xf32>
    %59 = vector.extract_strided_slice %38 {offsets = [3, 0], sizes = [1, 256], strides = [1, 1]} : vector<4x256xf32> to vector<1x256xf32>
    %60 = vector.extract_strided_slice %40 {offsets = [3, 0], sizes = [16, 256], strides = [1, 1]} : vector<19x256xf32> to vector<16x256xf32>
    %61 = vector.broadcast %59 : vector<1x256xf32> to vector<16x256xf32>
    %62 = arith.mulf %61, %60 : vector<16x256xf32>
    %63 = arith.addf %58, %62 : vector<16x256xf32>
    %cst_25 = arith.constant 0.000000e+00 : f32
    %64 = vector.broadcast %cst_25 : f32 to vector<16x256xf32>
    %65 = arith.subf %64, %63 : vector<16x256xf32>
    %66 = math.exp %65 : vector<16x256xf32>
    %cst_26 = arith.constant 1.000000e+00 : f32
    %67 = vector.broadcast %cst_26 : f32 to vector<16x256xf32>
    %68 = arith.addf %67, %66 : vector<16x256xf32>
    %cst_27 = arith.constant 1.000000e+00 : f32
    %69 = vector.broadcast %cst_27 : f32 to vector<16x256xf32>
    %70 = arith.divf %69, %68 : vector<16x256xf32>
    %71 = arith.mulf %63, %70 : vector<16x256xf32>
    %72 = arith.truncf %71 : vector<16x256xf32> to vector<16x256xbf16>
    %c0_28 = arith.constant 0 : index
    %c0_29 = arith.constant 0 : index
    %c0_30 = arith.constant 0 : index
    %73 = vector.load %arg8[%c0_28, %c0_29, %c0_30] : memref<1x256x128xbf16, #tpu.memory_space<vmem>>, vector<1x256x128xbf16>
    %74 = vector.shape_cast %73 : vector<1x256x128xbf16> to vector<256x128xbf16>
    %cst_31 = arith.constant dense<0.000000e+00> : vector<16x128xf32>
    %75 = tpu.matmul %72, %74, %cst_31 {dimension_numbers = #tpu.dot_dimension_numbers<[1], [0], [0], [1], [0, 0, 1, 1], [], []>} : vector<16x256xbf16>, vector<256x128xbf16>, vector<16x128xf32> -> vector<16x128xf32>
    %c0_32 = arith.constant 0 : index
    %c0_33 = arith.constant 0 : index
    %76 = vector.load %arg21[%c0_32, %c0_33] : memref<16x128xf32, #tpu.memory_space<vmem>>, vector<16x128xf32>
    tpu.vector_store %arg21[%c0_32, %c0_33], %75 {strides = array<i32>} : memref<16x128xf32, #tpu.memory_space<vmem>>, vector<16x128xf32>,
    %77 = arith.truncf %75 : vector<16x128xf32> to vector<16x128xbf16>
    %c0_34 = arith.constant 0 : index
    %c0_35 = arith.constant 0 : index
    %c0_36 = arith.constant 0 : index
    %78 = vector.load %arg9[%c0_34, %c0_35, %c0_36] : memref<1x128x256xbf16, #tpu.memory_space<vmem>>, vector<1x128x256xbf16>
    %79 = vector.shape_cast %78 : vector<1x128x256xbf16> to vector<128x256xbf16>
    %cst_37 = arith.constant dense<0.000000e+00> : vector<16x256xf32>
    %80 = tpu.matmul %77, %79, %cst_37 {dimension_numbers = #tpu.dot_dimension_numbers<[1], [0], [0], [1], [0, 0, 1, 1], [], []>} : vector<16x128xbf16>, vector<128x256xbf16>, vector<16x256xf32> -> vector<16x256xf32>
    %c0_38 = arith.constant 0 : index
    %c0_39 = arith.constant 0 : index
    %c0_40 = arith.constant 0 : index
    %81 = vector.load %arg10[%c0_38, %c0_39, %c0_40] : memref<1x1x256xf32, #tpu.memory_space<vmem>>, vector<1x1x256xf32>
    %82 = vector.shape_cast %81 : vector<1x1x256xf32> to vector<1x256xf32>
    %83 = vector.broadcast %82 : vector<1x256xf32> to vector<16x256xf32>
    %84 = arith.addf %80, %83 : vector<16x256xf32>
    %cst_41 = arith.constant 2.000000e+01 : f32
    %85 = vector.broadcast %cst_41 : f32 to vector<16x256xf32>
    %86 = arith.cmpf ogt, %84, %85 : vector<16x256xf32>
    %87 = math.exp %84 : vector<16x256xf32>
    %88 = math.log1p %87 : vector<16x256xf32>
    %89 = arith.select %86, %84, %88 : vector<16x256xi1>, vector<16x256xf32>
    %c0_42 = arith.constant 0 : index
    %c0_43 = arith.constant 0 : index
    %90 = vector.load %arg19[%c0_42, %c0_43] : memref<16x256xf32, #tpu.memory_space<vmem>>, vector<16x256xf32>
    tpu.vector_store %arg19[%c0_42, %c0_43], %89 {strides = array<i32>} : memref<16x256xf32, #tpu.memory_space<vmem>>, vector<16x256xf32>,
    %91 = arith.mulf %89, %71 : vector<16x256xf32>
    %c0_44 = arith.constant 0 : index
    %c0_45 = arith.constant 0 : index
    %92 = vector.load %arg20[%c0_44, %c0_45] : memref<16x256xf32, #tpu.memory_space<vmem>>, vector<16x256xf32>
    tpu.vector_store %arg20[%c0_44, %c0_45], %91 {strides = array<i32>} : memref<16x256xf32, #tpu.memory_space<vmem>>, vector<16x256xf32>,
    %c0_46 = arith.constant 0 : index
    %c0_47 = arith.constant 0 : index
    %c0_48 = arith.constant 0 : index
    %93 = vector.load %arg11[%c0_46, %c0_47, %c0_48] : memref<1x16x256xf32, #tpu.memory_space<vmem>>, vector<1x16x256xf32>
    %94 = vector.shape_cast %93 : vector<1x16x256xf32> to vector<16x256xf32>
    %cst_49 = arith.constant 0.000000e+00 : f32
    %95 = vector.broadcast %cst_49 : f32 to vector<16x256xf32>
    %c0_i32_50 = arith.constant 0 : i32
    %c2_i32 = arith.constant 2 : i32
    %96 = arith.addi %c0_i32_50, %c2_i32 : i32
    %c1_i32 = arith.constant 1 : i32
    %97 = scf.for %arg23 = %c0_i32_50 to %96 step %c1_i32 iter_args(%arg24 = %95) -> (vector<16x256xf32>)  : i32 {
      %c8_i32 = arith.constant 8 : i32
      %121 = arith.muli %arg23, %c8_i32 : i32
      %122 = tpu.assume_multiple %121, 8 : i32
      %123 = arith.index_cast %122 : i32 to index
      %c0_68 = arith.constant 0 : index
      %124 = vector.load %arg19[%123, %c0_68] : memref<16x256xf32, #tpu.memory_space<vmem>>, vector<8x256xf32>
      %125 = arith.index_cast %122 : i32 to index
      %c0_69 = arith.constant 0 : index
      %126 = vector.load %arg20[%125, %c0_69] : memref<16x256xf32, #tpu.memory_space<vmem>>, vector<8x256xf32>
      %127 = arith.index_cast %122 : i32 to index
      %c0_70 = arith.constant 0 : index
      %128 = vector.load %arg21[%127, %c0_70] : memref<16x128xf32, #tpu.memory_space<vmem>>, vector<8x128xf32>
      %129 = tpu.transpose %128, [1, 0] : vector<8x128xf32> -> vector<128x8xf32>
      %130 = vector.extract_strided_slice %124 {offsets = [0, 0], sizes = [1, 256], strides = [1, 1]} : vector<8x256xf32> to vector<1x256xf32>
      %131 = vector.extract_strided_slice %126 {offsets = [0, 0], sizes = [1, 256], strides = [1, 1]} : vector<8x256xf32> to vector<1x256xf32>
      %132 = vector.broadcast %130 : vector<1x256xf32> to vector<16x256xf32>
      %133 = arith.mulf %132, %94 : vector<16x256xf32>
      %134 = math.exp %133 : vector<16x256xf32>
      %135 = vector.extract_strided_slice %129 {offsets = [0, 0], sizes = [16, 1], strides = [1, 1]} : vector<128x8xf32> to vector<16x1xf32>
      %136 = vector.broadcast %131 : vector<1x256xf32> to vector<16x256xf32>
      %137 = vector.broadcast %135 : vector<16x1xf32> to vector<16x256xf32>
      %138 = arith.mulf %136, %137 : vector<16x256xf32>
      %139 = vector.extract_strided_slice %129 {offsets = [16, 0], sizes = [16, 1], strides = [1, 1]} : vector<128x8xf32> to vector<16x1xf32>
      %140 = vector.extract_strided_slice %124 {offsets = [1, 0], sizes = [1, 256], strides = [1, 1]} : vector<8x256xf32> to vector<1x256xf32>
      %141 = vector.extract_strided_slice %126 {offsets = [1, 0], sizes = [1, 256], strides = [1, 1]} : vector<8x256xf32> to vector<1x256xf32>
      %142 = vector.broadcast %140 : vector<1x256xf32> to vector<16x256xf32>
      %143 = arith.mulf %142, %94 : vector<16x256xf32>
      %144 = math.exp %143 : vector<16x256xf32>
      %145 = vector.extract_strided_slice %129 {offsets = [0, 1], sizes = [16, 1], strides = [1, 1]} : vector<128x8xf32> to vector<16x1xf32>
      %146 = vector.broadcast %141 : vector<1x256xf32> to vector<16x256xf32>
      %147 = vector.broadcast %145 : vector<16x1xf32> to vector<16x256xf32>
      %148 = arith.mulf %146, %147 : vector<16x256xf32>
      %149 = vector.extract_strided_slice %129 {offsets = [16, 1], sizes = [16, 1], strides = [1, 1]} : vector<128x8xf32> to vector<16x1xf32>
      %150 = vector.extract_strided_slice %124 {offsets = [2, 0], sizes = [1, 256], strides = [1, 1]} : vector<8x256xf32> to vector<1x256xf32>
      %151 = vector.extract_strided_slice %126 {offsets = [2, 0], sizes = [1, 256], strides = [1, 1]} : vector<8x256xf32> to vector<1x256xf32>
      %152 = vector.broadcast %150 : vector<1x256xf32> to vector<16x256xf32>
      %153 = arith.mulf %152, %94 : vector<16x256xf32>
      %154 = math.exp %153 : vector<16x256xf32>
      %155 = vector.extract_strided_slice %129 {offsets = [0, 2], sizes = [16, 1], strides = [1, 1]} : vector<128x8xf32> to vector<16x1xf32>
      %156 = vector.broadcast %151 : vector<1x256xf32> to vector<16x256xf32>
      %157 = vector.broadcast %155 : vector<16x1xf32> to vector<16x256xf32>
      %158 = arith.mulf %156, %157 : vector<16x256xf32>
      %159 = vector.extract_strided_slice %129 {offsets = [16, 2], sizes = [16, 1], strides = [1, 1]} : vector<128x8xf32> to vector<16x1xf32>
      %160 = vector.extract_strided_slice %124 {offsets = [3, 0], sizes = [1, 256], strides = [1, 1]} : vector<8x256xf32> to vector<1x256xf32>
      %161 = vector.extract_strided_slice %126 {offsets = [3, 0], sizes = [1, 256], strides = [1, 1]} : vector<8x256xf32> to vector<1x256xf32>
      %162 = vector.broadcast %160 : vector<1x256xf32> to vector<16x256xf32>
      %163 = arith.mulf %162, %94 : vector<16x256xf32>
      %164 = math.exp %163 : vector<16x256xf32>
      %165 = vector.extract_strided_slice %129 {offsets = [0, 3], sizes = [16, 1], strides = [1, 1]} : vector<128x8xf32> to vector<16x1xf32>
      %166 = vector.broadcast %161 : vector<1x256xf32> to vector<16x256xf32>
      %167 = vector.broadcast %165 : vector<16x1xf32> to vector<16x256xf32>
      %168 = arith.mulf %166, %167 : vector<16x256xf32>
      %169 = vector.extract_strided_slice %129 {offsets = [16, 3], sizes = [16, 1], strides = [1, 1]} : vector<128x8xf32> to vector<16x1xf32>
      %170 = vector.extract_strided_slice %124 {offsets = [4, 0], sizes = [1, 256], strides = [1, 1]} : vector<8x256xf32> to vector<1x256xf32>
      %171 = vector.extract_strided_slice %126 {offsets = [4, 0], sizes = [1, 256], strides = [1, 1]} : vector<8x256xf32> to vector<1x256xf32>
      %172 = vector.broadcast %170 : vector<1x256xf32> to vector<16x256xf32>
      %173 = arith.mulf %172, %94 : vector<16x256xf32>
      %174 = math.exp %173 : vector<16x256xf32>
      %175 = vector.extract_strided_slice %129 {offsets = [0, 4], sizes = [16, 1], strides = [1, 1]} : vector<128x8xf32> to vector<16x1xf32>
      %176 = vector.broadcast %171 : vector<1x256xf32> to vector<16x256xf32>
      %177 = vector.broadcast %175 : vector<16x1xf32> to vector<16x256xf32>
      %178 = arith.mulf %176, %177 : vector<16x256xf32>
      %179 = vector.extract_strided_slice %129 {offsets = [16, 4], sizes = [16, 1], strides = [1, 1]} : vector<128x8xf32> to vector<16x1xf32>
      %180 = vector.extract_strided_slice %124 {offsets = [5, 0], sizes = [1, 256], strides = [1, 1]} : vector<8x256xf32> to vector<1x256xf32>
      %181 = vector.extract_strided_slice %126 {offsets = [5, 0], sizes = [1, 256], strides = [1, 1]} : vector<8x256xf32> to vector<1x256xf32>
      %182 = vector.broadcast %180 : vector<1x256xf32> to vector<16x256xf32>
      %183 = arith.mulf %182, %94 : vector<16x256xf32>
      %184 = math.exp %183 : vector<16x256xf32>
      %185 = vector.extract_strided_slice %129 {offsets = [0, 5], sizes = [16, 1], strides = [1, 1]} : vector<128x8xf32> to vector<16x1xf32>
      %186 = vector.broadcast %181 : vector<1x256xf32> to vector<16x256xf32>
      %187 = vector.broadcast %185 : vector<16x1xf32> to vector<16x256xf32>
      %188 = arith.mulf %186, %187 : vector<16x256xf32>
      %189 = vector.extract_strided_slice %129 {offsets = [16, 5], sizes = [16, 1], strides = [1, 1]} : vector<128x8xf32> to vector<16x1xf32>
      %190 = vector.extract_strided_slice %124 {offsets = [6, 0], sizes = [1, 256], strides = [1, 1]} : vector<8x256xf32> to vector<1x256xf32>
      %191 = vector.extract_strided_slice %126 {offsets = [6, 0], sizes = [1, 256], strides = [1, 1]} : vector<8x256xf32> to vector<1x256xf32>
      %192 = vector.broadcast %190 : vector<1x256xf32> to vector<16x256xf32>
      %193 = arith.mulf %192, %94 : vector<16x256xf32>
      %194 = math.exp %193 : vector<16x256xf32>
      %195 = vector.extract_strided_slice %129 {offsets = [0, 6], sizes = [16, 1], strides = [1, 1]} : vector<128x8xf32> to vector<16x1xf32>
      %196 = vector.broadcast %191 : vector<1x256xf32> to vector<16x256xf32>
      %197 = vector.broadcast %195 : vector<16x1xf32> to vector<16x256xf32>
      %198 = arith.mulf %196, %197 : vector<16x256xf32>
      %199 = vector.extract_strided_slice %129 {offsets = [16, 6], sizes = [16, 1], strides = [1, 1]} : vector<128x8xf32> to vector<16x1xf32>
      %200 = vector.extract_strided_slice %124 {offsets = [7, 0], sizes = [1, 256], strides = [1, 1]} : vector<8x256xf32> to vector<1x256xf32>
      %201 = vector.extract_strided_slice %126 {offsets = [7, 0], sizes = [1, 256], strides = [1, 1]} : vector<8x256xf32> to vector<1x256xf32>
      %202 = vector.broadcast %200 : vector<1x256xf32> to vector<16x256xf32>
      %203 = arith.mulf %202, %94 : vector<16x256xf32>
      %204 = math.exp %203 : vector<16x256xf32>
      %205 = vector.extract_strided_slice %129 {offsets = [0, 7], sizes = [16, 1], strides = [1, 1]} : vector<128x8xf32> to vector<16x1xf32>
      %206 = vector.broadcast %201 : vector<1x256xf32> to vector<16x256xf32>
      %207 = vector.broadcast %205 : vector<16x1xf32> to vector<16x256xf32>
      %208 = arith.mulf %206, %207 : vector<16x256xf32>
      %209 = vector.extract_strided_slice %129 {offsets = [16, 7], sizes = [16, 1], strides = [1, 1]} : vector<128x8xf32> to vector<16x1xf32>
      %210 = arith.mulf %134, %arg24 : vector<16x256xf32>
      %211 = arith.addf %210, %138 : vector<16x256xf32>
      %212 = vector.broadcast %139 : vector<16x1xf32> to vector<16x256xf32>
      %213 = arith.mulf %211, %212 : vector<16x256xf32>
      %cst_71 = arith.constant dense<0.000000e+00> : vector<256xf32>
      %214 = vector.multi_reduction <add>, %213, %cst_71 [0] : vector<16x256xf32> to vector<256xf32>
      %215 = vector.shape_cast %214 : vector<256xf32> to vector<1x256xf32>
      %216 = arith.mulf %144, %211 : vector<16x256xf32>
      %217 = arith.addf %216, %148 : vector<16x256xf32>
      %218 = vector.broadcast %149 : vector<16x1xf32> to vector<16x256xf32>
      %219 = arith.mulf %217, %218 : vector<16x256xf32>
      %cst_72 = arith.constant dense<0.000000e+00> : vector<256xf32>
      %220 = vector.multi_reduction <add>, %219, %cst_72 [0] : vector<16x256xf32> to vector<256xf32>
      %221 = vector.shape_cast %220 : vector<256xf32> to vector<1x256xf32>
      %222 = arith.mulf %154, %217 : vector<16x256xf32>
      %223 = arith.addf %222, %158 : vector<16x256xf32>
      %224 = vector.broadcast %159 : vector<16x1xf32> to vector<16x256xf32>
      %225 = arith.mulf %223, %224 : vector<16x256xf32>
      %cst_73 = arith.constant dense<0.000000e+00> : vector<256xf32>
      %226 = vector.multi_reduction <add>, %225, %cst_73 [0] : vector<16x256xf32> to vector<256xf32>
      %227 = vector.shape_cast %226 : vector<256xf32> to vector<1x256xf32>
      %228 = arith.mulf %164, %223 : vector<16x256xf32>
      %229 = arith.addf %228, %168 : vector<16x256xf32>
      %230 = vector.broadcast %169 : vector<16x1xf32> to vector<16x256xf32>
      %231 = arith.mulf %229, %230 : vector<16x256xf32>
      %cst_74 = arith.constant dense<0.000000e+00> : vector<256xf32>
      %232 = vector.multi_reduction <add>, %231, %cst_74 [0] : vector<16x256xf32> to vector<256xf32>
      %233 = vector.shape_cast %232 : vector<256xf32> to vector<1x256xf32>
      %234 = arith.mulf %174, %229 : vector<16x256xf32>
      %235 = arith.addf %234, %178 : vector<16x256xf32>
      %236 = vector.broadcast %179 : vector<16x1xf32> to vector<16x256xf32>
      %237 = arith.mulf %235, %236 : vector<16x256xf32>
      %cst_75 = arith.constant dense<0.000000e+00> : vector<256xf32>
      %238 = vector.multi_reduction <add>, %237, %cst_75 [0] : vector<16x256xf32> to vector<256xf32>
      %239 = vector.shape_cast %238 : vector<256xf32> to vector<1x256xf32>
      %240 = arith.mulf %184, %235 : vector<16x256xf32>
      %241 = arith.addf %240, %188 : vector<16x256xf32>
      %242 = vector.broadcast %189 : vector<16x1xf32> to vector<16x256xf32>
      %243 = arith.mulf %241, %242 : vector<16x256xf32>
      %cst_76 = arith.constant dense<0.000000e+00> : vector<256xf32>
      %244 = vector.multi_reduction <add>, %243, %cst_76 [0] : vector<16x256xf32> to vector<256xf32>
      %245 = vector.shape_cast %244 : vector<256xf32> to vector<1x256xf32>
      %246 = arith.mulf %194, %241 : vector<16x256xf32>
      %247 = arith.addf %246, %198 : vector<16x256xf32>
      %248 = vector.broadcast %199 : vector<16x1xf32> to vector<16x256xf32>
      %249 = arith.mulf %247, %248 : vector<16x256xf32>
      %cst_77 = arith.constant dense<0.000000e+00> : vector<256xf32>
      %250 = vector.multi_reduction <add>, %249, %cst_77 [0] : vector<16x256xf32> to vector<256xf32>
      %251 = vector.shape_cast %250 : vector<256xf32> to vector<1x256xf32>
      %252 = arith.mulf %204, %247 : vector<16x256xf32>
      %253 = arith.addf %252, %208 : vector<16x256xf32>
      %254 = vector.broadcast %209 : vector<16x1xf32> to vector<16x256xf32>
      %255 = arith.mulf %253, %254 : vector<16x256xf32>
      %cst_78 = arith.constant dense<0.000000e+00> : vector<256xf32>
      %256 = vector.multi_reduction <add>, %255, %cst_78 [0] : vector<16x256xf32> to vector<256xf32>
      %257 = vector.shape_cast %256 : vector<256xf32> to vector<1x256xf32>
      %258 = tpu.concatenate %215, %221, %227, %233, %239, %245, %251, %257 in 0 : vector<1x256xf32>, vector<1x256xf32>, vector<1x256xf32>, vector<1x256xf32>, vector<1x256xf32>, vector<1x256xf32>, vector<1x256xf32>, vector<1x256xf32> -> vector<8x256xf32>
      %259 = arith.index_cast %122 : i32 to index
      %c0_79 = arith.constant 0 : index
      %260 = vector.load %arg22[%259, %c0_79] : memref<16x256xf32, #tpu.memory_space<vmem>>, vector<8x256xf32>
      tpu.vector_store %arg22[%259, %c0_79], %258 {strides = array<i32>} : memref<16x256xf32, #tpu.memory_space<vmem>>, vector<8x256xf32>,
      scf.yield %253 : vector<16x256xf32>
    }
    %c2_i32_51 = arith.constant 2 : i32
    %c0_52 = arith.constant 0 : index
    %c0_53 = arith.constant 0 : index
    %98 = vector.load %arg22[%c0_52, %c0_53] : memref<16x256xf32, #tpu.memory_space<vmem>>, vector<16x256xf32>
    %c0_54 = arith.constant 0 : index
    %c0_55 = arith.constant 0 : index
    %c0_56 = arith.constant 0 : index
    %99 = vector.load %arg12[%c0_54, %c0_55, %c0_56] : memref<1x1x256xf32, #tpu.memory_space<vmem>>, vector<1x1x256xf32>
    %100 = vector.shape_cast %99 : vector<1x1x256xf32> to vector<1x256xf32>
    %101 = vector.broadcast %100 : vector<1x256xf32> to vector<16x256xf32>
    %102 = arith.mulf %71, %101 : vector<16x256xf32>
    %103 = arith.addf %98, %102 : vector<16x256xf32>
    %cst_57 = arith.constant 0.000000e+00 : f32
    %104 = vector.broadcast %cst_57 : f32 to vector<16x256xf32>
    %105 = arith.subf %104, %36 : vector<16x256xf32>
    %106 = math.exp %105 : vector<16x256xf32>
    %cst_58 = arith.constant 1.000000e+00 : f32
    %107 = vector.broadcast %cst_58 : f32 to vector<16x256xf32>
    %108 = arith.addf %107, %106 : vector<16x256xf32>
    %cst_59 = arith.constant 1.000000e+00 : f32
    %109 = vector.broadcast %cst_59 : f32 to vector<16x256xf32>
    %110 = arith.divf %109, %108 : vector<16x256xf32>
    %111 = arith.mulf %36, %110 : vector<16x256xf32>
    %112 = arith.mulf %103, %111 : vector<16x256xf32>
    %113 = arith.truncf %112 : vector<16x256xf32> to vector<16x256xbf16>
    %c0_60 = arith.constant 0 : index
    %c0_61 = arith.constant 0 : index
    %c0_62 = arith.constant 0 : index
    %114 = vector.load %arg13[%c0_60, %c0_61, %c0_62] : memref<1x256x128xbf16, #tpu.memory_space<vmem>>, vector<1x256x128xbf16>
    %115 = vector.shape_cast %114 : vector<1x256x128xbf16> to vector<256x128xbf16>
    %cst_63 = arith.constant dense<0.000000e+00> : vector<16x128xf32>
    %116 = tpu.matmul %113, %115, %cst_63 {dimension_numbers = #tpu.dot_dimension_numbers<[1], [0], [0], [1], [0, 0, 1, 1], [], []>} : vector<16x256xbf16>, vector<256x128xbf16>, vector<16x128xf32> -> vector<16x128xf32>
    %c0_64 = arith.constant 0 : index
    %c0_65 = arith.constant 0 : index
    %117 = vector.load %arg18[%c0_64, %c0_65] : memref<16x128xf32, #tpu.memory_space<vmem>>, vector<16x128xf32>
    tpu.vector_store %arg18[%c0_64, %c0_65], %116 {strides = array<i32>} : memref<16x128xf32, #tpu.memory_space<vmem>>, vector<16x128xf32>,
    %c1_i32_66 = arith.constant 1 : i32
    %118 = arith.cmpi eq, %arg1, %c1_i32_66 : i32
    %119 = arith.extui %118 : i1 to i32
    %c0_i32_67 = arith.constant 0 : i32
    %120 = arith.cmpi ne, %119, %c0_i32_67 : i32
    scf.if %120 {
      %121 = arith.addf %116, %6 : vector<16x128xf32>
      %cst_68 = arith.constant dense<0.000000e+00> : vector<16xf32>
      %122 = vector.multi_reduction <add>, %121, %cst_68 [1] : vector<16x128xf32> to vector<16xf32>
      %123 = vector.shape_cast %122 : vector<16xf32> to vector<16x1xf32>
      %cst_69 = arith.constant 1.280000e+02 : f32
      %124 = vector.broadcast %cst_69 : f32 to vector<16x1xf32>
      %125 = arith.divf %123, %124 : vector<16x1xf32>
      %126 = vector.broadcast %125 : vector<16x1xf32> to vector<16x128xf32>
      %127 = arith.subf %121, %126 : vector<16x128xf32>
      %128 = arith.mulf %127, %127 : vector<16x128xf32>
      %cst_70 = arith.constant dense<0.000000e+00> : vector<16xf32>
      %129 = vector.multi_reduction <add>, %128, %cst_70 [1] : vector<16x128xf32> to vector<16xf32>
      %130 = vector.shape_cast %129 : vector<16xf32> to vector<16x1xf32>
      %cst_71 = arith.constant 1.280000e+02 : f32
      %131 = vector.broadcast %cst_71 : f32 to vector<16x1xf32>
      %132 = arith.divf %130, %131 : vector<16x1xf32>
      %cst_72 = arith.constant 9.99999974E-6 : f32
      %133 = vector.broadcast %cst_72 : f32 to vector<16x1xf32>
      %134 = arith.addf %132, %133 : vector<16x1xf32>
      %135 = math.rsqrt %134 : vector<16x1xf32>
      %136 = vector.broadcast %135 : vector<16x1xf32> to vector<16x128xf32>
      %137 = arith.mulf %127, %136 : vector<16x128xf32>
      %c0_73 = arith.constant 0 : index
      %c0_74 = arith.constant 0 : index
      %138 = vector.load %arg14[%c0_73, %c0_74] : memref<1x128xf32, #tpu.memory_space<vmem>>, vector<1x128xf32>
      %139 = vector.broadcast %138 : vector<1x128xf32> to vector<16x128xf32>
      %140 = arith.mulf %137, %139 : vector<16x128xf32>
      %c0_75 = arith.constant 0 : index
      %c0_76 = arith.constant 0 : index
      %141 = vector.load %arg15[%c0_75, %c0_76] : memref<1x128xf32, #tpu.memory_space<vmem>>, vector<1x128xf32>
      %142 = vector.broadcast %141 : vector<1x128xf32> to vector<16x128xf32>
      %143 = arith.addf %140, %142 : vector<16x128xf32>
      %c0_77 = arith.constant 0 : index
      %c0_78 = arith.constant 0 : index
      %c0_79 = arith.constant 0 : index
      %144 = vector.load %arg16[%c0_77, %c0_78, %c0_79] : memref<1x16x128xf32, #tpu.memory_space<vmem>>, vector<1x16x128xf32>
      %145 = vector.shape_cast %144 : vector<1x16x128xf32> to vector<16x128xf32>
      %146 = vector.shape_cast %143 : vector<16x128xf32> to vector<1x16x128xf32>
      tpu.vector_store %arg16[%c0_77, %c0_78, %c0_79], %146 {strides = array<i32>} : memref<1x16x128xf32, #tpu.memory_space<vmem>>, vector<1x16x128xf32>,
    } else {
    }
    return
  }
  func.func @transform_0(%arg0: i32, %arg1: i32) -> (i32, i32, i32) {
    %c0_i32 = arith.constant 0 : i32
    %c0_i32_0 = arith.constant 0 : i32
    %c0_i32_1 = arith.constant 0 : i32
    return %arg0, %c0_i32, %c0_i32_0 : i32, i32, i32
  }
  func.func @transform_1(%arg0: i32, %arg1: i32) -> (i32, i32, i32) {
    %c0_i32 = arith.constant 0 : i32
    %c0_i32_0 = arith.constant 0 : i32
    %c0_i32_1 = arith.constant 0 : i32
    return %arg1, %c0_i32, %c0_i32_0 : i32, i32, i32
  }
  func.func @transform_2(%arg0: i32, %arg1: i32) -> (i32, i32, i32) {
    %c0_i32 = arith.constant 0 : i32
    %c0_i32_0 = arith.constant 0 : i32
    %c0_i32_1 = arith.constant 0 : i32
    return %arg1, %c0_i32, %c0_i32_0 : i32, i32, i32
  }
  func.func @transform_3(%arg0: i32, %arg1: i32) -> (i32, i32, i32) {
    %c0_i32 = arith.constant 0 : i32
    %c0_i32_0 = arith.constant 0 : i32
    %c0_i32_1 = arith.constant 0 : i32
    return %arg1, %c0_i32, %c0_i32_0 : i32, i32, i32
  }
  func.func @transform_4(%arg0: i32, %arg1: i32) -> (i32, i32, i32) {
    %c0_i32 = arith.constant 0 : i32
    %c0_i32_0 = arith.constant 0 : i32
    %c0_i32_1 = arith.constant 0 : i32
    return %arg1, %c0_i32, %c0_i32_0 : i32, i32, i32
  }
  func.func @transform_5(%arg0: i32, %arg1: i32) -> (i32, i32, i32) {
    %c0_i32 = arith.constant 0 : i32
    %c0_i32_0 = arith.constant 0 : i32
    %c0_i32_1 = arith.constant 0 : i32
    return %arg1, %c0_i32, %c0_i32_0 : i32, i32, i32
  }
  func.func @transform_6(%arg0: i32, %arg1: i32) -> (i32, i32, i32) {
    %c0_i32 = arith.constant 0 : i32
    %c0_i32_0 = arith.constant 0 : i32
    %c0_i32_1 = arith.constant 0 : i32
    return %arg1, %c0_i32, %c0_i32_0 : i32, i32, i32
  }
  func.func @transform_7(%arg0: i32, %arg1: i32) -> (i32, i32, i32) {
    %c0_i32 = arith.constant 0 : i32
    %c0_i32_0 = arith.constant 0 : i32
    %c0_i32_1 = arith.constant 0 : i32
    return %arg1, %c0_i32, %c0_i32_0 : i32, i32, i32
  }
  func.func @transform_8(%arg0: i32, %arg1: i32) -> (i32, i32, i32) {
    %c0_i32 = arith.constant 0 : i32
    %c0_i32_0 = arith.constant 0 : i32
    %c0_i32_1 = arith.constant 0 : i32
    return %arg1, %c0_i32, %c0_i32_0 : i32, i32, i32
  }
  func.func @transform_9(%arg0: i32, %arg1: i32) -> (i32, i32, i32) {
    %c0_i32 = arith.constant 0 : i32
    %c0_i32_0 = arith.constant 0 : i32
    %c0_i32_1 = arith.constant 0 : i32
    return %arg1, %c0_i32, %c0_i32_0 : i32, i32, i32
  }
  func.func @transform_10(%arg0: i32, %arg1: i32) -> (i32, i32, i32) {
    %c0_i32 = arith.constant 0 : i32
    %c0_i32_0 = arith.constant 0 : i32
    %c0_i32_1 = arith.constant 0 : i32
    return %arg1, %c0_i32, %c0_i32_0 : i32, i32, i32
  }
  func.func @transform_11(%arg0: i32, %arg1: i32) -> (i32, i32, i32) {
    %c0_i32 = arith.constant 0 : i32
    %c0_i32_0 = arith.constant 0 : i32
    %c0_i32_1 = arith.constant 0 : i32
    return %arg1, %c0_i32, %c0_i32_0 : i32, i32, i32
  }
  func.func @transform_12(%arg0: i32, %arg1: i32) -> (i32, i32) {
    %c0_i32 = arith.constant 0 : i32
    %c0_i32_0 = arith.constant 0 : i32
    %c0_i32_1 = arith.constant 0 : i32
    return %c0_i32, %c0_i32_0 : i32, i32
  }
  func.func @transform_13(%arg0: i32, %arg1: i32) -> (i32, i32) {
    %c0_i32 = arith.constant 0 : i32
    %c0_i32_0 = arith.constant 0 : i32
    %c0_i32_1 = arith.constant 0 : i32
    return %c0_i32, %c0_i32_0 : i32, i32
  }
  func.func @transform_14(%arg0: i32, %arg1: i32) -> (i32, i32, i32) {
    %c0_i32 = arith.constant 0 : i32
    %c0_i32_0 = arith.constant 0 : i32
    %c0_i32_1 = arith.constant 0 : i32
    return %arg0, %c0_i32, %c0_i32_0 : i32, i32, i32
  }
}

</mosaic_0001>

<llo_original>
// kernel: tpu_custom_call.1
$region0: #{tpu_custom_call.1}
  #allocation0 [shape = 'u32[]', space=smem, size = 0x4, offset = 0x4, fixed_abs, tag = 'smem constant byte address 0x4 - core index']
  #allocation1 [shape = 'u32[144,128]{1,0:T(1,128)}', space=vmem, size = 0x12000, scoped, tag = 'internal scratch']
  #allocation2 [shape = 'f32[16,128]{1,0:T(8,128)}', space=vmem, size = 0x2000, scoped, tag = 'scratch operand']
  #allocation3 [shape = 'f32[16,128]{1,0:T(8,128)}', space=vmem, size = 0x2000, scoped, tag = 'scratch operand']
  #allocation4 [shape = 'f32[16,256]{1,0:T(8,128)}', space=vmem, size = 0x4000, scoped, tag = 'scratch operand']
  #allocation5 [shape = 'f32[16,256]{1,0:T(8,128)}', space=vmem, size = 0x4000, scoped, tag = 'scratch operand']
  #allocation6 [shape = 'f32[16,128]{1,0:T(8,128)}', space=vmem, size = 0x2000, scoped, tag = 'scratch operand']
  #allocation7 [shape = 'f32[16,256]{1,0:T(8,128)}', space=vmem, size = 0x4000, scoped, tag = 'scratch operand']
  %s0 = inlined_call_operand.hbm [shape: f32[2,16,128], index: 0, kind: input, shape index: {}]
  %s1 = inlined_call_operand.vmem [shape: f32[2,1,128], index: 1, kind: input, shape index: {}]
  %s2 = inlined_call_operand.hbm [shape: f32[2,1,128], index: 2, kind: input, shape index: {}]
  %s3 = inlined_call_operand.hbm [shape: bf16[2,128,512], index: 3, kind: input, shape index: {}]
  %s4 = inlined_call_operand.hbm [shape: f32[2,4,256], index: 4, kind: input, shape index: {}]
  %s5 = inlined_call_operand.vmem [shape: f32[2,1,256], index: 5, kind: input, shape index: {}]
  %s6 = inlined_call_operand.hbm [shape: bf16[2,256,128], index: 6, kind: input, shape index: {}]
  %s7 = inlined_call_operand.hbm [shape: bf16[2,128,256], index: 7, kind: input, shape index: {}]
  %s8 = inlined_call_operand.vmem [shape: f32[2,1,256], index: 8, kind: input, shape index: {}]
  %s9 = inlined_call_operand.hbm [shape: f32[2,16,256], index: 9, kind: input, shape index: {}]
  %s10 = inlined_call_operand.vmem [shape: f32[2,1,256], index: 10, kind: input, shape index: {}]
  %s11 = inlined_call_operand.hbm [shape: bf16[2,256,128], index: 11, kind: input, shape index: {}]
  %s12 = inlined_call_operand.vmem [shape: f32[1,128], index: 12, kind: input, shape index: {}]
  %s13 = inlined_call_operand.vmem [shape: f32[1,128], index: 13, kind: input, shape index: {}]
  %s14 = inlined_call_operand.hbm [shape: f32[2,16,128], index: 14, kind: output, shape index: {}]
  %s15 = sld [smem:[#allocation0]]
  $region140: #{tpu_custom_call.1} parent=0
    _
  %s17 = ssub.s32 1, %s15
  %s18 = scalar_select 0, %s17, %s15
  $region1: #{tpu_custom_call.1} parent=0
    #allocation8 [shape = 'u8[16384]{0}', space=vmem, size = 0x4000, scoped, tag = 'input window, operand 0']
    #allocation9 [shape = 's32[2]{0}', space=sflag, size = 0x8, scoped, tag = 'scoped memory for tpu_custom_call.1']
    #allocation10 [shape = 's32[2]{0}', space=sflag, size = 0x8, scoped, tag = 'scoped memory for tpu_custom_call.1']
    #allocation11 [shape = 'u8[1024]{0}', space=vmem, size = 0x400, scoped, tag = 'input window, operand 2']
    #allocation12 [shape = 's32[2]{0}', space=sflag, size = 0x8, scoped, tag = 'scoped memory for tpu_custom_call.1']
    #allocation13 [shape = 'u8[262144]{0}', space=vmem, size = 0x40000, scoped, tag = 'input window, operand 3']
    #allocation14 [shape = 'u8[8192]{0}', space=vmem, size = 0x2000, scoped, tag = 'input window, operand 4']
    #allocation15 [shape = 's32[2]{0}', space=sflag, size = 0x8, scoped, tag = 'scoped memory for tpu_custom_call.1']
    #allocation16 [shape = 'u8[131072]{0}', space=vmem, size = 0x20000, scoped, tag = 'input window, operand 6']
    #allocation17 [shape = 'u8[131072]{0}', space=vmem, size = 0x20000, scoped, tag = 'input window, operand 7']
    #allocation18 [shape = 's32[2]{0}', space=sflag, size = 0x8, scoped, tag = 'scoped memory for tpu_custom_call.1']
    #allocation19 [shape = 'u8[32768]{0}', space=vmem, size = 0x8000, scoped, tag = 'input window, operand 9']
    #allocation20 [shape = 'u8[131072]{0}', space=vmem, size = 0x20000, scoped, tag = 'input window, operand 11']
    #allocation21 [shape = 's32[2]{0}', space=sflag, size = 0x8, scoped, tag = 'scoped memory for tpu_custom_call.1']
    #allocation22 [shape = 'u8[16384]{0}', space=vmem, size = 0x4000, scoped, tag = 'output window, operand 0']
    %19 = vsyncpa [#allocation9], 0
    %s20 = scalar_lea.sflag [#allocation9], 1
    %21 = vsyncpa %s20, 0
    %22 = vsyncpa [#allocation12], 0
    %s23 = scalar_lea.sflag [#allocation12], 1
    %24 = vsyncpa %s23, 0
    %25 = vsyncpa [#allocation15], 0
    %s26 = scalar_lea.sflag [#allocation15], 1
    %27 = vsyncpa %s26, 0
    %28 = vsyncpa [#allocation18], 0
    %s29 = scalar_lea.sflag [#allocation18], 1
    %30 = vsyncpa %s29, 0
    %31 = vsyncpa [#allocation21], 0
    %s32 = scalar_lea.sflag [#allocation21], 1
    %33 = vsyncpa %s32, 0
    %34 = vsyncpa [#allocation10], 0
    %s35 = scalar_lea.sflag [#allocation10], 1
    %36 = vsyncpa %s35, 0
    loop: start=0, step=1, limit=6
    $region2: #{tpu_custom_call.1} parent=1 // loop_pre_header
      _
    $region3: #{tpu_custom_call.1} parent=1 // loop_header
      %s38 = sphi 0, %s42
      %p39 = scmp.ge.s32.totalorder %s38, 6
      %s45 = sphi 0, %s57
      %s46 = sphi 0, %s53
      %s47 = sphi 0, %s45
      %s48 = sphi 0, %s46
      %s49 = sphi 0, %s47
      %s50 = sphi 0, %s48
      %s60 = sphi 0, %s62
      %s63 = sphi 0, %s60
      %s64 = sphi 0, %s63
      %s80 = sphi 0, %s64
      %s86 = sphi 0, %s88
      %s89 = sphi 0, %s86
      %s90 = sphi 0, %s89
      %s106 = sphi 0, %s90
      %s112 = sphi 0, %s114
      %s115 = sphi 0, %s112
      %s116 = sphi 0, %s115
      %s132 = sphi 0, %s116
      %s138 = sphi 0, %s140
      %s141 = sphi 0, %s138
      %s142 = sphi 0, %s141
      %s158 = sphi 0, %s142
      %s164 = sphi 0, %s166
      %s167 = sphi 0, %s164
      %s168 = sphi 0, %s167
      %s184 = sphi 0, %s168
      %s190 = sphi 0, %s192
      %s193 = sphi 0, %s190
      %s194 = sphi 0, %s193
      %s210 = sphi 0, %s194
      %s216 = sphi 0, %s218
      %s219 = sphi 0, %s216
      %s220 = sphi 0, %s219
      %s236 = sphi 0, %s220
      %s242 = sphi 0, %s244
      %s245 = sphi 0, %s242
      %s246 = sphi 0, %s245
      %s262 = sphi 0, %s246
      %s268 = sphi 0, %s270
      %s271 = sphi 0, %s268
      %s272 = sphi 0, %s271
      %s288 = sphi 0, %s272
      %s294 = sphi 0, %s296
      %s297 = sphi 0, %s294
      %s298 = sphi 0, %s297
      %s314 = sphi 0, %s298
      %s320 = sphi 0, %s322
      %s323 = sphi 0, %s320
      %s324 = sphi 0, %s323
      %s340 = sphi 0, %s324
      %s346 = sphi 0, %s348
      %s349 = sphi 0, %s346
      %s350 = sphi 0, %s349
      %s366 = sphi 0, %s350
      %s370 = sphi 0, %s370
      %s372 = sphi 0, %s370
      %s373 = sphi 0, %s372
      %s387 = sphi 0, %s373
      %s391 = sphi 0, %s391
      %s393 = sphi 0, %s391
      %s394 = sphi 0, %s393
      %s408 = sphi 0, %s394
      %s414 = sphi 0, %s416
      %s417 = sphi 0, %s414
      %s418 = sphi 0, %s417
      %s434 = sphi 0, %s418
    $region4: #{tpu_custom_call.1} parent=1 // loop_header_branch
      %41 = sbr.rel (%p39) target = $region8
    $region5: #{tpu_custom_call.1} parent=1 // loop_body
      %s43 = ssub.s32 %s38, 1
      %s44 = ssub.s32 %s38, 2
      %s51 = sadd.s32 1, %s46
      %p52 = scmp.ge.s32.totalorder %s51, 2
      %s53 = scalar_select %p52, 0, %s51
      %s54 = sadd.s32 1, %s45
      %s55 = scalar_select %p52, %s54, %s45
      %p56 = scmp.ge.s32.totalorder %s55, 2
      %s57 = scalar_select %p56, 0, %s55
      %s58 = ssub.s32 %s45, %s57
      %p59 = scmp.eq.s32.totalorder %s58, 0
      %s61 = sadd.s32 %s60, 1
      %s62 = scalar_select %p59, %s60, %s61
      %p65 = pneg %p59
      %p66 = scmp.eq.s32.totalorder %s38, 3
      %p67 = por %p65, %p66
      %p68 = scmp.ne.s32.totalorder %s60, %s63
      %p69 = scmp.eq.s32.totalorder %s38, 0
      %p70 = por %p68, %p69
      %p71 = scmp.ne.s32.totalorder %s60, %s63
      %p72 = scmp.eq.s32.totalorder %s43, 3
      %p73 = por %p71, %p72
      %p74 = scmp.ne.s32.totalorder %s63, %s64
      %p75 = scmp.eq.s32.totalorder %s43, 0
      %p76 = por %p74, %p75
      %p77 = scmp.ne.s32.totalorder %s63, %s64
      %p78 = scmp.eq.s32.totalorder %s44, 3
      %p79 = por %p77, %p78
      %p81 = scmp.ne.s32.totalorder %s64, %s80
      %p82 = scmp.eq.s32.totalorder %s44, 0
      %p83 = por %p81, %p82
      %s84 = ssub.s32 %s46, %s53
      %p85 = scmp.eq.s32.totalorder %s84, 0
      %s87 = sadd.s32 %s86, 1
      %s88 = scalar_select %p85, %s86, %s87
      %p91 = pneg %p85
      %p92 = scmp.eq.s32.totalorder %s38, 3
      %p93 = por %p91, %p92
      %p94 = scmp.ne.s32.totalorder %s86, %s89
      %p95 = scmp.eq.s32.totalorder %s38, 0
      %p96 = por %p94, %p95
      %p97 = scmp.ne.s32.totalorder %s86, %s89
      %p98 = scmp.eq.s32.totalorder %s43, 3
      %p99 = por %p97, %p98
      %p100 = scmp.ne.s32.totalorder %s89, %s90
      %p101 = scmp.eq.s32.totalorder %s43, 0
      %p102 = por %p100, %p101
      %p103 = scmp.ne.s32.totalorder %s89, %s90
      %p104 = scmp.eq.s32.totalorder %s44, 3
      %p105 = por %p103, %p104
      %p107 = scmp.ne.s32.totalorder %s90, %s106
      %p108 = scmp.eq.s32.totalorder %s44, 0
      %p109 = por %p107, %p108
      %s110 = ssub.s32 %s46, %s53
      %p111 = scmp.eq.s32.totalorder %s110, 0
      %s113 = sadd.s32 %s112, 1
      %s114 = scalar_select %p111, %s112, %s113
      %p117 = pneg %p111
      %p118 = scmp.eq.s32.totalorder %s38, 3
      %p119 = por %p117, %p118
      %p120 = scmp.ne.s32.totalorder %s112, %s115
      %p121 = scmp.eq.s32.totalorder %s38, 0
      %p122 = por %p120, %p121
      %p123 = scmp.ne.s32.totalorder %s112, %s115
      %p124 = scmp.eq.s32.totalorder %s43, 3
      %p125 = por %p123, %p124
      %p126 = scmp.ne.s32.totalorder %s115, %s116
      %p127 = scmp.eq.s32.totalorder %s43, 0
      %p128 = por %p126, %p127
      %p129 = scmp.ne.s32.totalorder %s115, %s116
      %p130 = scmp.eq.s32.totalorder %s44, 3
      %p131 = por %p129, %p130
      %p133 = scmp.ne.s32.totalorder %s116, %s132
      %p134 = scmp.eq.s32.totalorder %s44, 0
      %p135 = por %p133, %p134
      %s136 = ssub.s32 %s46, %s53
      %p137 = scmp.eq.s32.totalorder %s136, 0
      %s139 = sadd.s32 %s138, 1
      %s140 = scalar_select %p137, %s138, %s139
      %p143 = pneg %p137
      %p144 = scmp.eq.s32.totalorder %s38, 3
      %p145 = por %p143, %p144
      %p146 = scmp.ne.s32.totalorder %s138, %s141
      %p147 = scmp.eq.s32.totalorder %s38, 0
      %p148 = por %p146, %p147
      %p149 = scmp.ne.s32.totalorder %s138, %s141
      %p150 = scmp.eq.s32.totalorder %s43, 3
      %p151 = por %p149, %p150
      %p152 = scmp.ne.s32.totalorder %s141, %s142
      %p153 = scmp.eq.s32.totalorder %s43, 0
      %p154 = por %p152, %p153
      %p155 = scmp.ne.s32.totalorder %s141, %s142
      %p156 = scmp.eq.s32.totalorder %s44, 3
      %p157 = por %p155, %p156
      %p159 = scmp.ne.s32.totalorder %s142, %s158
      %p160 = scmp.eq.s32.totalorder %s44, 0
      %p161 = por %p159, %p160
      %s162 = ssub.s32 %s46, %s53
      %p163 = scmp.eq.s32.totalorder %s162, 0
      %s165 = sadd.s32 %s164, 1
      %s166 = scalar_select %p163, %s164, %s165
      %p169 = pneg %p163
      %p170 = scmp.eq.s32.totalorder %s38, 3
      %p171 = por %p169, %p170
      %p172 = scmp.ne.s32.totalorder %s164, %s167
      %p173 = scmp.eq.s32.totalorder %s38, 0
      %p174 = por %p172, %p173
      %p175 = scmp.ne.s32.totalorder %s164, %s167
      %p176 = scmp.eq.s32.totalorder %s43, 3
      %p177 = por %p175, %p176
      %p178 = scmp.ne.s32.totalorder %s167, %s168
      %p179 = scmp.eq.s32.totalorder %s43, 0
      %p180 = por %p178, %p179
      %p181 = scmp.ne.s32.totalorder %s167, %s168
      %p182 = scmp.eq.s32.totalorder %s44, 3
      %p183 = por %p181, %p182
      %p185 = scmp.ne.s32.totalorder %s168, %s184
      %p186 = scmp.eq.s32.totalorder %s44, 0
      %p187 = por %p185, %p186
      %s188 = ssub.s32 %s46, %s53
      %p189 = scmp.eq.s32.totalorder %s188, 0
      %s191 = sadd.s32 %s190, 1
      %s192 = scalar_select %p189, %s190, %s191
      %p195 = pneg %p189
      %p196 = scmp.eq.s32.totalorder %s38, 3
      %p197 = por %p195, %p196
      %p198 = scmp.ne.s32.totalorder %s190, %s193
      %p199 = scmp.eq.s32.totalorder %s38, 0
      %p200 = por %p198, %p199
      %p201 = scmp.ne.s32.totalorder %s190, %s193
      %p202 = scmp.eq.s32.totalorder %s43, 3
      %p203 = por %p201, %p202
      %p204 = scmp.ne.s32.totalorder %s193, %s194
      %p205 = scmp.eq.s32.totalorder %s43, 0
      %p206 = por %p204, %p205
      %p207 = scmp.ne.s32.totalorder %s193, %s194
      %p208 = scmp.eq.s32.totalorder %s44, 3
      %p209 = por %p207, %p208
      %p211 = scmp.ne.s32.totalorder %s194, %s210
      %p212 = scmp.eq.s32.totalorder %s44, 0
      %p213 = por %p211, %p212
      %s214 = ssub.s32 %s46, %s53
      %p215 = scmp.eq.s32.totalorder %s214, 0
      %s217 = sadd.s32 %s216, 1
      %s218 = scalar_select %p215, %s216, %s217
      %p221 = pneg %p215
      %p222 = scmp.eq.s32.totalorder %s38, 3
      %p223 = por %p221, %p222
      %p224 = scmp.ne.s32.totalorder %s216, %s219
      %p225 = scmp.eq.s32.totalorder %s38, 0
      %p226 = por %p224, %p225
      %p227 = scmp.ne.s32.totalorder %s216, %s219
      %p228 = scmp.eq.s32.totalorder %s43, 3
      %p229 = por %p227, %p228
      %p230 = scmp.ne.s32.totalorder %s219, %s220
      %p231 = scmp.eq.s32.totalorder %s43, 0
      %p232 = por %p230, %p231
      %p233 = scmp.ne.s32.totalorder %s219, %s220
      %p234 = scmp.eq.s32.totalorder %s44, 3
      %p235 = por %p233, %p234
      %p237 = scmp.ne.s32.totalorder %s220, %s236
      %p238 = scmp.eq.s32.totalorder %s44, 0
      %p239 = por %p237, %p238
      %s240 = ssub.s32 %s46, %s53
      %p241 = scmp.eq.s32.totalorder %s240, 0
      %s243 = sadd.s32 %s242, 1
      %s244 = scalar_select %p241, %s242, %s243
      %p247 = pneg %p241
      %p248 = scmp.eq.s32.totalorder %s38, 3
      %p249 = por %p247, %p248
      %p250 = scmp.ne.s32.totalorder %s242, %s245
      %p251 = scmp.eq.s32.totalorder %s38, 0
      %p252 = por %p250, %p251
      %p253 = scmp.ne.s32.totalorder %s242, %s245
      %p254 = scmp.eq.s32.totalorder %s43, 3
      %p255 = por %p253, %p254
      %p256 = scmp.ne.s32.totalorder %s245, %s246
      %p257 = scmp.eq.s32.totalorder %s43, 0
      %p258 = por %p256, %p257
      %p259 = scmp.ne.s32.totalorder %s245, %s246
      %p260 = scmp.eq.s32.totalorder %s44, 3
      %p261 = por %p259, %p260
      %p263 = scmp.ne.s32.totalorder %s246, %s262
      %p264 = scmp.eq.s32.totalorder %s44, 0
      %p265 = por %p263, %p264
      %s266 = ssub.s32 %s46, %s53
      %p267 = scmp.eq.s32.totalorder %s266, 0
      %s269 = sadd.s32 %s268, 1
      %s270 = scalar_select %p267, %s268, %s269
      %p273 = pneg %p267
      %p274 = scmp.eq.s32.totalorder %s38, 3
      %p275 = por %p273, %p274
      %p276 = scmp.ne.s32.totalorder %s268, %s271
      %p277 = scmp.eq.s32.totalorder %s38, 0
      %p278 = por %p276, %p277
      %p279 = scmp.ne.s32.totalorder %s268, %s271
      %p280 = scmp.eq.s32.totalorder %s43, 3
      %p281 = por %p279, %p280
      %p282 = scmp.ne.s32.totalorder %s271, %s272
      %p283 = scmp.eq.s32.totalorder %s43, 0
      %p284 = por %p282, %p283
      %p285 = scmp.ne.s32.totalorder %s271, %s272
      %p286 = scmp.eq.s32.totalorder %s44, 3
      %p287 = por %p285, %p286
      %p289 = scmp.ne.s32.totalorder %s272, %s288
      %p290 = scmp.eq.s32.totalorder %s44, 0
      %p291 = por %p289, %p290
      %s292 = ssub.s32 %s46, %s53
      %p293 = scmp.eq.s32.totalorder %s292, 0
      %s295 = sadd.s32 %s294, 1
      %s296 = scalar_select %p293, %s294, %s295
      %p299 = pneg %p293
      %p300 = scmp.eq.s32.totalorder %s38, 3
      %p301 = por %p299, %p300
      %p302 = scmp.ne.s32.totalorder %s294, %s297
      %p303 = scmp.eq.s32.totalorder %s38, 0
      %p304 = por %p302, %p303
      %p305 = scmp.ne.s32.totalorder %s294, %s297
      %p306 = scmp.eq.s32.totalorder %s43, 3
      %p307 = por %p305, %p306
      %p308 = scmp.ne.s32.totalorder %s297, %s298
      %p309 = scmp.eq.s32.totalorder %s43, 0
      %p310 = por %p308, %p309
      %p311 = scmp.ne.s32.totalorder %s297, %s298
      %p312 = scmp.eq.s32.totalorder %s44, 3
      %p313 = por %p311, %p312
      %p315 = scmp.ne.s32.totalorder %s298, %s314
      %p316 = scmp.eq.s32.totalorder %s44, 0
      %p317 = por %p315, %p316
      %s318 = ssub.s32 %s46, %s53
      %p319 = scmp.eq.s32.totalorder %s318, 0
      %s321 = sadd.s32 %s320, 1
      %s322 = scalar_select %p319, %s320, %s321
      %p325 = pneg %p319
      %p326 = scmp.eq.s32.totalorder %s38, 3
      %p327 = por %p325, %p326
      %p328 = scmp.ne.s32.totalorder %s320, %s323
      %p329 = scmp.eq.s32.totalorder %s38, 0
      %p330 = por %p328, %p329
      %p331 = scmp.ne.s32.totalorder %s320, %s323
      %p332 = scmp.eq.s32.totalorder %s43, 3
      %p333 = por %p331, %p332
      %p334 = scmp.ne.s32.totalorder %s323, %s324
      %p335 = scmp.eq.s32.totalorder %s43, 0
      %p336 = por %p334, %p335
      %p337 = scmp.ne.s32.totalorder %s323, %s324
      %p338 = scmp.eq.s32.totalorder %s44, 3
      %p339 = por %p337, %p338
      %p341 = scmp.ne.s32.totalorder %s324, %s340
      %p342 = scmp.eq.s32.totalorder %s44, 0
      %p343 = por %p341, %p342
      %s344 = ssub.s32 %s46, %s53
      %p345 = scmp.eq.s32.totalorder %s344, 0
      %s347 = sadd.s32 %s346, 1
      %s348 = scalar_select %p345, %s346, %s347
      %p351 = pneg %p345
      %p352 = scmp.eq.s32.totalorder %s38, 3
      %p353 = por %p351, %p352
      %p354 = scmp.ne.s32.totalorder %s346, %s349
      %p355 = scmp.eq.s32.totalorder %s38, 0
      %p356 = por %p354, %p355
      %p357 = scmp.ne.s32.totalorder %s346, %s349
      %p358 = scmp.eq.s32.totalorder %s43, 3
      %p359 = por %p357, %p358
      %p360 = scmp.ne.s32.totalorder %s349, %s350
      %p361 = scmp.eq.s32.totalorder %s43, 0
      %p362 = por %p360, %p361
      %p363 = scmp.ne.s32.totalorder %s349, %s350
      %p364 = scmp.eq.s32.totalorder %s44, 3
      %p365 = por %p363, %p364
      %p367 = scmp.ne.s32.totalorder %s350, %s366
      %p368 = scmp.eq.s32.totalorder %s44, 0
      %p369 = por %p367, %p368
      %s371 = sadd.s32 %s370, 1
      %p374 = scmp.eq.s32.totalorder %s38, 3
      %p375 = scmp.ne.s32.totalorder %s370, %s372
      %p376 = scmp.eq.s32.totalorder %s38, 0
      %p377 = por %p375, %p376
      %p378 = scmp.ne.s32.totalorder %s370, %s372
      %p379 = scmp.eq.s32.totalorder %s43, 3
      %p380 = por %p378, %p379
      %p381 = scmp.ne.s32.totalorder %s372, %s373
      %p382 = scmp.eq.s32.totalorder %s43, 0
      %p383 = por %p381, %p382
      %p384 = scmp.ne.s32.totalorder %s372, %s373
      %p385 = scmp.eq.s32.totalorder %s44, 3
      %p386 = por %p384, %p385
      %p388 = scmp.ne.s32.totalorder %s373, %s387
      %p389 = scmp.eq.s32.totalorder %s44, 0
      %p390 = por %p388, %p389
      %s392 = sadd.s32 %s391, 1
      %p395 = scmp.eq.s32.totalorder %s38, 3
      %p396 = scmp.ne.s32.totalorder %s391, %s393
      %p397 = scmp.eq.s32.totalorder %s38, 0
      %p398 = por %p396, %p397
      %p399 = scmp.ne.s32.totalorder %s391, %s393
      %p400 = scmp.eq.s32.totalorder %s43, 3
      %p401 = por %p399, %p400
      %p402 = scmp.ne.s32.totalorder %s393, %s394
      %p403 = scmp.eq.s32.totalorder %s43, 0
      %p404 = por %p402, %p403
      %p405 = scmp.ne.s32.totalorder %s393, %s394
      %p406 = scmp.eq.s32.totalorder %s44, 3
      %p407 = por %p405, %p406
      %p409 = scmp.ne.s32.totalorder %s394, %s408
      %p410 = scmp.eq.s32.totalorder %s44, 0
      %p411 = por %p409, %p410
      %s412 = ssub.s32 %s45, %s57
      %p413 = scmp.eq.s32.totalorder %s412, 0
      %s415 = sadd.s32 %s414, 1
      %s416 = scalar_select %p413, %s414, %s415
      %p419 = pneg %p413
      %p420 = scmp.eq.s32.totalorder %s38, 3
      %p421 = por %p419, %p420
      %p422 = scmp.ne.s32.totalorder %s414, %s417
      %p423 = scmp.eq.s32.totalorder %s38, 0
      %p424 = por %p422, %p423
      %p425 = scmp.ne.s32.totalorder %s414, %s417
      %p426 = scmp.eq.s32.totalorder %s43, 3
      %p427 = por %p425, %p426
      %p428 = scmp.ne.s32.totalorder %s417, %s418
      %p429 = scmp.eq.s32.totalorder %s43, 0
      %p430 = por %p428, %p429
      %p431 = scmp.ne.s32.totalorder %s417, %s418
      %p432 = scmp.eq.s32.totalorder %s44, 3
      %p433 = por %p431, %p432
      %p435 = scmp.ne.s32.totalorder %s418, %s434
      %p436 = scmp.eq.s32.totalorder %s44, 0
      %p437 = por %p435, %p436
      %p438 = scmp.le.s32.totalorder 1, %s38
      %p439 = scmp.lt.s32.totalorder %s38, 5
      %p440 = pnand %p438, %p439
      %p441 = pneg %p440
      // Predicated region
      $region9: #{tpu_custom_call.1} parent=5 // pred_check
        _
      $region10: #{tpu_custom_call.1} parent=5 // pred_check_branch
        %443 = sbr.rel (%p440) target = $region12
      $region11: #{tpu_custom_call.1} parent=5 // pred_region
        %s444 = ssub.s32 %s38, 1
        // Predicated region
        $region13: #{tpu_custom_call.1} parent=11 // pred_check
          %p445 = pneg %p383
        $region14: #{tpu_custom_call.1} parent=11 // pred_check_branch
          %447 = sbr.rel (%p445) target = $region16
        $region15: #{tpu_custom_call.1} parent=11 // pred_region
          _
        $region16: #{tpu_custom_call.1} parent=11 // pred_fallthru
          _
        // Predicated region
        $region17: #{tpu_custom_call.1} parent=11 // pred_check
          %p448 = pneg %p404
        $region18: #{tpu_custom_call.1} parent=11 // pred_check_branch
          %450 = sbr.rel (%p448) target = $region20
        $region19: #{tpu_custom_call.1} parent=11 // pred_region
          _
        $region20: #{tpu_custom_call.1} parent=11 // pred_fallthru
          _
      $region12: #{tpu_custom_call.1} parent=5 // pred_fallthru
        _
      %p451 = scmp.lt.s32.totalorder %s38, 4
      // Predicated region
      $region21: #{tpu_custom_call.1} parent=5 // pred_check
        %p452 = pneg %p451
      $region22: #{tpu_custom_call.1} parent=5 // pred_check_branch
        %454 = sbr.rel (%p452) target = $region24
      $region23: #{tpu_custom_call.1} parent=5 // pred_region
        // Predicated region
        $region25: #{tpu_custom_call.1} parent=23 // pred_check
          %p455 = pneg %p70
        $region26: #{tpu_custom_call.1} parent=23 // pred_check_branch
          %457 = sbr.rel (%p455) target = $region28
        $region27: #{tpu_custom_call.1} parent=23 // pred_region
          %s458 = sand.u32 %s60, 1
          %s459 = scalar_lea.sflag [#allocation9], %s458
          %s460 = sand.u32 %s60, 1
          %s461 = smul.addr %s460, 16
          %s462 = scalar_lea.vmem [#allocation8], %s461
          %s464 = ssub.s32 256, 256
          %465 = vsyncadd %s459, %s464
          %s466 = smul.addr %s45, 2
          %s467 = smul.addr %s466, 128
          %s468 = scalar_lea.hbm %s0, %s467
          %s469 = sshll.u32 %s462, 4
          %s470 = int_to_ptr.vmem [resolvable:$true] %s469
          %475 = dma.hbm_to_vmem [thread:$0]  %s468, 256, %s470, %s459, 128, 128, 8
        $region28: #{tpu_custom_call.1} parent=23 // pred_fallthru
          _
        // Predicated region
        $region29: #{tpu_custom_call.1} parent=23 // pred_check
          %p476 = pneg %p96
        $region30: #{tpu_custom_call.1} parent=23 // pred_check_branch
          %478 = sbr.rel (%p476) target = $region32
        $region31: #{tpu_custom_call.1} parent=23 // pred_region
          %p479 = scmp.lt.s32.totalorder %s46, 1
          %s480 = scalar_select %p479, %s46, 1
          %s481 = scalar_lea.vmem %s1, %s480
        $region32: #{tpu_custom_call.1} parent=23 // pred_fallthru
          _
        // Predicated region
        $region33: #{tpu_custom_call.1} parent=23 // pred_check
          %p482 = pneg %p122
        $region34: #{tpu_custom_call.1} parent=23 // pred_check_branch
          %484 = sbr.rel (%p482) target = $region36
        $region35: #{tpu_custom_call.1} parent=23 // pred_region
          %s485 = sand.u32 %s38, 1
          %s486 = scalar_lea.sflag [#allocation12], %s485
          %s487 = sand.u32 %s112, 1
          %s488 = scalar_lea.vmem [#allocation11], %s487
          %s490 = ssub.s32 16, 16
          %491 = vsyncadd %s486, %s490
          %s492 = smul.addr %s46, 16
          %s493 = scalar_lea.hbm %s2, %s492
          %s495 = sshll.u32 %s488, 4
          %s496 = int_to_ptr.vmem [resolvable:$true] %s495
          %498 = dma.hbm_to_vmem [thread:$0]  %s493, 16, %s496, %s486
        $region36: #{tpu_custom_call.1} parent=23 // pred_fallthru
          _
        // Predicated region
        $region37: #{tpu_custom_call.1} parent=23 // pred_check
          %p499 = pneg %p148
        $region38: #{tpu_custom_call.1} parent=23 // pred_check_branch
          %501 = sbr.rel (%p499) target = $region40
        $region39: #{tpu_custom_call.1} parent=23 // pred_region
          %s502 = sand.u32 %s38, 1
          %s503 = scalar_lea.sflag [#allocation12], %s502
          %s504 = sand.u32 %s138, 1
          %s505 = smul.addr %s504, 256
          %s506 = scalar_lea.vmem [#allocation13], %s505
          %s508 = ssub.s32 4096, 4096
          %509 = vsyncadd %s503, %s508
          %s510 = smul.addr %s46, 64
          %s511 = smul.addr %s510, 64
          %s512 = scalar_lea.hbm %s3, %s511
          %s513 = sshll.u32 %s506, 4
          %s514 = int_to_ptr.vmem [resolvable:$true] %s513
          %519 = dma.hbm_to_vmem [thread:$0]  %s512, 4096, %s514, %s503, 256, 256, 16
        $region40: #{tpu_custom_call.1} parent=23 // pred_fallthru
          _
        // Predicated region
        $region41: #{tpu_custom_call.1} parent=23 // pred_check
          %p520 = pneg %p174
        $region42: #{tpu_custom_call.1} parent=23 // pred_check_branch
          %522 = sbr.rel (%p520) target = $region44
        $region43: #{tpu_custom_call.1} parent=23 // pred_region
          %s523 = sand.u32 %s38, 1
          %s524 = scalar_lea.sflag [#allocation15], %s523
          %s525 = sand.u32 %s164, 1
          %s526 = smul.addr %s525, 8
          %s527 = scalar_lea.vmem [#allocation14], %s526
          %s529 = ssub.s32 128, 128
          %530 = vsyncadd %s524, %s529
          %s531 = smul.addr %s46, 2
          %s532 = smul.addr %s531, 64
          %s533 = scalar_lea.hbm %s4, %s532
          %s535 = sshll.u32 %s527, 4
          %s536 = int_to_ptr.vmem [resolvable:$true] %s535
          %538 = dma.hbm_to_vmem [thread:$0]  %s533, 128, %s536, %s524
        $region44: #{tpu_custom_call.1} parent=23 // pred_fallthru
          _
        // Predicated region
        $region45: #{tpu_custom_call.1} parent=23 // pred_check
          %p539 = pneg %p200
        $region46: #{tpu_custom_call.1} parent=23 // pred_check_branch
          %541 = sbr.rel (%p539) target = $region48
        $region47: #{tpu_custom_call.1} parent=23 // pred_region
          %p542 = scmp.lt.s32.totalorder %s46, 1
          %s543 = scalar_select %p542, %s46, 1
          %s544 = smul.addr %s543, 2
          %s545 = scalar_lea.vmem %s5, %s544
        $region48: #{tpu_custom_call.1} parent=23 // pred_fallthru
          _
        // Predicated region
        $region49: #{tpu_custom_call.1} parent=23 // pred_check
          %p546 = pneg %p226
        $region50: #{tpu_custom_call.1} parent=23 // pred_check_branch
          %548 = sbr.rel (%p546) target = $region52
        $region51: #{tpu_custom_call.1} parent=23 // pred_region
          %s549 = sand.u32 %s38, 1
          %s550 = scalar_lea.sflag [#allocation15], %s549
          %s551 = sand.u32 %s216, 1
          %s552 = smul.addr %s551, 128
          %s553 = scalar_lea.vmem [#allocation16], %s552
          %s555 = ssub.s32 2048, 2048
          %556 = vsyncadd %s550, %s555
          %s557 = smul.addr %s46, 32
          %s558 = smul.addr %s557, 64
          %s559 = scalar_lea.hbm %s6, %s558
          %s560 = sshll.u32 %s553, 4
          %s561 = int_to_ptr.vmem [resolvable:$true] %s560
          %566 = dma.hbm_to_vmem [thread:$0]  %s559, 2048, %s561, %s550, 64, 64, 4
        $region52: #{tpu_custom_call.1} parent=23 // pred_fallthru
          _
        // Predicated region
        $region53: #{tpu_custom_call.1} parent=23 // pred_check
          %p567 = pneg %p252
        $region54: #{tpu_custom_call.1} parent=23 // pred_check_branch
          %569 = sbr.rel (%p567) target = $region56
        $region55: #{tpu_custom_call.1} parent=23 // pred_region
          %s570 = sand.u32 %s38, 1
          %s571 = scalar_lea.sflag [#allocation18], %s570
          %s572 = sand.u32 %s242, 1
          %s573 = smul.addr %s572, 128
          %s574 = scalar_lea.vmem [#allocation17], %s573
          %s576 = ssub.s32 2048, 2048
          %577 = vsyncadd %s571, %s576
          %s578 = smul.addr %s46, 32
          %s579 = smul.addr %s578, 64
          %s580 = scalar_lea.hbm %s7, %s579
          %s581 = sshll.u32 %s574, 4
          %s582 = int_to_ptr.vmem [resolvable:$true] %s581
          %587 = dma.hbm_to_vmem [thread:$0]  %s580, 2048, %s582, %s571, 128, 128, 8
        $region56: #{tpu_custom_call.1} parent=23 // pred_fallthru
          _
        // Predicated region
        $region57: #{tpu_custom_call.1} parent=23 // pred_check
          %p588 = pneg %p278
        $region58: #{tpu_custom_call.1} parent=23 // pred_check_branch
          %590 = sbr.rel (%p588) target = $region60
        $region59: #{tpu_custom_call.1} parent=23 // pred_region
          %p591 = scmp.lt.s32.totalorder %s46, 1
          %s592 = scalar_select %p591, %s46, 1
          %s593 = smul.addr %s592, 2
          %s594 = scalar_lea.vmem %s8, %s593
        $region60: #{tpu_custom_call.1} parent=23 // pred_fallthru
          _
        // Predicated region
        $region61: #{tpu_custom_call.1} parent=23 // pred_check
          %p595 = pneg %p304
        $region62: #{tpu_custom_call.1} parent=23 // pred_check_branch
          %597 = sbr.rel (%p595) target = $region64
        $region63: #{tpu_custom_call.1} parent=23 // pred_region
          %s598 = sand.u32 %s38, 1
          %s599 = scalar_lea.sflag [#allocation18], %s598
          %s600 = sand.u32 %s294, 1
          %s601 = smul.addr %s600, 32
          %s602 = scalar_lea.vmem [#allocation19], %s601
          %s604 = ssub.s32 512, 512
          %605 = vsyncadd %s599, %s604
          %s606 = smul.addr %s46, 4
          %s607 = smul.addr %s606, 128
          %s608 = scalar_lea.hbm %s9, %s607
          %s609 = sshll.u32 %s602, 4
          %s610 = int_to_ptr.vmem [resolvable:$true] %s609
          %615 = dma.hbm_to_vmem [thread:$0]  %s608, 512, %s610, %s599, 256, 256, 16
        $region64: #{tpu_custom_call.1} parent=23 // pred_fallthru
          _
        // Predicated region
        $region65: #{tpu_custom_call.1} parent=23 // pred_check
          %p616 = pneg %p330
        $region66: #{tpu_custom_call.1} parent=23 // pred_check_branch
          %618 = sbr.rel (%p616) target = $region68
        $region67: #{tpu_custom_call.1} parent=23 // pred_region
          %p619 = scmp.lt.s32.totalorder %s46, 1
          %s620 = scalar_select %p619, %s46, 1
          %s621 = smul.addr %s620, 2
          %s622 = scalar_lea.vmem %s10, %s621
        $region68: #{tpu_custom_call.1} parent=23 // pred_fallthru
          _
        // Predicated region
        $region69: #{tpu_custom_call.1} parent=23 // pred_check
          %p623 = pneg %p356
        $region70: #{tpu_custom_call.1} parent=23 // pred_check_branch
          %625 = sbr.rel (%p623) target = $region72
        $region71: #{tpu_custom_call.1} parent=23 // pred_region
          %s626 = sand.u32 %s346, 1
          %s627 = scalar_lea.sflag [#allocation21], %s626
          %s628 = sand.u32 %s346, 1
          %s629 = smul.addr %s628, 128
          %s630 = scalar_lea.vmem [#allocation20], %s629
          %s632 = ssub.s32 2048, 2048
          %633 = vsyncadd %s627, %s632
          %s634 = smul.addr %s46, 32
          %s635 = smul.addr %s634, 64
          %s636 = scalar_lea.hbm %s11, %s635
          %s637 = sshll.u32 %s630, 4
          %s638 = int_to_ptr.vmem [resolvable:$true] %s637
          %643 = dma.hbm_to_vmem [thread:$0]  %s636, 2048, %s638, %s627, 64, 64, 4
        $region72: #{tpu_custom_call.1} parent=23 // pred_fallthru
          _
      $region24: #{tpu_custom_call.1} parent=5 // pred_fallthru
        _
      %p644 = scmp.le.s32.totalorder 1, %s38
      %p645 = scmp.lt.s32.totalorder %s38, 5
      %p646 = pnand %p644, %p645
      %p647 = pneg %p646
      // Predicated region
      $region73: #{tpu_custom_call.1} parent=5 // pred_check
        _
      $region74: #{tpu_custom_call.1} parent=5 // pred_check_branch
        %649 = sbr.rel (%p646) target = $region76
      $region75: #{tpu_custom_call.1} parent=5 // pred_region
        %s650 = ssub.s32 %s38, 1
        %s651 = sand.u32 %s63, 1
        %s652 = scalar_lea.sflag [#allocation9], %s651
        %s653 = sand.u32 %s63, 1
        %s654 = smul.addr %s653, 16
        %s655 = scalar_lea.vmem [#allocation8], %s654
        // Predicated region
        $region77: #{tpu_custom_call.1} parent=75 // pred_check
          %p656 = pneg %p76
        $region78: #{tpu_custom_call.1} parent=75 // pred_check_branch
          %658 = sbr.rel (%p656) target = $region80
        $region79: #{tpu_custom_call.1} parent=75 // pred_region
          %659 = dma.done %s652, 256
        $region80: #{tpu_custom_call.1} parent=75 // pred_fallthru
          _
        %s660 = sand.u32 %s43, 1
        %s661 = scalar_lea.sflag [#allocation12], %s660
        %s662 = sand.u32 %s115, 1
        %s663 = scalar_lea.vmem [#allocation11], %s662
        // Predicated region
        $region81: #{tpu_custom_call.1} parent=75 // pred_check
          %p664 = pneg %p128
        $region82: #{tpu_custom_call.1} parent=75 // pred_check_branch
          %666 = sbr.rel (%p664) target = $region84
        $region83: #{tpu_custom_call.1} parent=75 // pred_region
          %667 = dma.done %s661, 16
        $region84: #{tpu_custom_call.1} parent=75 // pred_fallthru
          _
        %s668 = sand.u32 %s43, 1
        %s669 = scalar_lea.sflag [#allocation12], %s668
        %s670 = sand.u32 %s141, 1
        %s671 = smul.addr %s670, 256
        %s672 = scalar_lea.vmem [#allocation13], %s671
        // Predicated region
        $region85: #{tpu_custom_call.1} parent=75 // pred_check
          %p673 = pneg %p154
        $region86: #{tpu_custom_call.1} parent=75 // pred_check_branch
          %675 = sbr.rel (%p673) target = $region88
        $region87: #{tpu_custom_call.1} parent=75 // pred_region
          %676 = dma.done %s669, 4096
        $region88: #{tpu_custom_call.1} parent=75 // pred_fallthru
          _
        %s677 = sand.u32 %s43, 1
        %s678 = scalar_lea.sflag [#allocation15], %s677
        %s679 = sand.u32 %s167, 1
        %s680 = smul.addr %s679, 8
        %s681 = scalar_lea.vmem [#allocation14], %s680
        // Predicated region
        $region89: #{tpu_custom_call.1} parent=75 // pred_check
          %p682 = pneg %p180
        $region90: #{tpu_custom_call.1} parent=75 // pred_check_branch
          %684 = sbr.rel (%p682) target = $region92
        $region91: #{tpu_custom_call.1} parent=75 // pred_region
          %685 = dma.done %s678, 128
        $region92: #{tpu_custom_call.1} parent=75 // pred_fallthru
          _
        %s686 = sand.u32 %s43, 1
        %s687 = scalar_lea.sflag [#allocation15], %s686
        %s688 = sand.u32 %s219, 1
        %s689 = smul.addr %s688, 128
        %s690 = scalar_lea.vmem [#allocation16], %s689
        // Predicated region
        $region93: #{tpu_custom_call.1} parent=75 // pred_check
          %p691 = pneg %p232
        $region94: #{tpu_custom_call.1} parent=75 // pred_check_branch
          %693 = sbr.rel (%p691) target = $region96
        $region95: #{tpu_custom_call.1} parent=75 // pred_region
          %694 = dma.done %s687, 2048
        $region96: #{tpu_custom_call.1} parent=75 // pred_fallthru
          _
        %s695 = sand.u32 %s43, 1
        %s696 = scalar_lea.sflag [#allocation18], %s695
        %s697 = sand.u32 %s245, 1
        %s698 = smul.addr %s697, 128
        %s699 = scalar_lea.vmem [#allocation17], %s698
        // Predicated region
        $region97: #{tpu_custom_call.1} parent=75 // pred_check
          %p700 = pneg %p258
        $region98: #{tpu_custom_call.1} parent=75 // pred_check_branch
          %702 = sbr.rel (%p700) target = $region100
        $region99: #{tpu_custom_call.1} parent=75 // pred_region
          %703 = dma.done %s696, 2048
        $region100: #{tpu_custom_call.1} parent=75 // pred_fallthru
          _
        %s704 = sand.u32 %s43, 1
        %s705 = scalar_lea.sflag [#allocation18], %s704
        %s706 = sand.u32 %s297, 1
        %s707 = smul.addr %s706, 32
        %s708 = scalar_lea.vmem [#allocation19], %s707
        // Predicated region
        $region101: #{tpu_custom_call.1} parent=75 // pred_check
          %p709 = pneg %p310
        $region102: #{tpu_custom_call.1} parent=75 // pred_check_branch
          %711 = sbr.rel (%p709) target = $region104
        $region103: #{tpu_custom_call.1} parent=75 // pred_region
          %712 = dma.done %s705, 512
        $region104: #{tpu_custom_call.1} parent=75 // pred_fallthru
          _
        %s713 = sand.u32 %s349, 1
        %s714 = scalar_lea.sflag [#allocation21], %s713
        %s715 = sand.u32 %s349, 1
        %s716 = smul.addr %s715, 128
        %s717 = scalar_lea.vmem [#allocation20], %s716
        // Predicated region
        $region105: #{tpu_custom_call.1} parent=75 // pred_check
          %p718 = pneg %p362
        $region106: #{tpu_custom_call.1} parent=75 // pred_check_branch
          %720 = sbr.rel (%p718) target = $region108
        $region107: #{tpu_custom_call.1} parent=75 // pred_region
          %721 = dma.done %s714, 2048
        $region108: #{tpu_custom_call.1} parent=75 // pred_fallthru
          _
        %s722 = sand.u32 %s63, 1
        %s723 = scalar_lea.sflag [#allocation9], %s722
        %s724 = sand.u32 %s63, 1
        %s725 = smul.addr %s724, 16
        %s726 = scalar_lea.vmem [#allocation8], %s725
        %p727 = pneg %p76
        %p728 = pneg %p73
        %p729 = scmp.lt.s32.totalorder %s48, 1
        %s730 = scalar_select %p729, %s48, 1
        %s731 = scalar_lea.vmem %s1, %s730
        %p732 = pneg %p102
        %p733 = pneg %p99
        %s734 = sand.u32 %s43, 1
        %s735 = scalar_lea.sflag [#allocation12], %s734
        %s736 = sand.u32 %s115, 1
        %s737 = scalar_lea.vmem [#allocation11], %s736
        %p738 = pneg %p128
        %p739 = pneg %p125
        %s740 = sand.u32 %s43, 1
        %s741 = scalar_lea.sflag [#allocation12], %s740
        %s742 = sand.u32 %s141, 1
        %s743 = smul.addr %s742, 256
        %s744 = scalar_lea.vmem [#allocation13], %s743
        %p745 = pneg %p154
        %p746 = pneg %p151
        %s747 = sand.u32 %s43, 1
        %s748 = scalar_lea.sflag [#allocation15], %s747
        %s749 = sand.u32 %s167, 1
        %s750 = smul.addr %s749, 8
        %s751 = scalar_lea.vmem [#allocation14], %s750
        %p752 = pneg %p180
        %p753 = pneg %p177
        %p754 = scmp.lt.s32.totalorder %s48, 1
        %s755 = scalar_select %p754, %s48, 1
        %s756 = smul.addr %s755, 2
        %s757 = scalar_lea.vmem %s5, %s756
        %p758 = pneg %p206
        %p759 = pneg %p203
        %s760 = sand.u32 %s43, 1
        %s761 = scalar_lea.sflag [#allocation15], %s760
        %s762 = sand.u32 %s219, 1
        %s763 = smul.addr %s762, 128
        %s764 = scalar_lea.vmem [#allocation16], %s763
        %p765 = pneg %p232
        %p766 = pneg %p229
        %s767 = sand.u32 %s43, 1
        %s768 = scalar_lea.sflag [#allocation18], %s767
        %s769 = sand.u32 %s245, 1
        %s770 = smul.addr %s769, 128
        %s771 = scalar_lea.vmem [#allocation17], %s770
        %p772 = pneg %p258
        %p773 = pneg %p255
        %p774 = scmp.lt.s32.totalorder %s48, 1
        %s775 = scalar_select %p774, %s48, 1
        %s776 = smul.addr %s775, 2
        %s777 = scalar_lea.vmem %s8, %s776
        %p778 = pneg %p284
        %p779 = pneg %p281
        %s780 = sand.u32 %s43, 1
        %s781 = scalar_lea.sflag [#allocation18], %s780
        %s782 = sand.u32 %s297, 1
        %s783 = smul.addr %s782, 32
        %s784 = scalar_lea.vmem [#allocation19], %s783
        %p785 = pneg %p310
        %p786 = pneg %p307
        %p787 = scmp.lt.s32.totalorder %s48, 1
        %s788 = scalar_select %p787, %s48, 1
        %s789 = smul.addr %s788, 2
        %s790 = scalar_lea.vmem %s10, %s789
        %p791 = pneg %p336
        %p792 = pneg %p333
        %s793 = sand.u32 %s349, 1
        %s794 = scalar_lea.sflag [#allocation21], %s793
        %s795 = sand.u32 %s349, 1
        %s796 = smul.addr %s795, 128
        %s797 = scalar_lea.vmem [#allocation20], %s796
        %p798 = pneg %p362
        %p799 = pneg %p359
        %p800 = pneg %p383
        %p801 = pneg %p380
        %p802 = pneg %p404
        %p803 = pneg %p401
        %p804 = pneg %p430
        %p805 = pneg %p427
        %s806 = sand.u32 %s417, 1
        %s807 = scalar_lea.sflag [#allocation10], %s806
        %s808 = sand.u32 %s417, 1
        %s809 = smul.addr %s808, 16
        %s810 = scalar_lea.vmem [#allocation22], %s809
        %p811 = scmp.lt.s32.totalorder %s48, 1
        %s812 = scalar_select %p811, %s48, 1
        %s813 = scalar_lea.vmem %s1, %s812
        %p814 = scmp.lt.s32.totalorder %s48, 1
        %s815 = scalar_select %p814, %s48, 1
        %s816 = smul.addr %s815, 2
        %s817 = scalar_lea.vmem %s5, %s816
        %p818 = scmp.lt.s32.totalorder %s48, 1
        %s819 = scalar_select %p818, %s48, 1
        %s820 = smul.addr %s819, 2
        %s821 = scalar_lea.vmem %s8, %s820
        %p822 = scmp.lt.s32.totalorder %s48, 1
        %s823 = scalar_select %p822, %s48, 1
        %s824 = smul.addr %s823, 2
        %s825 = scalar_lea.vmem %s10, %s824
        %p827 = scmp.eq.s32.totalorder %s48, 0
        // Predicated region
        $region109: #{tpu_custom_call.1} parent=75 // pred_check
          %p828 = pneg %p827
        $region110: #{tpu_custom_call.1} parent=75 // pred_check_branch
          %830 = sbr.rel (%p828) target = $region112
        $region111: #{tpu_custom_call.1} parent=75 // pred_region
          %v831 = vld [vmem:[%s655] sm:$0xff]
          %v832 = vld [vmem:[%s655 + $0x8] sm:$0xff]
          %833 = vst [vmem:[#allocation2] sm:$0xff] %v831
          %834 = vst [vmem:[#allocation2 + $0x8] sm:$0xff] %v832
        $region112: #{tpu_custom_call.1} parent=75 // pred_fallthru
          _
        %p835 = scmp.gt.s32.totalorder %s48, 0
        // Predicated region
        $region113: #{tpu_custom_call.1} parent=75 // pred_check
          %p836 = pneg %p835
        $region114: #{tpu_custom_call.1} parent=75 // pred_check_branch
          %838 = sbr.rel (%p836) target = $region116
        $region115: #{tpu_custom_call.1} parent=75 // pred_region
          %v839 = vld [vmem:[#allocation3] sm:$0xff]
          %v840 = vld [vmem:[#allocation3 + $0x8] sm:$0xff]
          %v841 = vld [vmem:[#allocation2] sm:$0xff]
          %v842 = vld [vmem:[#allocation2 + $0x8] sm:$0xff]
          %v843 = vadd.f32 %v839, %v841
          %v844 = vadd.f32 %v840, %v842
          %845 = vst [vmem:[#allocation2] sm:$0xff] %v843
          %846 = vst [vmem:[#allocation2 + $0x8] sm:$0xff] %v844
        $region116: #{tpu_custom_call.1} parent=75 // pred_fallthru
          _
        %v847 = vld [vmem:[#allocation2] sm:$0xff]
        %v848 = vld [vmem:[#allocation2 + $0x8] sm:$0xff]
        %849 = vadd.xlane.f32.xlu0 %v847
        %v850 = vpop.xlane.xlu0 %849
        %851 = vadd.xlane.f32.xlu0 %v848
        %v852 = vpop.xlane.xlu0 %851
        %v853 = vrcp.pop 128.0
        %v854 = vmul.f32 %v850, %v853
        %v855 = vmul.f32 %v852, %v853
        %v856 = vsub.f32 %v847, %v854
        %v857 = vsub.f32 %v848, %v855
        %v858 = vmul.f32 %v856, %v856
        %v859 = vmul.f32 %v857, %v857
        %860 = vadd.xlane.f32.xlu0 %v858
        %v861 = vpop.xlane.xlu0 %860
        %862 = vadd.xlane.f32.xlu0 %v859
        %v863 = vpop.xlane.xlu0 %862
        %v864 = vmul.f32 %v861, %v853
        %v865 = vmul.f32 %v863, %v853
        %v866 = vadd.f32 %v864, 1e-05
        %v867 = vadd.f32 %v865, 1e-05
        %v868 = vrsqrt.pop %v866
        %v869 = vrsqrt.pop %v867
        %v870 = vmul.f32 %v856, %v868
        %v871 = vmul.f32 %v857, %v869
        %v872 = vld [vmem:[%s813] sm:$0x1]
        %v874 = vlaneseq
        %v875 = vshrl.u32 %v874, 7
        %v876 = vsub.s32 0, %v875
        %v877 = vrot.slane %v872, %v876
        %v879 = vmul.f32 %v870, %v877
        %v880 = vmul.f32 %v871, %v877
        %v881 = vld [vmem:[%s663] sm:$0x1]
        %v883 = vlaneseq
        %v884 = vshrl.u32 %v883, 7
        %v885 = vsub.s32 0, %v884
        %v886 = vrot.slane %v881, %v885
        %v888 = vadd.f32 %v879, %v886
        %v889 = vadd.f32 %v880, %v886
        %v890 = vpack.c.bf16 %v889, %v888
        %v891 = vld [vmem:[%s672] sm:$0xff]
        %v892 = vld [vmem:[%s672 + $0x8] sm:$0xff]
        %v893 = vld [vmem:[%s672 + $0x10] sm:$0xff]
        %v894 = vld [vmem:[%s672 + $0x18] sm:$0xff]
        %v895 = vld [vmem:[%s672 + $0x20] sm:$0xff]
        %v896 = vld [vmem:[%s672 + $0x28] sm:$0xff]
        %v897 = vld [vmem:[%s672 + $0x30] sm:$0xff]
        %v898 = vld [vmem:[%s672 + $0x38] sm:$0xff]
        %v899 = vld [vmem:[%s672 + $0x40] sm:$0xff]
        %v900 = vld [vmem:[%s672 + $0x48] sm:$0xff]
        %v901 = vld [vmem:[%s672 + $0x50] sm:$0xff]
        %v902 = vld [vmem:[%s672 + $0x58] sm:$0xff]
        %v903 = vld [vmem:[%s672 + $0x60] sm:$0xff]
        %v904 = vld [vmem:[%s672 + $0x68] sm:$0xff]
        %v905 = vld [vmem:[%s672 + $0x70] sm:$0xff]
        %v906 = vld [vmem:[%s672 + $0x78] sm:$0xff]
        %v907 = vld [vmem:[%s672 + $0x80] sm:$0xff]
        %v908 = vld [vmem:[%s672 + $0x88] sm:$0xff]
        %v909 = vld [vmem:[%s672 + $0x90] sm:$0xff]
        %v910 = vld [vmem:[%s672 + $0x98] sm:$0xff]
        %v911 = vld [vmem:[%s672 + $0xa0] sm:$0xff]
        %v912 = vld [vmem:[%s672 + $0xa8] sm:$0xff]
        %v913 = vld [vmem:[%s672 + $0xb0] sm:$0xff]
        %v914 = vld [vmem:[%s672 + $0xb8] sm:$0xff]
        %v915 = vld [vmem:[%s672 + $0xc0] sm:$0xff]
        %v916 = vld [vmem:[%s672 + $0xc8] sm:$0xff]
        %v917 = vld [vmem:[%s672 + $0xd0] sm:$0xff]
        %v918 = vld [vmem:[%s672 + $0xd8] sm:$0xff]
        %v919 = vld [vmem:[%s672 + $0xe0] sm:$0xff]
        %v920 = vld [vmem:[%s672 + $0xe8] sm:$0xff]
        %v921 = vld [vmem:[%s672 + $0xf0] sm:$0xff]
        %v922 = vld [vmem:[%s672 + $0xf8] sm:$0xff]
        %v955 = vunpack.c.l.b16 %v891
        %v956 = vunpack.c.h.b16 %v891
        %v957 = vunpack.c.l.b16 %v892
        %v958 = vunpack.c.h.b16 %v892
        %v959 = vunpack.c.l.b16 %v893
        %v960 = vunpack.c.h.b16 %v893
        %v961 = vunpack.c.l.b16 %v894
        %v962 = vunpack.c.h.b16 %v894
        %v963 = vunpack.c.l.b16 %v895
        %v964 = vunpack.c.h.b16 %v895
        %v965 = vunpack.c.l.b16 %v896
        %v966 = vunpack.c.h.b16 %v896
        %v967 = vunpack.c.l.b16 %v897
        %v968 = vunpack.c.h.b16 %v897
        %v969 = vunpack.c.l.b16 %v898
        %v970 = vunpack.c.h.b16 %v898
        %v971 = vunpack.c.l.b16 %v899
        %v972 = vunpack.c.h.b16 %v899
        %v973 = vunpack.c.l.b16 %v900
        %v974 = vunpack.c.h.b16 %v900
        %v975 = vunpack.c.l.b16 %v901
        %v976 = vunpack.c.h.b16 %v901
        %v977 = vunpack.c.l.b16 %v902
        %v978 = vunpack.c.h.b16 %v902
        %v979 = vunpack.c.l.b16 %v903
        %v980 = vunpack.c.h.b16 %v903
        %v981 = vunpack.c.l.b16 %v904
        %v982 = vunpack.c.h.b16 %v904
        %v983 = vunpack.c.l.b16 %v905
        %v984 = vunpack.c.h.b16 %v905
        %v985 = vunpack.c.l.b16 %v906
        %v986 = vunpack.c.h.b16 %v906
        %v987 = vunpack.c.l.b16 %v907
        %v988 = vunpack.c.h.b16 %v907
        %v989 = vunpack.c.l.b16 %v908
        %v990 = vunpack.c.h.b16 %v908
        %v991 = vunpack.c.l.b16 %v909
        %v992 = vunpack.c.h.b16 %v909
        %v993 = vunpack.c.l.b16 %v910
        %v994 = vunpack.c.h.b16 %v910
        %v995 = vunpack.c.l.b16 %v911
        %v996 = vunpack.c.h.b16 %v911
        %v997 = vunpack.c.l.b16 %v912
        %v998 = vunpack.c.h.b16 %v912
        %v999 = vunpack.c.l.b16 %v913
        %v1000 = vunpack.c.h.b16 %v913
        %v1001 = vunpack.c.l.b16 %v914
        %v1002 = vunpack.c.h.b16 %v914
        %v1003 = vunpack.c.l.b16 %v915
        %v1004 = vunpack.c.h.b16 %v915
        %v1005 = vunpack.c.l.b16 %v916
        %v1006 = vunpack.c.h.b16 %v916
        %v1007 = vunpack.c.l.b16 %v917
        %v1008 = vunpack.c.h.b16 %v917
        %v1009 = vunpack.c.l.b16 %v918
        %v1010 = vunpack.c.h.b16 %v918
        %v1011 = vunpack.c.l.b16 %v919
        %v1012 = vunpack.c.h.b16 %v919
        %v1013 = vunpack.c.l.b16 %v920
        %v1014 = vunpack.c.h.b16 %v920
        %v1015 = vunpack.c.l.b16 %v921
        %v1016 = vunpack.c.h.b16 %v921
        %v1017 = vunpack.c.l.b16 %v922
        %v1018 = vunpack.c.h.b16 %v922
        %v1019 = vpack.c.b16 %v959, %v955
        %v1020 = vpack.c.b16 %v960, %v956
        %v1021 = vpack.c.b16 %v961, %v957
        %v1022 = vpack.c.b16 %v962, %v958
        %v1023 = vpack.c.b16 %v967, %v963
        %v1024 = vpack.c.b16 %v968, %v964
        %v1025 = vpack.c.b16 %v969, %v965
        %v1026 = vpack.c.b16 %v970, %v966
        %v1027 = vpack.c.b16 %v975, %v971
        %v1028 = vpack.c.b16 %v976, %v972
        %v1029 = vpack.c.b16 %v977, %v973
        %v1030 = vpack.c.b16 %v978, %v974
        %v1031 = vpack.c.b16 %v983, %v979
        %v1032 = vpack.c.b16 %v984, %v980
        %v1033 = vpack.c.b16 %v985, %v981
        %v1034 = vpack.c.b16 %v986, %v982
        %v1035 = vpack.c.b16 %v991, %v987
        %v1036 = vpack.c.b16 %v992, %v988
        %v1037 = vpack.c.b16 %v993, %v989
        %v1038 = vpack.c.b16 %v994, %v990
        %v1039 = vpack.c.b16 %v999, %v995
        %v1040 = vpack.c.b16 %v1000, %v996
        %v1041 = vpack.c.b16 %v1001, %v997
        %v1042 = vpack.c.b16 %v1002, %v998
        %v1043 = vpack.c.b16 %v1007, %v1003
        %v1044 = vpack.c.b16 %v1008, %v1004
        %v1045 = vpack.c.b16 %v1009, %v1005
        %v1046 = vpack.c.b16 %v1010, %v1006
        %v1047 = vpack.c.b16 %v1015, %v1011
        %v1048 = vpack.c.b16 %v1016, %v1012
        %v1049 = vpack.c.b16 %v1017, %v1013
        %v1050 = vpack.c.b16 %v1018, %v1014
        %1083 = vmatprep.subr.bf16.mxu0 %v1020
        %1084 = vmatpush1.bf16.msra.mxu0 %v1019
        %1085 = vmatprep.subr.bf16.mxu0 %v1024
        %1086 = vmatpush1.bf16.msra.mxu0 %v1023
        %1087 = vmatprep.subr.bf16.mxu0 %v1028
        %1088 = vmatpush1.bf16.msra.mxu0 %v1027
        %1089 = vmatprep.subr.bf16.mxu0 %v1032
        %1090 = vmatpush1.bf16.msra.mxu0 %v1031
        %1091 = vmatprep.subr.bf16.mxu0 %v1036
        %1092 = vmatpush1.bf16.msra.mxu0 %v1035
        %1093 = vmatprep.subr.bf16.mxu0 %v1040
        %1094 = vmatpush1.bf16.msra.mxu0 %v1039
        %1095 = vmatprep.subr.bf16.mxu0 %v1044
        %1096 = vmatpush1.bf16.msra.mxu0 %v1043
        %1097 = vmatprep.subr.bf16.mxu0 %v1048
        %1098 = vmatpush1.bf16.msra.mxu0 %v1047
        %1099 = vmatprep.subr.bf16.mxu0 0
        %1100 = vmatpush1.bf16.msra.mxu0 0
        %1101 = vmatprep.subr.bf16.mxu0 0
        %1102 = vmatpush1.bf16.msra.mxu0 0
        %1103 = vmatprep.subr.bf16.mxu0 0
        %1104 = vmatpush1.bf16.msra.mxu0 0
        %1105 = vmatprep.subr.bf16.mxu0 0
        %1106 = vmatpush1.bf16.msra.mxu0 0
        %1107 = vmatprep.subr.bf16.mxu0 0
        %1108 = vmatpush1.bf16.msra.mxu0 0
        %1109 = vmatprep.subr.bf16.mxu0 0
        %1110 = vmatpush1.bf16.msra.mxu0 0
        %1111 = vmatprep.subr.bf16.mxu0 0
        %1112 = vmatpush1.bf16.msra.mxu0 0
        %1113 = vmatprep.subr.bf16.mxu0 0
        %1114 = vmatpush1.bf16.msra.mxu0 0
        %1115 = vmatprep.mubr.bf16.mxu0 0
        %1116 = vmatmul.mubr.bf16.gmra.mrb[0].mxu0 %v890
        %v1117 = vpop.f32.mrb[0].mxu0
        %v1118 = vadd.f32 0.0, %v1117
        %v1119 = vpop.f32.mrb[0].mxu0
        %v1120 = vadd.f32 0.0, %v1119
        %v1121 = vpop.f32.mrb[0].mxu0
        %v1122 = vadd.f32 0.0, %v1121
        %v1123 = vpop.f32.mrb[0].mxu0
        %v1124 = vadd.f32 0.0, %v1123
        %1125 = vdwg.mxu0
        %1126 = vmatprep.subr.bf16.mxu0 %v1022
        %1127 = vmatpush1.bf16.msra.mxu0 %v1021
        %1128 = vmatprep.subr.bf16.mxu0 %v1026
        %1129 = vmatpush1.bf16.msra.mxu0 %v1025
        %1130 = vmatprep.subr.bf16.mxu0 %v1030
        %1131 = vmatpush1.bf16.msra.mxu0 %v1029
        %1132 = vmatprep.subr.bf16.mxu0 %v1034
        %1133 = vmatpush1.bf16.msra.mxu0 %v1033
        %1134 = vmatprep.subr.bf16.mxu0 %v1038
        %1135 = vmatpush1.bf16.msra.mxu0 %v1037
        %1136 = vmatprep.subr.bf16.mxu0 %v1042
        %1137 = vmatpush1.bf16.msra.mxu0 %v1041
        %1138 = vmatprep.subr.bf16.mxu0 %v1046
        %1139 = vmatpush1.bf16.msra.mxu0 %v1045
        %1140 = vmatprep.subr.bf16.mxu0 %v1050
        %1141 = vmatpush1.bf16.msra.mxu0 %v1049
        %1142 = vmatprep.subr.bf16.mxu0 0
        %1143 = vmatpush1.bf16.msra.mxu0 0
        %1144 = vmatprep.subr.bf16.mxu0 0
        %1145 = vmatpush1.bf16.msra.mxu0 0
        %1146 = vmatprep.subr.bf16.mxu0 0
        %1147 = vmatpush1.bf16.msra.mxu0 0
        %1148 = vmatprep.subr.bf16.mxu0 0
        %1149 = vmatpush1.bf16.msra.mxu0 0
        %1150 = vmatprep.subr.bf16.mxu0 0
        %1151 = vmatpush1.bf16.msra.mxu0 0
        %1152 = vmatprep.subr.bf16.mxu0 0
        %1153 = vmatpush1.bf16.msra.mxu0 0
        %1154 = vmatprep.subr.bf16.mxu0 0
        %1155 = vmatpush1.bf16.msra.mxu0 0
        %1156 = vmatprep.subr.bf16.mxu0 0
        %1157 = vmatpush1.bf16.msra.mxu0 0
        %1158 = vmatprep.mubr.bf16.mxu0 0
        %1159 = vmatmul.mubr.bf16.gmra.mrb[0].mxu0 %v890
        %v1160 = vpop.f32.mrb[0].mxu0
        %v1161 = vadd.f32 0.0, %v1160
        %v1162 = vpop.f32.mrb[0].mxu0
        %v1163 = vadd.f32 0.0, %v1162
        %v1164 = vpop.f32.mrb[0].mxu0
        %v1165 = vadd.f32 0.0, %v1164
        %v1166 = vpop.f32.mrb[0].mxu0
        %v1167 = vadd.f32 0.0, %v1166
        %1168 = vdwg.mxu0
        %v1169 = vld [vmem:[%s681] sm:$0xff]
        %vm1174 = vcmask 1042432
        %v1175 = vrot.slane %v1118, 5
        %v1176 = vrot.slane %v1120, 5
        %v1177 = vrot.slane %v1122, 5
        %v1178 = vsel %vm1174, %v1175, %v1177
        %v1179 = vrot.slane %v1124, 5
        %v1180 = vsel %vm1174, %v1176, %v1179
        %v1187 = vsel %vm1174, 0.0, %v1175
        %v1188 = vsel %vm1174, 0.0, %v1176
        %v1189 = vld [vmem:[%s817] sm:$0x3]
        %v1191 = vlaneseq
        %v1192 = vshrl.u32 %v1191, 7
        %v1193 = vsub.s32 0, %v1192
        %v1194 = vrot.slane %v1169, %v1193
        %v1195 = vlaneseq
        %v1196 = vshrl.u32 %v1195, 7
        %v1197 = vsub.s32 4, %v1196
        %v1198 = vrot.slane %v1169, %v1197
        %v1201 = vlaneseq
        %v1202 = vshrl.u32 %v1201, 7
        %v1203 = vsub.s32 0, %v1202
        %v1204 = vrot.slane %v1194, %v1203
        %v1205 = vlaneseq
        %v1206 = vshrl.u32 %v1205, 7
        %v1207 = vsub.s32 0, %v1206
        %v1208 = vrot.slane %v1198, %v1207
        %v1209 = vmul.f32 %v1204, %v1187
        %v1210 = vmul.f32 %v1208, %v1188
        %v1211 = vmul.f32 %v1204, %v1178
        %v1212 = vmul.f32 %v1208, %v1180
        %v1214 = vlaneseq
        %v1215 = vshrl.u32 %v1214, 7
        %v1216 = vsub.s32 0, %v1215
        %v1217 = vrot.slane %v1189, %v1216
        %v1218 = vlaneseq
        %v1219 = vshrl.u32 %v1218, 7
        %v1220 = vsub.s32 1, %v1219
        %v1221 = vrot.slane %v1189, %v1220
        %v1224 = vadd.f32 %v1217, %v1209
        %v1225 = vadd.f32 %v1221, %v1210
        %v1226 = vadd.f32 %v1217, %v1211
        %v1227 = vadd.f32 %v1221, %v1212
        %v1228 = vlaneseq
        %v1229 = vshrl.u32 %v1228, 7
        %v1230 = vsub.s32 1, %v1229
        %v1231 = vrot.slane %v1169, %v1230
        %v1232 = vlaneseq
        %v1233 = vshrl.u32 %v1232, 7
        %v1234 = vsub.s32 5, %v1233
        %v1235 = vrot.slane %v1169, %v1234
        %v1238 = vlaneseq
        %v1239 = vshrl.u32 %v1238, 7
        %v1240 = vsub.s32 1, %v1239
        %v1241 = vrot.slane %v1231, %v1240
        %v1242 = vlaneseq
        %v1243 = vshrl.u32 %v1242, 7
        %v1244 = vsub.s32 1, %v1243
        %v1245 = vrot.slane %v1235, %v1244
        %v1246 = vmul.f32 %v1241, %v1187
        %v1247 = vmul.f32 %v1245, %v1188
        %v1248 = vmul.f32 %v1241, %v1178
        %v1249 = vmul.f32 %v1245, %v1180
        %v1250 = vmul.f32 %v1241, %v1177
        %v1251 = vmul.f32 %v1245, %v1179
        %vm1258 = vcmask 1046528
        %v1259 = vrot.slane %v1246, 1
        %v1260 = vrot.slane %v1248, 1
        %v1261 = vsel %vm1258, %v1259, %v1260
        %v1262 = vrot.slane %v1247, 1
        %v1263 = vrot.slane %v1249, 1
        %v1264 = vsel %vm1258, %v1262, %v1263
        %v1265 = vrot.slane %v1250, 1
        %v1266 = vsel %vm1258, %v1260, %v1265
        %v1267 = vrot.slane %v1251, 1
        %v1268 = vsel %vm1258, %v1263, %v1267
        %v1273 = vadd.f32 %v1224, %v1261
        %v1274 = vadd.f32 %v1225, %v1264
        %v1275 = vadd.f32 %v1226, %v1266
        %v1276 = vadd.f32 %v1227, %v1268
        %v1277 = vlaneseq
        %v1278 = vshrl.u32 %v1277, 7
        %v1279 = vsub.s32 2, %v1278
        %v1280 = vrot.slane %v1169, %v1279
        %v1281 = vlaneseq
        %v1282 = vshrl.u32 %v1281, 7
        %v1283 = vsub.s32 6, %v1282
        %v1284 = vrot.slane %v1169, %v1283
        %v1287 = vlaneseq
        %v1288 = vshrl.u32 %v1287, 7
        %v1289 = vsub.s32 2, %v1288
        %v1290 = vrot.slane %v1280, %v1289
        %v1291 = vlaneseq
        %v1292 = vshrl.u32 %v1291, 7
        %v1293 = vsub.s32 2, %v1292
        %v1294 = vrot.slane %v1284, %v1293
        %v1295 = vmul.f32 %v1290, %v1187
        %v1296 = vmul.f32 %v1294, %v1188
        %v1297 = vmul.f32 %v1290, %v1178
        %v1298 = vmul.f32 %v1294, %v1180
        %v1299 = vmul.f32 %v1290, %v1177
        %v1300 = vmul.f32 %v1294, %v1179
        %vm1307 = vcmask 1045504
        %v1308 = vrot.slane %v1295, 2
        %v1309 = vrot.slane %v1297, 2
        %v1310 = vsel %vm1307, %v1308, %v1309
        %v1311 = vrot.slane %v1296, 2
        %v1312 = vrot.slane %v1298, 2
        %v1313 = vsel %vm1307, %v1311, %v1312
        %v1314 = vrot.slane %v1299, 2
        %v1315 = vsel %vm1307, %v1309, %v1314
        %v1316 = vrot.slane %v1300, 2
        %v1317 = vsel %vm1307, %v1312, %v1316
        %v1322 = vadd.f32 %v1273, %v1310
        %v1323 = vadd.f32 %v1274, %v1313
        %v1324 = vadd.f32 %v1275, %v1315
        %v1325 = vadd.f32 %v1276, %v1317
        %v1326 = vlaneseq
        %v1327 = vshrl.u32 %v1326, 7
        %v1328 = vsub.s32 3, %v1327
        %v1329 = vrot.slane %v1169, %v1328
        %v1330 = vlaneseq
        %v1331 = vshrl.u32 %v1330, 7
        %v1332 = vsub.s32 7, %v1331
        %v1333 = vrot.slane %v1169, %v1332
        %v1336 = vlaneseq
        %v1337 = vshrl.u32 %v1336, 7
        %v1338 = vsub.s32 3, %v1337
        %v1339 = vrot.slane %v1329, %v1338
        %v1340 = vlaneseq
        %v1341 = vshrl.u32 %v1340, 7
        %v1342 = vsub.s32 3, %v1341
        %v1343 = vrot.slane %v1333, %v1342
        %v1344 = vmul.f32 %v1339, %v1187
        %v1345 = vmul.f32 %v1343, %v1188
        %v1346 = vmul.f32 %v1339, %v1178
        %v1347 = vmul.f32 %v1343, %v1180
        %v1348 = vmul.f32 %v1339, %v1177
        %v1349 = vmul.f32 %v1343, %v1179
        %vm1356 = vcmask 1044480
        %v1357 = vrot.slane %v1344, 3
        %v1358 = vrot.slane %v1346, 3
        %v1359 = vsel %vm1356, %v1357, %v1358
        %v1360 = vrot.slane %v1345, 3
        %v1361 = vrot.slane %v1347, 3
        %v1362 = vsel %vm1356, %v1360, %v1361
        %v1363 = vrot.slane %v1348, 3
        %v1364 = vsel %vm1356, %v1358, %v1363
        %v1365 = vrot.slane %v1349, 3
        %v1366 = vsel %vm1356, %v1361, %v1365
        %v1371 = vadd.f32 %v1322, %v1359
        %v1372 = vadd.f32 %v1323, %v1362
        %v1373 = vadd.f32 %v1324, %v1364
        %v1374 = vadd.f32 %v1325, %v1366
        %v1375 = vsub.f32 0.0, %v1371
        %v1376 = vsub.f32 0.0, %v1372
        %v1377 = vsub.f32 0.0, %v1373
        %v1378 = vsub.f32 0.0, %v1374
        %v1379 = vmul.f32 %v1375, 1.442695
        %v1380 = vpow.pop %v1379
        %v1381 = vmul.f32 %v1376, 1.442695
        %v1382 = vpow.pop %v1381
        %v1383 = vmul.f32 %v1377, 1.442695
        %v1384 = vpow.pop %v1383
        %v1385 = vmul.f32 %v1378, 1.442695
        %v1386 = vpow.pop %v1385
        %v1387 = vadd.f32 %v1380, 1.0
        %v1388 = vadd.f32 %v1382, 1.0
        %v1389 = vadd.f32 %v1384, 1.0
        %v1390 = vadd.f32 %v1386, 1.0
        %v1391 = vrcp.pop %v1387
        %v1392 = vmul.f32 1.0, %v1391
        %v1393 = vrcp.pop %v1388
        %v1394 = vmul.f32 1.0, %v1393
        %v1395 = vrcp.pop %v1389
        %v1396 = vmul.f32 1.0, %v1395
        %v1397 = vrcp.pop %v1390
        %v1398 = vmul.f32 1.0, %v1397
        %v1399 = vmul.f32 %v1371, %v1392
        %v1400 = vmul.f32 %v1372, %v1394
        %v1401 = vmul.f32 %v1373, %v1396
        %v1402 = vmul.f32 %v1374, %v1398
        %v1403 = vpack.c.bf16 %v1401, %v1399
        %v1404 = vpack.c.bf16 %v1402, %v1400
        %v1405 = vld [vmem:[%s690] sm:$0xf]
        %v1406 = vld [vmem:[%s690 + $0x4] sm:$0xf]
        %v1407 = vld [vmem:[%s690 + $0x8] sm:$0xf]
        %v1408 = vld [vmem:[%s690 + $0xc] sm:$0xf]
        %v1409 = vld [vmem:[%s690 + $0x10] sm:$0xf]
        %v1410 = vld [vmem:[%s690 + $0x14] sm:$0xf]
        %v1411 = vld [vmem:[%s690 + $0x18] sm:$0xf]
        %v1412 = vld [vmem:[%s690 + $0x1c] sm:$0xf]
        %v1413 = vld [vmem:[%s690 + $0x20] sm:$0xf]
        %v1414 = vld [vmem:[%s690 + $0x24] sm:$0xf]
        %v1415 = vld [vmem:[%s690 + $0x28] sm:$0xf]
        %v1416 = vld [vmem:[%s690 + $0x2c] sm:$0xf]
        %v1417 = vld [vmem:[%s690 + $0x30] sm:$0xf]
        %v1418 = vld [vmem:[%s690 + $0x34] sm:$0xf]
        %v1419 = vld [vmem:[%s690 + $0x38] sm:$0xf]
        %v1420 = vld [vmem:[%s690 + $0x3c] sm:$0xf]
        %v1421 = vld [vmem:[%s690 + $0x40] sm:$0xf]
        %v1422 = vld [vmem:[%s690 + $0x44] sm:$0xf]
        %v1423 = vld [vmem:[%s690 + $0x48] sm:$0xf]
        %v1424 = vld [vmem:[%s690 + $0x4c] sm:$0xf]
        %v1425 = vld [vmem:[%s690 + $0x50] sm:$0xf]
        %v1426 = vld [vmem:[%s690 + $0x54] sm:$0xf]
        %v1427 = vld [vmem:[%s690 + $0x58] sm:$0xf]
        %v1428 = vld [vmem:[%s690 + $0x5c] sm:$0xf]
        %v1429 = vld [vmem:[%s690 + $0x60] sm:$0xf]
        %v1430 = vld [vmem:[%s690 + $0x64] sm:$0xf]
        %v1431 = vld [vmem:[%s690 + $0x68] sm:$0xf]
        %v1432 = vld [vmem:[%s690 + $0x6c] sm:$0xf]
        %v1433 = vld [vmem:[%s690 + $0x70] sm:$0xf]
        %v1434 = vld [vmem:[%s690 + $0x74] sm:$0xf]
        %v1435 = vld [vmem:[%s690 + $0x78] sm:$0xf]
        %v1436 = vld [vmem:[%s690 + $0x7c] sm:$0xf]
        %v1469 = vunpack.c.l.b16 %v1405
        %v1470 = vunpack.c.l.b16 %v1406
        %v1471 = vunpack.c.l.b16 %v1407
        %v1472 = vunpack.c.l.b16 %v1408
        %v1473 = vunpack.c.l.b16 %v1409
        %v1474 = vunpack.c.l.b16 %v1410
        %v1475 = vunpack.c.l.b16 %v1411
        %v1476 = vunpack.c.l.b16 %v1412
        %v1477 = vunpack.c.l.b16 %v1413
        %v1478 = vunpack.c.l.b16 %v1414
        %v1479 = vunpack.c.l.b16 %v1415
        %v1480 = vunpack.c.l.b16 %v1416
        %v1481 = vunpack.c.l.b16 %v1417
        %v1482 = vunpack.c.l.b16 %v1418
        %v1483 = vunpack.c.l.b16 %v1419
        %v1484 = vunpack.c.l.b16 %v1420
        %v1485 = vunpack.c.l.b16 %v1421
        %v1486 = vunpack.c.l.b16 %v1422
        %v1487 = vunpack.c.l.b16 %v1423
        %v1488 = vunpack.c.l.b16 %v1424
        %v1489 = vunpack.c.l.b16 %v1425
        %v1490 = vunpack.c.l.b16 %v1426
        %v1491 = vunpack.c.l.b16 %v1427
        %v1492 = vunpack.c.l.b16 %v1428
        %v1493 = vunpack.c.l.b16 %v1429
        %v1494 = vunpack.c.l.b16 %v1430
        %v1495 = vunpack.c.l.b16 %v1431
        %v1496 = vunpack.c.l.b16 %v1432
        %v1497 = vunpack.c.l.b16 %v1433
        %v1498 = vunpack.c.l.b16 %v1434
        %v1499 = vunpack.c.l.b16 %v1435
        %v1500 = vunpack.c.l.b16 %v1436
        %v1501 = vpack.c.b16 %v1470, %v1469
        %v1502 = vpack.c.b16 %v1472, %v1471
        %v1503 = vpack.c.b16 %v1474, %v1473
        %v1504 = vpack.c.b16 %v1476, %v1475
        %v1505 = vpack.c.b16 %v1478, %v1477
        %v1506 = vpack.c.b16 %v1480, %v1479
        %v1507 = vpack.c.b16 %v1482, %v1481
        %v1508 = vpack.c.b16 %v1484, %v1483
        %v1509 = vpack.c.b16 %v1486, %v1485
        %v1510 = vpack.c.b16 %v1488, %v1487
        %v1511 = vpack.c.b16 %v1490, %v1489
        %v1512 = vpack.c.b16 %v1492, %v1491
        %v1513 = vpack.c.b16 %v1494, %v1493
        %v1514 = vpack.c.b16 %v1496, %v1495
        %v1515 = vpack.c.b16 %v1498, %v1497
        %v1516 = vpack.c.b16 %v1500, %v1499
        %1533 = vmatprep.subr.bf16.mxu0 0
        %1534 = vmatpush1.bf16.msra.mxu0 %v1501
        %1535 = vmatprep.subr.bf16.mxu0 0
        %1536 = vmatpush1.bf16.msra.mxu0 %v1502
        %1537 = vmatprep.subr.bf16.mxu0 0
        %1538 = vmatpush1.bf16.msra.mxu0 %v1503
        %1539 = vmatprep.subr.bf16.mxu0 0
        %1540 = vmatpush1.bf16.msra.mxu0 %v1504
        %1541 = vmatprep.subr.bf16.mxu0 0
        %1542 = vmatpush1.bf16.msra.mxu0 %v1505
        %1543 = vmatprep.subr.bf16.mxu0 0
        %1544 = vmatpush1.bf16.msra.mxu0 %v1506
        %1545 = vmatprep.subr.bf16.mxu0 0
        %1546 = vmatpush1.bf16.msra.mxu0 %v1507
        %1547 = vmatprep.subr.bf16.mxu0 0
        %1548 = vmatpush1.bf16.msra.mxu0 %v1508
        %1549 = vmatprep.subr.bf16.mxu0 0
        %1550 = vmatpush1.bf16.msra.mxu0 %v1509
        %1551 = vmatprep.subr.bf16.mxu0 0
        %1552 = vmatpush1.bf16.msra.mxu0 %v1510
        %1553 = vmatprep.subr.bf16.mxu0 0
        %1554 = vmatpush1.bf16.msra.mxu0 %v1511
        %1555 = vmatprep.subr.bf16.mxu0 0
        %1556 = vmatpush1.bf16.msra.mxu0 %v1512
        %1557 = vmatprep.subr.bf16.mxu0 0
        %1558 = vmatpush1.bf16.msra.mxu0 %v1513
        %1559 = vmatprep.subr.bf16.mxu0 0
        %1560 = vmatpush1.bf16.msra.mxu0 %v1514
        %1561 = vmatprep.subr.bf16.mxu0 0
        %1562 = vmatpush1.bf16.msra.mxu0 %v1515
        %1563 = vmatprep.subr.bf16.mxu0 0
        %1564 = vmatpush1.bf16.msra.mxu0 %v1516
        %1565 = vmatprep.mubr.bf16.mxu0 %v1404
        %1566 = vmatmul.mubr.bf16.gmra.mrb[0].mxu0 %v1403
        %v1567 = vpop.f32.mrb[0].mxu0
        %v1568 = vadd.f32 0.0, %v1567
        %v1569 = vpop.f32.mrb[0].mxu0
        %v1570 = vpop.f32.mrb[0].mxu0
        %v1571 = vadd.f32 0.0, %v1570
        %v1572 = vpop.f32.mrb[0].mxu0
        %1573 = vdwg.mxu0
        %1574 = vst [vmem:[#allocation6] sm:$0xff] %v1568
        %1575 = vst [vmem:[#allocation6 + $0x8] sm:$0xff] %v1571
        %v1576 = vpack.c.bf16 %v1571, %v1568
        %v1577 = vld [vmem:[%s699] sm:$0xff]
        %v1578 = vld [vmem:[%s699 + $0x8] sm:$0xff]
        %v1579 = vld [vmem:[%s699 + $0x10] sm:$0xff]
        %v1580 = vld [vmem:[%s699 + $0x18] sm:$0xff]
        %v1581 = vld [vmem:[%s699 + $0x20] sm:$0xff]
        %v1582 = vld [vmem:[%s699 + $0x28] sm:$0xff]
        %v1583 = vld [vmem:[%s699 + $0x30] sm:$0xff]
        %v1584 = vld [vmem:[%s699 + $0x38] sm:$0xff]
        %v1585 = vld [vmem:[%s699 + $0x40] sm:$0xff]
        %v1586 = vld [vmem:[%s699 + $0x48] sm:$0xff]
        %v1587 = vld [vmem:[%s699 + $0x50] sm:$0xff]
        %v1588 = vld [vmem:[%s699 + $0x58] sm:$0xff]
        %v1589 = vld [vmem:[%s699 + $0x60] sm:$0xff]
        %v1590 = vld [vmem:[%s699 + $0x68] sm:$0xff]
        %v1591 = vld [vmem:[%s699 + $0x70] sm:$0xff]
        %v1592 = vld [vmem:[%s699 + $0x78] sm:$0xff]
        %v1593 = vld [vmem:[%s821] sm:$0x3]
        %v1595 = vlaneseq
        %v1596 = vshrl.u32 %v1595, 7
        %v1597 = vsub.s32 0, %v1596
        %v1598 = vrot.slane %v1593, %v1597
        %v1599 = vlaneseq
        %v1600 = vshrl.u32 %v1599, 7
        %v1601 = vsub.s32 1, %v1600
        %v1602 = vrot.slane %v1593, %v1601
        %v1621 = vunpack.c.l.b16 %v1577
        %v1622 = vunpack.c.h.b16 %v1577
        %v1623 = vunpack.c.l.b16 %v1578
        %v1624 = vunpack.c.h.b16 %v1578
        %v1625 = vunpack.c.l.b16 %v1579
        %v1626 = vunpack.c.h.b16 %v1579
        %v1627 = vunpack.c.l.b16 %v1580
        %v1628 = vunpack.c.h.b16 %v1580
        %v1629 = vunpack.c.l.b16 %v1581
        %v1630 = vunpack.c.h.b16 %v1581
        %v1631 = vunpack.c.l.b16 %v1582
        %v1632 = vunpack.c.h.b16 %v1582
        %v1633 = vunpack.c.l.b16 %v1583
        %v1634 = vunpack.c.h.b16 %v1583
        %v1635 = vunpack.c.l.b16 %v1584
        %v1636 = vunpack.c.h.b16 %v1584
        %v1637 = vunpack.c.l.b16 %v1585
        %v1638 = vunpack.c.h.b16 %v1585
        %v1639 = vunpack.c.l.b16 %v1586
        %v1640 = vunpack.c.h.b16 %v1586
        %v1641 = vunpack.c.l.b16 %v1587
        %v1642 = vunpack.c.h.b16 %v1587
        %v1643 = vunpack.c.l.b16 %v1588
        %v1644 = vunpack.c.h.b16 %v1588
        %v1645 = vunpack.c.l.b16 %v1589
        %v1646 = vunpack.c.h.b16 %v1589
        %v1647 = vunpack.c.l.b16 %v1590
        %v1648 = vunpack.c.h.b16 %v1590
        %v1649 = vunpack.c.l.b16 %v1591
        %v1650 = vunpack.c.h.b16 %v1591
        %v1651 = vunpack.c.l.b16 %v1592
        %v1652 = vunpack.c.h.b16 %v1592
        %v1653 = vpack.c.b16 %v1623, %v1621
        %v1654 = vpack.c.b16 %v1624, %v1622
        %v1655 = vpack.c.b16 %v1627, %v1625
        %v1656 = vpack.c.b16 %v1628, %v1626
        %v1657 = vpack.c.b16 %v1631, %v1629
        %v1658 = vpack.c.b16 %v1632, %v1630
        %v1659 = vpack.c.b16 %v1635, %v1633
        %v1660 = vpack.c.b16 %v1636, %v1634
        %v1661 = vpack.c.b16 %v1639, %v1637
        %v1662 = vpack.c.b16 %v1640, %v1638
        %v1663 = vpack.c.b16 %v1643, %v1641
        %v1664 = vpack.c.b16 %v1644, %v1642
        %v1665 = vpack.c.b16 %v1647, %v1645
        %v1666 = vpack.c.b16 %v1648, %v1646
        %v1667 = vpack.c.b16 %v1651, %v1649
        %v1668 = vpack.c.b16 %v1652, %v1650
        %1685 = vmatprep.subr.bf16.mxu0 %v1654
        %1686 = vmatpush1.bf16.msra.mxu0 %v1653
        %1687 = vmatprep.subr.bf16.mxu0 %v1656
        %1688 = vmatpush1.bf16.msra.mxu0 %v1655
        %1689 = vmatprep.subr.bf16.mxu0 %v1658
        %1690 = vmatpush1.bf16.msra.mxu0 %v1657
        %1691 = vmatprep.subr.bf16.mxu0 %v1660
        %1692 = vmatpush1.bf16.msra.mxu0 %v1659
        %1693 = vmatprep.subr.bf16.mxu0 %v1662
        %1694 = vmatpush1.bf16.msra.mxu0 %v1661
        %1695 = vmatprep.subr.bf16.mxu0 %v1664
        %1696 = vmatpush1.bf16.msra.mxu0 %v1663
        %1697 = vmatprep.subr.bf16.mxu0 %v1666
        %1698 = vmatpush1.bf16.msra.mxu0 %v1665
        %1699 = vmatprep.subr.bf16.mxu0 %v1668
        %1700 = vmatpush1.bf16.msra.mxu0 %v1667
        %1701 = vmatprep.subr.bf16.mxu0 0
        %1702 = vmatpush1.bf16.msra.mxu0 0
        %1703 = vmatprep.subr.bf16.mxu0 0
        %1704 = vmatpush1.bf16.msra.mxu0 0
        %1705 = vmatprep.subr.bf16.mxu0 0
        %1706 = vmatpush1.bf16.msra.mxu0 0
        %1707 = vmatprep.subr.bf16.mxu0 0
        %1708 = vmatpush1.bf16.msra.mxu0 0
        %1709 = vmatprep.subr.bf16.mxu0 0
        %1710 = vmatpush1.bf16.msra.mxu0 0
        %1711 = vmatprep.subr.bf16.mxu0 0
        %1712 = vmatpush1.bf16.msra.mxu0 0
        %1713 = vmatprep.subr.bf16.mxu0 0
        %1714 = vmatpush1.bf16.msra.mxu0 0
        %1715 = vmatprep.subr.bf16.mxu0 0
        %1716 = vmatpush1.bf16.msra.mxu0 0
        %1717 = vmatprep.mubr.bf16.mxu0 0
        %1718 = vmatmul.mubr.bf16.gmra.mrb[0].mxu0 %v1576
        %v1719 = vpop.f32.mrb[0].mxu0
        %v1720 = vadd.f32 %v1598, %v1719
        %v1721 = vpop.f32.mrb[0].mxu0
        %v1722 = vadd.f32 %v1602, %v1721
        %v1723 = vpop.f32.mrb[0].mxu0
        %v1724 = vadd.f32 %v1598, %v1723
        %v1725 = vpop.f32.mrb[0].mxu0
        %v1726 = vadd.f32 %v1602, %v1725
        %1727 = vdwg.mxu0
        %vm1728 = vcmp.gt.f32.partialorder %v1720, 20.0
        %vm1729 = vcmp.gt.f32.partialorder %v1722, 20.0
        %vm1730 = vcmp.gt.f32.partialorder %v1724, 20.0
        %vm1731 = vcmp.gt.f32.partialorder %v1726, 20.0
        %v1732 = vmul.f32 %v1720, 1.442695
        %v1733 = vpow.pop %v1732
        %v1734 = vmul.f32 %v1722, 1.442695
        %v1735 = vpow.pop %v1734
        %v1736 = vmul.f32 %v1724, 1.442695
        %v1737 = vpow.pop %v1736
        %v1738 = vmul.f32 %v1726, 1.442695
        %v1739 = vpow.pop %v1738
        %v1740 = vadd.f32 %v1733, 1.0
        %v1741 = vlog2.pop %v1740
        %v1742 = vmul.f32 %v1741, 0.6931472
        %v1743 = vmul.f32 -0.5, %v1733
        %v1744 = vadd.f32 %v1743, 1.0
        %v1745 = vmul.f32 %v1744, %v1733
        %v1746 = vand.u32 2147483647, %v1733
        %vm1747 = vcmp.lt.f32.partialorder %v1746, 0.0004427343
        %v1748 = vsel %vm1747, %v1745, %v1742
        %v1749 = vadd.f32 %v1735, 1.0
        %v1750 = vlog2.pop %v1749
        %v1751 = vmul.f32 %v1750, 0.6931472
        %v1752 = vmul.f32 -0.5, %v1735
        %v1753 = vadd.f32 %v1752, 1.0
        %v1754 = vmul.f32 %v1753, %v1735
        %v1755 = vand.u32 2147483647, %v1735
        %vm1756 = vcmp.lt.f32.partialorder %v1755, 0.0004427343
        %v1757 = vsel %vm1756, %v1754, %v1751
        %v1758 = vadd.f32 %v1737, 1.0
        %v1759 = vlog2.pop %v1758
        %v1760 = vmul.f32 %v1759, 0.6931472
        %v1761 = vmul.f32 -0.5, %v1737
        %v1762 = vadd.f32 %v1761, 1.0
        %v1763 = vmul.f32 %v1762, %v1737
        %v1764 = vand.u32 2147483647, %v1737
        %vm1765 = vcmp.lt.f32.partialorder %v1764, 0.0004427343
        %v1766 = vsel %vm1765, %v1763, %v1760
        %v1767 = vadd.f32 %v1739, 1.0
        %v1768 = vlog2.pop %v1767
        %v1769 = vmul.f32 %v1768, 0.6931472
        %v1770 = vmul.f32 -0.5, %v1739
        %v1771 = vadd.f32 %v1770, 1.0
        %v1772 = vmul.f32 %v1771, %v1739
        %v1773 = vand.u32 2147483647, %v1739
        %vm1774 = vcmp.lt.f32.partialorder %v1773, 0.0004427343
        %v1775 = vsel %vm1774, %v1772, %v1769
        %v1776 = vsel %vm1728, %v1720, %v1748
        %v1777 = vsel %vm1729, %v1722, %v1757
        %v1778 = vsel %vm1730, %v1724, %v1766
        %v1779 = vsel %vm1731, %v1726, %v1775
        %1780 = vst [vmem:[#allocation4] sm:$0xff] %v1776
        %1781 = vst [vmem:[#allocation4 + $0x8] sm:$0xff] %v1777
        %1782 = vst [vmem:[#allocation4 + $0x10] sm:$0xff] %v1778
        %1783 = vst [vmem:[#allocation4 + $0x18] sm:$0xff] %v1779
        %v1784 = vmul.f32 %v1776, %v1399
        %v1785 = vmul.f32 %v1777, %v1400
        %v1786 = vmul.f32 %v1778, %v1401
        %v1787 = vmul.f32 %v1779, %v1402
        %1788 = vst [vmem:[#allocation5] sm:$0xff] %v1784
        %1789 = vst [vmem:[#allocation5 + $0x8] sm:$0xff] %v1785
        %1790 = vst [vmem:[#allocation5 + $0x10] sm:$0xff] %v1786
        %1791 = vst [vmem:[#allocation5 + $0x18] sm:$0xff] %v1787
        %v1792 = vld [vmem:[%s708] sm:$0xff]
        %v1793 = vld [vmem:[%s708 + $0x8] sm:$0xff]
        %v1794 = vld [vmem:[%s708 + $0x10] sm:$0xff]
        %v1795 = vld [vmem:[%s708 + $0x18] sm:$0xff]
        loop: start=0, step=1, limit=2
        $region117: #{tpu_custom_call.1} parent=75 // loop_pre_header
          _
        $region118: #{tpu_custom_call.1} parent=75 // loop_header
          %s1797 = sphi 0, %s1801
          %p1798 = scmp.ge.s32.totalorder %s1797, 2
          %v1802 = vphi 0.0, %v2418
          %v1803 = vphi 0.0, %v2419
          %v1804 = vphi 0.0, %v2420
          %v1805 = vphi 0.0, %v2421
        $region119: #{tpu_custom_call.1} parent=75 // loop_header_branch
          %1800 = sbr.rel (%p1798) target = $region123
        $region120: #{tpu_custom_call.1} parent=75 // loop_body
          %s1806 = smul.u32 %s1797, 8
          %s1807 = sshra.s32 %s1806, 3
          %s1808 = sand.u32 %s1806, 7
          %s1809 = smul.u32 %s1807, 2
          %s1810 = smul.addr %s1809, 8
          %s1811 = scalar_lea.vmem [#allocation4], %s1810
          %v1812 = vld [vmem:[%s1811] sm:$0xff]
          %v1813 = vld [vmem:[%s1811 + $0x8] sm:$0xff]
          %s1814 = smul.addr %s1809, 8
          %s1815 = scalar_lea.vmem [#allocation5], %s1814
          %v1816 = vld [vmem:[%s1815] sm:$0xff]
          %v1817 = vld [vmem:[%s1815 + $0x8] sm:$0xff]
          %s1818 = scalar_lea.vmem [#allocation6], %s1806
          %v1819 = vld [vmem:[%s1818] sm:$0xff]
          %1820 = vxpose.xlu0.b32.start [1/16] %v1819, 128
          %1821 = vxpose.xlu0.b32.cont [2/16] 0.0, 128
          %1822 = vxpose.xlu0.b32.cont [3/16] 0.0, 128
          %1823 = vxpose.xlu0.b32.cont [4/16] 0.0, 128
          %1824 = vxpose.xlu0.b32.cont [5/16] 0.0, 128
          %1825 = vxpose.xlu0.b32.cont [6/16] 0.0, 128
          %1826 = vxpose.xlu0.b32.cont [7/16] 0.0, 128
          %1827 = vxpose.xlu0.b32.cont [8/16] 0.0, 128
          %1828 = vxpose.xlu0.b32.cont [9/16] 0.0, 128
          %1829 = vxpose.xlu0.b32.cont [10/16] 0.0, 128
          %1830 = vxpose.xlu0.b32.cont [11/16] 0.0, 128
          %1831 = vxpose.xlu0.b32.cont [12/16] 0.0, 128
          %1832 = vxpose.xlu0.b32.cont [13/16] 0.0, 128
          %1833 = vxpose.xlu0.b32.cont [14/16] 0.0, 128
          %1834 = vxpose.xlu0.b32.cont [15/16] 0.0, 128
          %1835 = vxpose.xlu0.b32.end [16/16] 0.0, 128
          %v1836 = vpop.trf.xlu0
          %v1837 = vpop.trf.xlu0
          %v1838 = vpop.trf.xlu0
          %v1839 = vpop.trf.xlu0
          %v1840 = vpop.trf.xlu0
          %v1841 = vpop.trf.xlu0
          %v1842 = vpop.trf.xlu0
          %v1843 = vpop.trf.xlu0
          %v1844 = vpop.trf.xlu0
          %v1845 = vpop.trf.xlu0
          %v1846 = vpop.trf.xlu0
          %v1847 = vpop.trf.xlu0
          %v1848 = vpop.trf.xlu0
          %v1849 = vpop.trf.xlu0
          %v1850 = vpop.trf.xlu0
          %v1851 = vpop.trf.xlu0
          %v1852 = vlaneseq
          %v1853 = vshrl.u32 %v1852, 7
          %v1854 = vsub.s32 0, %v1853
          %v1855 = vrot.slane %v1812, %v1854
          %v1856 = vlaneseq
          %v1857 = vshrl.u32 %v1856, 7
          %v1858 = vsub.s32 0, %v1857
          %v1859 = vrot.slane %v1813, %v1858
          %v1860 = vmul.f32 %v1855, %v1792
          %v1861 = vmul.f32 %v1859, %v1793
          %v1862 = vmul.f32 %v1855, %v1794
          %v1863 = vmul.f32 %v1859, %v1795
          %v1864 = vmul.f32 %v1860, 1.442695
          %v1865 = vpow.pop %v1864
          %v1866 = vmul.f32 %v1861, 1.442695
          %v1867 = vpow.pop %v1866
          %v1868 = vmul.f32 %v1862, 1.442695
          %v1869 = vpow.pop %v1868
          %v1870 = vmul.f32 %v1863, 1.442695
          %v1871 = vpow.pop %v1870
          %v1872 = vlaneseq
          %v1873 = vshrl.u32 %v1872, 7
          %v1874 = vsub.s32 0, %v1873
          %v1875 = vrot.slane %v1816, %v1874
          %v1876 = vlaneseq
          %v1877 = vshrl.u32 %v1876, 7
          %v1878 = vsub.s32 0, %v1877
          %v1879 = vrot.slane %v1817, %v1878
          %1881 = vset.pattern.permute.xlu0 0
          %1882 = vperm.xlu0 %1881, %v1836
          %v1883 = vpop.permute.xlu0 %1882
          %1886 = vset.pattern.permute.xlu0 0
          %1887 = vperm.xlu0 %1886, %v1837
          %v1888 = vpop.permute.xlu0 %1887
          %v1890 = vmul.f32 %v1875, %v1883
          %v1891 = vmul.f32 %v1879, %v1883
          %v1892 = vmul.f32 %v1875, %v1888
          %v1893 = vmul.f32 %v1879, %v1888
          %v1894 = vlaneseq
          %v1895 = vshrl.u32 %v1894, 7
          %v1896 = vsub.s32 1, %v1895
          %v1897 = vrot.slane %v1812, %v1896
          %v1898 = vlaneseq
          %v1899 = vshrl.u32 %v1898, 7
          %v1900 = vsub.s32 1, %v1899
          %v1901 = vrot.slane %v1813, %v1900
          %v1902 = vmul.f32 %v1897, %v1792
          %v1903 = vmul.f32 %v1901, %v1793
          %v1904 = vmul.f32 %v1897, %v1794
          %v1905 = vmul.f32 %v1901, %v1795
          %v1906 = vmul.f32 %v1902, 1.442695
          %v1907 = vpow.pop %v1906
          %v1908 = vmul.f32 %v1903, 1.442695
          %v1909 = vpow.pop %v1908
          %v1910 = vmul.f32 %v1904, 1.442695
          %v1911 = vpow.pop %v1910
          %v1912 = vmul.f32 %v1905, 1.442695
          %v1913 = vpow.pop %v1912
          %v1914 = vlaneseq
          %v1915 = vshrl.u32 %v1914, 7
          %v1916 = vsub.s32 1, %v1915
          %v1917 = vrot.slane %v1816, %v1916
          %v1918 = vlaneseq
          %v1919 = vshrl.u32 %v1918, 7
          %v1920 = vsub.s32 1, %v1919
          %v1921 = vrot.slane %v1817, %v1920
          %1922 = vset.pattern.permute.xlu0 1
          %1923 = vperm.xlu0 %1922, %v1836
          %v1924 = vpop.permute.xlu0 %1923
          %1926 = vset.pattern.permute.xlu0 1
          %1927 = vperm.xlu0 %1926, %v1837
          %v1928 = vpop.permute.xlu0 %1927
          %v1930 = vmul.f32 %v1917, %v1924
          %v1931 = vmul.f32 %v1921, %v1924
          %v1932 = vmul.f32 %v1917, %v1928
          %v1933 = vmul.f32 %v1921, %v1928
          %v1934 = vlaneseq
          %v1935 = vshrl.u32 %v1934, 7
          %v1936 = vsub.s32 2, %v1935
          %v1937 = vrot.slane %v1812, %v1936
          %v1938 = vlaneseq
          %v1939 = vshrl.u32 %v1938, 7
          %v1940 = vsub.s32 2, %v1939
          %v1941 = vrot.slane %v1813, %v1940
          %v1942 = vmul.f32 %v1937, %v1792
          %v1943 = vmul.f32 %v1941, %v1793
          %v1944 = vmul.f32 %v1937, %v1794
          %v1945 = vmul.f32 %v1941, %v1795
          %v1946 = vmul.f32 %v1942, 1.442695
          %v1947 = vpow.pop %v1946
          %v1948 = vmul.f32 %v1943, 1.442695
          %v1949 = vpow.pop %v1948
          %v1950 = vmul.f32 %v1944, 1.442695
          %v1951 = vpow.pop %v1950
          %v1952 = vmul.f32 %v1945, 1.442695
          %v1953 = vpow.pop %v1952
          %v1954 = vlaneseq
          %v1955 = vshrl.u32 %v1954, 7
          %v1956 = vsub.s32 2, %v1955
          %v1957 = vrot.slane %v1816, %v1956
          %v1958 = vlaneseq
          %v1959 = vshrl.u32 %v1958, 7
          %v1960 = vsub.s32 2, %v1959
          %v1961 = vrot.slane %v1817, %v1960
          %1962 = vset.pattern.permute.xlu0 2
          %1963 = vperm.xlu0 %1962, %v1836
          %v1964 = vpop.permute.xlu0 %1963
          %1966 = vset.pattern.permute.xlu0 2
          %1967 = vperm.xlu0 %1966, %v1837
          %v1968 = vpop.permute.xlu0 %1967
          %v1970 = vmul.f32 %v1957, %v1964
          %v1971 = vmul.f32 %v1961, %v1964
          %v1972 = vmul.f32 %v1957, %v1968
          %v1973 = vmul.f32 %v1961, %v1968
          %v1974 = vlaneseq
          %v1975 = vshrl.u32 %v1974, 7
          %v1976 = vsub.s32 3, %v1975
          %v1977 = vrot.slane %v1812, %v1976
          %v1978 = vlaneseq
          %v1979 = vshrl.u32 %v1978, 7
          %v1980 = vsub.s32 3, %v1979
          %v1981 = vrot.slane %v1813, %v1980
          %v1982 = vmul.f32 %v1977, %v1792
          %v1983 = vmul.f32 %v1981, %v1793
          %v1984 = vmul.f32 %v1977, %v1794
          %v1985 = vmul.f32 %v1981, %v1795
          %v1986 = vmul.f32 %v1982, 1.442695
          %v1987 = vpow.pop %v1986
          %v1988 = vmul.f32 %v1983, 1.442695
          %v1989 = vpow.pop %v1988
          %v1990 = vmul.f32 %v1984, 1.442695
          %v1991 = vpow.pop %v1990
          %v1992 = vmul.f32 %v1985, 1.442695
          %v1993 = vpow.pop %v1992
          %v1994 = vlaneseq
          %v1995 = vshrl.u32 %v1994, 7
          %v1996 = vsub.s32 3, %v1995
          %v1997 = vrot.slane %v1816, %v1996
          %v1998 = vlaneseq
          %v1999 = vshrl.u32 %v1998, 7
          %v2000 = vsub.s32 3, %v1999
          %v2001 = vrot.slane %v1817, %v2000
          %2002 = vset.pattern.permute.xlu0 3
          %2003 = vperm.xlu0 %2002, %v1836
          %v2004 = vpop.permute.xlu0 %2003
          %2006 = vset.pattern.permute.xlu0 3
          %2007 = vperm.xlu0 %2006, %v1837
          %v2008 = vpop.permute.xlu0 %2007
          %v2010 = vmul.f32 %v1997, %v2004
          %v2011 = vmul.f32 %v2001, %v2004
          %v2012 = vmul.f32 %v1997, %v2008
          %v2013 = vmul.f32 %v2001, %v2008
          %v2014 = vlaneseq
          %v2015 = vshrl.u32 %v2014, 7
          %v2016 = vsub.s32 4, %v2015
          %v2017 = vrot.slane %v1812, %v2016
          %v2018 = vlaneseq
          %v2019 = vshrl.u32 %v2018, 7
          %v2020 = vsub.s32 4, %v2019
          %v2021 = vrot.slane %v1813, %v2020
          %v2022 = vmul.f32 %v2017, %v1792
          %v2023 = vmul.f32 %v2021, %v1793
          %v2024 = vmul.f32 %v2017, %v1794
          %v2025 = vmul.f32 %v2021, %v1795
          %v2026 = vmul.f32 %v2022, 1.442695
          %v2027 = vpow.pop %v2026
          %v2028 = vmul.f32 %v2023, 1.442695
          %v2029 = vpow.pop %v2028
          %v2030 = vmul.f32 %v2024, 1.442695
          %v2031 = vpow.pop %v2030
          %v2032 = vmul.f32 %v2025, 1.442695
          %v2033 = vpow.pop %v2032
          %v2034 = vlaneseq
          %v2035 = vshrl.u32 %v2034, 7
          %v2036 = vsub.s32 4, %v2035
          %v2037 = vrot.slane %v1816, %v2036
          %v2038 = vlaneseq
          %v2039 = vshrl.u32 %v2038, 7
          %v2040 = vsub.s32 4, %v2039
          %v2041 = vrot.slane %v1817, %v2040
          %2042 = vset.pattern.permute.xlu0 4
          %2043 = vperm.xlu0 %2042, %v1836
          %v2044 = vpop.permute.xlu0 %2043
          %2046 = vset.pattern.permute.xlu0 4
          %2047 = vperm.xlu0 %2046, %v1837
          %v2048 = vpop.permute.xlu0 %2047
          %v2050 = vmul.f32 %v2037, %v2044
          %v2051 = vmul.f32 %v2041, %v2044
          %v2052 = vmul.f32 %v2037, %v2048
          %v2053 = vmul.f32 %v2041, %v2048
          %v2054 = vlaneseq
          %v2055 = vshrl.u32 %v2054, 7
          %v2056 = vsub.s32 5, %v2055
          %v2057 = vrot.slane %v1812, %v2056
          %v2058 = vlaneseq
          %v2059 = vshrl.u32 %v2058, 7
          %v2060 = vsub.s32 5, %v2059
          %v2061 = vrot.slane %v1813, %v2060
          %v2062 = vmul.f32 %v2057, %v1792
          %v2063 = vmul.f32 %v2061, %v1793
          %v2064 = vmul.f32 %v2057, %v1794
          %v2065 = vmul.f32 %v2061, %v1795
          %v2066 = vmul.f32 %v2062, 1.442695
          %v2067 = vpow.pop %v2066
          %v2068 = vmul.f32 %v2063, 1.442695
          %v2069 = vpow.pop %v2068
          %v2070 = vmul.f32 %v2064, 1.442695
          %v2071 = vpow.pop %v2070
          %v2072 = vmul.f32 %v2065, 1.442695
          %v2073 = vpow.pop %v2072
          %v2074 = vlaneseq
          %v2075 = vshrl.u32 %v2074, 7
          %v2076 = vsub.s32 5, %v2075
          %v2077 = vrot.slane %v1816, %v2076
          %v2078 = vlaneseq
          %v2079 = vshrl.u32 %v2078, 7
          %v2080 = vsub.s32 5, %v2079
          %v2081 = vrot.slane %v1817, %v2080
          %2082 = vset.pattern.permute.xlu0 5
          %2083 = vperm.xlu0 %2082, %v1836
          %v2084 = vpop.permute.xlu0 %2083
          %2086 = vset.pattern.permute.xlu0 5
          %2087 = vperm.xlu0 %2086, %v1837
          %v2088 = vpop.permute.xlu0 %2087
          %v2090 = vmul.f32 %v2077, %v2084
          %v2091 = vmul.f32 %v2081, %v2084
          %v2092 = vmul.f32 %v2077, %v2088
          %v2093 = vmul.f32 %v2081, %v2088
          %v2094 = vlaneseq
          %v2095 = vshrl.u32 %v2094, 7
          %v2096 = vsub.s32 6, %v2095
          %v2097 = vrot.slane %v1812, %v2096
          %v2098 = vlaneseq
          %v2099 = vshrl.u32 %v2098, 7
          %v2100 = vsub.s32 6, %v2099
          %v2101 = vrot.slane %v1813, %v2100
          %v2102 = vmul.f32 %v2097, %v1792
          %v2103 = vmul.f32 %v2101, %v1793
          %v2104 = vmul.f32 %v2097, %v1794
          %v2105 = vmul.f32 %v2101, %v1795
          %v2106 = vmul.f32 %v2102, 1.442695
          %v2107 = vpow.pop %v2106
          %v2108 = vmul.f32 %v2103, 1.442695
          %v2109 = vpow.pop %v2108
          %v2110 = vmul.f32 %v2104, 1.442695
          %v2111 = vpow.pop %v2110
          %v2112 = vmul.f32 %v2105, 1.442695
          %v2113 = vpow.pop %v2112
          %v2114 = vlaneseq
          %v2115 = vshrl.u32 %v2114, 7
          %v2116 = vsub.s32 6, %v2115
          %v2117 = vrot.slane %v1816, %v2116
          %v2118 = vlaneseq
          %v2119 = vshrl.u32 %v2118, 7
          %v2120 = vsub.s32 6, %v2119
          %v2121 = vrot.slane %v1817, %v2120
          %2122 = vset.pattern.permute.xlu0 6
          %2123 = vperm.xlu0 %2122, %v1836
          %v2124 = vpop.permute.xlu0 %2123
          %2126 = vset.pattern.permute.xlu0 6
          %2127 = vperm.xlu0 %2126, %v1837
          %v2128 = vpop.permute.xlu0 %2127
          %v2130 = vmul.f32 %v2117, %v2124
          %v2131 = vmul.f32 %v2121, %v2124
          %v2132 = vmul.f32 %v2117, %v2128
          %v2133 = vmul.f32 %v2121, %v2128
          %v2134 = vlaneseq
          %v2135 = vshrl.u32 %v2134, 7
          %v2136 = vsub.s32 7, %v2135
          %v2137 = vrot.slane %v1812, %v2136
          %v2138 = vlaneseq
          %v2139 = vshrl.u32 %v2138, 7
          %v2140 = vsub.s32 7, %v2139
          %v2141 = vrot.slane %v1813, %v2140
          %v2142 = vmul.f32 %v2137, %v1792
          %v2143 = vmul.f32 %v2141, %v1793
          %v2144 = vmul.f32 %v2137, %v1794
          %v2145 = vmul.f32 %v2141, %v1795
          %v2146 = vmul.f32 %v2142, 1.442695
          %v2147 = vpow.pop %v2146
          %v2148 = vmul.f32 %v2143, 1.442695
          %v2149 = vpow.pop %v2148
          %v2150 = vmul.f32 %v2144, 1.442695
          %v2151 = vpow.pop %v2150
          %v2152 = vmul.f32 %v2145, 1.442695
          %v2153 = vpow.pop %v2152
          %v2154 = vlaneseq
          %v2155 = vshrl.u32 %v2154, 7
          %v2156 = vsub.s32 7, %v2155
          %v2157 = vrot.slane %v1816, %v2156
          %v2158 = vlaneseq
          %v2159 = vshrl.u32 %v2158, 7
          %v2160 = vsub.s32 7, %v2159
          %v2161 = vrot.slane %v1817, %v2160
          %2162 = vset.pattern.permute.xlu0 7
          %2163 = vperm.xlu0 %2162, %v1836
          %v2164 = vpop.permute.xlu0 %2163
          %2166 = vset.pattern.permute.xlu0 7
          %2167 = vperm.xlu0 %2166, %v1837
          %v2168 = vpop.permute.xlu0 %2167
          %v2170 = vmul.f32 %v2157, %v2164
          %v2171 = vmul.f32 %v2161, %v2164
          %v2172 = vmul.f32 %v2157, %v2168
          %v2173 = vmul.f32 %v2161, %v2168
          %v2174 = vmul.f32 %v1865, %v1802
          %v2175 = vmul.f32 %v1867, %v1803
          %v2176 = vmul.f32 %v1869, %v1804
          %v2177 = vmul.f32 %v1871, %v1805
          %v2178 = vadd.f32 %v2174, %v1890
          %v2179 = vadd.f32 %v2175, %v1891
          %v2180 = vadd.f32 %v2176, %v1892
          %v2181 = vadd.f32 %v2177, %v1893
          %2183 = vset.pattern.permute.xlu0 0
          %2184 = vperm.xlu0 %2183, %v1838
          %v2185 = vpop.permute.xlu0 %2184
          %2188 = vset.pattern.permute.xlu0 0
          %2189 = vperm.xlu0 %2188, %v1839
          %v2190 = vpop.permute.xlu0 %2189
          %v2192 = vmul.f32 %v2178, %v2185
          %v2193 = vmul.f32 %v2179, %v2185
          %v2194 = vmul.f32 %v2180, %v2190
          %v2195 = vmul.f32 %v2181, %v2190
          %v2196 = vadd.f32 %v2192, %v2194
          %v2197 = vrot.slane %v2196, 4
          %v2198 = vadd.f32 %v2196, %v2197
          %v2199 = vrot.slane %v2198, 2
          %v2200 = vadd.f32 %v2198, %v2199
          %v2201 = vrot.slane %v2200, 1
          %v2202 = vadd.f32 %v2200, %v2201
          %v2203 = vadd.f32 %v2193, %v2195
          %v2204 = vrot.slane %v2203, 4
          %v2205 = vadd.f32 %v2203, %v2204
          %v2206 = vrot.slane %v2205, 2
          %v2207 = vadd.f32 %v2205, %v2206
          %v2208 = vrot.slane %v2207, 1
          %v2209 = vadd.f32 %v2207, %v2208
          %v2210 = vmul.f32 %v1907, %v2178
          %v2211 = vmul.f32 %v1909, %v2179
          %v2212 = vmul.f32 %v1911, %v2180
          %v2213 = vmul.f32 %v1913, %v2181
          %v2214 = vadd.f32 %v2210, %v1930
          %v2215 = vadd.f32 %v2211, %v1931
          %v2216 = vadd.f32 %v2212, %v1932
          %v2217 = vadd.f32 %v2213, %v1933
          %2218 = vset.pattern.permute.xlu0 1
          %2219 = vperm.xlu0 %2218, %v1838
          %v2220 = vpop.permute.xlu0 %2219
          %2222 = vset.pattern.permute.xlu0 1
          %2223 = vperm.xlu0 %2222, %v1839
          %v2224 = vpop.permute.xlu0 %2223
          %v2226 = vmul.f32 %v2214, %v2220
          %v2227 = vmul.f32 %v2215, %v2220
          %v2228 = vmul.f32 %v2216, %v2224
          %v2229 = vmul.f32 %v2217, %v2224
          %v2230 = vadd.f32 %v2226, %v2228
          %v2231 = vrot.slane %v2230, 4
          %v2232 = vadd.f32 %v2230, %v2231
          %v2233 = vrot.slane %v2232, 2
          %v2234 = vadd.f32 %v2232, %v2233
          %v2235 = vrot.slane %v2234, 1
          %v2236 = vadd.f32 %v2234, %v2235
          %v2237 = vadd.f32 %v2227, %v2229
          %v2238 = vrot.slane %v2237, 4
          %v2239 = vadd.f32 %v2237, %v2238
          %v2240 = vrot.slane %v2239, 2
          %v2241 = vadd.f32 %v2239, %v2240
          %v2242 = vrot.slane %v2241, 1
          %v2243 = vadd.f32 %v2241, %v2242
          %v2244 = vmul.f32 %v1947, %v2214
          %v2245 = vmul.f32 %v1949, %v2215
          %v2246 = vmul.f32 %v1951, %v2216
          %v2247 = vmul.f32 %v1953, %v2217
          %v2248 = vadd.f32 %v2244, %v1970
          %v2249 = vadd.f32 %v2245, %v1971
          %v2250 = vadd.f32 %v2246, %v1972
          %v2251 = vadd.f32 %v2247, %v1973
          %2252 = vset.pattern.permute.xlu0 2
          %2253 = vperm.xlu0 %2252, %v1838
          %v2254 = vpop.permute.xlu0 %2253
          %2256 = vset.pattern.permute.xlu0 2
          %2257 = vperm.xlu0 %2256, %v1839
          %v2258 = vpop.permute.xlu0 %2257
          %v2260 = vmul.f32 %v2248, %v2254
          %v2261 = vmul.f32 %v2249, %v2254
          %v2262 = vmul.f32 %v2250, %v2258
          %v2263 = vmul.f32 %v2251, %v2258
          %v2264 = vadd.f32 %v2260, %v2262
          %v2265 = vrot.slane %v2264, 4
          %v2266 = vadd.f32 %v2264, %v2265
          %v2267 = vrot.slane %v2266, 2
          %v2268 = vadd.f32 %v2266, %v2267
          %v2269 = vrot.slane %v2268, 1
          %v2270 = vadd.f32 %v2268, %v2269
          %v2271 = vadd.f32 %v2261, %v2263
          %v2272 = vrot.slane %v2271, 4
          %v2273 = vadd.f32 %v2271, %v2272
          %v2274 = vrot.slane %v2273, 2
          %v2275 = vadd.f32 %v2273, %v2274
          %v2276 = vrot.slane %v2275, 1
          %v2277 = vadd.f32 %v2275, %v2276
          %v2278 = vmul.f32 %v1987, %v2248
          %v2279 = vmul.f32 %v1989, %v2249
          %v2280 = vmul.f32 %v1991, %v2250
          %v2281 = vmul.f32 %v1993, %v2251
          %v2282 = vadd.f32 %v2278, %v2010
          %v2283 = vadd.f32 %v2279, %v2011
          %v2284 = vadd.f32 %v2280, %v2012
          %v2285 = vadd.f32 %v2281, %v2013
          %2286 = vset.pattern.permute.xlu0 3
          %2287 = vperm.xlu0 %2286, %v1838
          %v2288 = vpop.permute.xlu0 %2287
          %2290 = vset.pattern.permute.xlu0 3
          %2291 = vperm.xlu0 %2290, %v1839
          %v2292 = vpop.permute.xlu0 %2291
          %v2294 = vmul.f32 %v2282, %v2288
          %v2295 = vmul.f32 %v2283, %v2288
          %v2296 = vmul.f32 %v2284, %v2292
          %v2297 = vmul.f32 %v2285, %v2292
          %v2298 = vadd.f32 %v2294, %v2296
          %v2299 = vrot.slane %v2298, 4
          %v2300 = vadd.f32 %v2298, %v2299
          %v2301 = vrot.slane %v2300, 2
          %v2302 = vadd.f32 %v2300, %v2301
          %v2303 = vrot.slane %v2302, 1
          %v2304 = vadd.f32 %v2302, %v2303
          %v2305 = vadd.f32 %v2295, %v2297
          %v2306 = vrot.slane %v2305, 4
          %v2307 = vadd.f32 %v2305, %v2306
          %v2308 = vrot.slane %v2307, 2
          %v2309 = vadd.f32 %v2307, %v2308
          %v2310 = vrot.slane %v2309, 1
          %v2311 = vadd.f32 %v2309, %v2310
          %v2312 = vmul.f32 %v2027, %v2282
          %v2313 = vmul.f32 %v2029, %v2283
          %v2314 = vmul.f32 %v2031, %v2284
          %v2315 = vmul.f32 %v2033, %v2285
          %v2316 = vadd.f32 %v2312, %v2050
          %v2317 = vadd.f32 %v2313, %v2051
          %v2318 = vadd.f32 %v2314, %v2052
          %v2319 = vadd.f32 %v2315, %v2053
          %2320 = vset.pattern.permute.xlu0 4
          %2321 = vperm.xlu0 %2320, %v1838
          %v2322 = vpop.permute.xlu0 %2321
          %2324 = vset.pattern.permute.xlu0 4
          %2325 = vperm.xlu0 %2324, %v1839
          %v2326 = vpop.permute.xlu0 %2325
          %v2328 = vmul.f32 %v2316, %v2322
          %v2329 = vmul.f32 %v2317, %v2322
          %v2330 = vmul.f32 %v2318, %v2326
          %v2331 = vmul.f32 %v2319, %v2326
          %v2332 = vadd.f32 %v2328, %v2330
          %v2333 = vrot.slane %v2332, 4
          %v2334 = vadd.f32 %v2332, %v2333
          %v2335 = vrot.slane %v2334, 2
          %v2336 = vadd.f32 %v2334, %v2335
          %v2337 = vrot.slane %v2336, 1
          %v2338 = vadd.f32 %v2336, %v2337
          %v2339 = vadd.f32 %v2329, %v2331
          %v2340 = vrot.slane %v2339, 4
          %v2341 = vadd.f32 %v2339, %v2340
          %v2342 = vrot.slane %v2341, 2
          %v2343 = vadd.f32 %v2341, %v2342
          %v2344 = vrot.slane %v2343, 1
          %v2345 = vadd.f32 %v2343, %v2344
          %v2346 = vmul.f32 %v2067, %v2316
          %v2347 = vmul.f32 %v2069, %v2317
          %v2348 = vmul.f32 %v2071, %v2318
          %v2349 = vmul.f32 %v2073, %v2319
          %v2350 = vadd.f32 %v2346, %v2090
          %v2351 = vadd.f32 %v2347, %v2091
          %v2352 = vadd.f32 %v2348, %v2092
          %v2353 = vadd.f32 %v2349, %v2093
          %2354 = vset.pattern.permute.xlu0 5
          %2355 = vperm.xlu0 %2354, %v1838
          %v2356 = vpop.permute.xlu0 %2355
          %2358 = vset.pattern.permute.xlu0 5
          %2359 = vperm.xlu0 %2358, %v1839
          %v2360 = vpop.permute.xlu0 %2359
          %v2362 = vmul.f32 %v2350, %v2356
          %v2363 = vmul.f32 %v2351, %v2356
          %v2364 = vmul.f32 %v2352, %v2360
          %v2365 = vmul.f32 %v2353, %v2360
          %v2366 = vadd.f32 %v2362, %v2364
          %v2367 = vrot.slane %v2366, 4
          %v2368 = vadd.f32 %v2366, %v2367
          %v2369 = vrot.slane %v2368, 2
          %v2370 = vadd.f32 %v2368, %v2369
          %v2371 = vrot.slane %v2370, 1
          %v2372 = vadd.f32 %v2370, %v2371
          %v2373 = vadd.f32 %v2363, %v2365
          %v2374 = vrot.slane %v2373, 4
          %v2375 = vadd.f32 %v2373, %v2374
          %v2376 = vrot.slane %v2375, 2
          %v2377 = vadd.f32 %v2375, %v2376
          %v2378 = vrot.slane %v2377, 1
          %v2379 = vadd.f32 %v2377, %v2378
          %v2380 = vmul.f32 %v2107, %v2350
          %v2381 = vmul.f32 %v2109, %v2351
          %v2382 = vmul.f32 %v2111, %v2352
          %v2383 = vmul.f32 %v2113, %v2353
          %v2384 = vadd.f32 %v2380, %v2130
          %v2385 = vadd.f32 %v2381, %v2131
          %v2386 = vadd.f32 %v2382, %v2132
          %v2387 = vadd.f32 %v2383, %v2133
          %2388 = vset.pattern.permute.xlu0 6
          %2389 = vperm.xlu0 %2388, %v1838
          %v2390 = vpop.permute.xlu0 %2389
          %2392 = vset.pattern.permute.xlu0 6
          %2393 = vperm.xlu0 %2392, %v1839
          %v2394 = vpop.permute.xlu0 %2393
          %v2396 = vmul.f32 %v2384, %v2390
          %v2397 = vmul.f32 %v2385, %v2390
          %v2398 = vmul.f32 %v2386, %v2394
          %v2399 = vmul.f32 %v2387, %v2394
          %v2400 = vadd.f32 %v2396, %v2398
          %v2401 = vrot.slane %v2400, 4
          %v2402 = vadd.f32 %v2400, %v2401
          %v2403 = vrot.slane %v2402, 2
          %v2404 = vadd.f32 %v2402, %v2403
          %v2405 = vrot.slane %v2404, 1
          %v2406 = vadd.f32 %v2404, %v2405
          %v2407 = vadd.f32 %v2397, %v2399
          %v2408 = vrot.slane %v2407, 4
          %v2409 = vadd.f32 %v2407, %v2408
          %v2410 = vrot.slane %v2409, 2
          %v2411 = vadd.f32 %v2409, %v2410
          %v2412 = vrot.slane %v2411, 1
          %v2413 = vadd.f32 %v2411, %v2412
          %v2414 = vmul.f32 %v2147, %v2384
          %v2415 = vmul.f32 %v2149, %v2385
          %v2416 = vmul.f32 %v2151, %v2386
          %v2417 = vmul.f32 %v2153, %v2387
          %v2418 = vadd.f32 %v2414, %v2170
          %v2419 = vadd.f32 %v2415, %v2171
          %v2420 = vadd.f32 %v2416, %v2172
          %v2421 = vadd.f32 %v2417, %v2173
          %2422 = vset.pattern.permute.xlu0 7
          %2423 = vperm.xlu0 %2422, %v1838
          %v2424 = vpop.permute.xlu0 %2423
          %2426 = vset.pattern.permute.xlu0 7
          %2427 = vperm.xlu0 %2426, %v1839
          %v2428 = vpop.permute.xlu0 %2427
          %v2430 = vmul.f32 %v2418, %v2424
          %v2431 = vmul.f32 %v2419, %v2424
          %v2432 = vmul.f32 %v2420, %v2428
          %v2433 = vmul.f32 %v2421, %v2428
          %v2434 = vadd.f32 %v2430, %v2432
          %v2435 = vrot.slane %v2434, 4
          %v2436 = vadd.f32 %v2434, %v2435
          %v2437 = vrot.slane %v2436, 2
          %v2438 = vadd.f32 %v2436, %v2437
          %v2439 = vrot.slane %v2438, 1
          %v2440 = vadd.f32 %v2438, %v2439
          %v2441 = vadd.f32 %v2431, %v2433
          %v2442 = vrot.slane %v2441, 4
          %v2443 = vadd.f32 %v2441, %v2442
          %v2444 = vrot.slane %v2443, 2
          %v2445 = vadd.f32 %v2443, %v2444
          %v2446 = vrot.slane %v2445, 1
          %v2447 = vadd.f32 %v2445, %v2446
          %vm2448 = vcmask 1040384
          %v2449 = vsel %vm2448, %v2202, %v2236
          %v2450 = vsel %vm2448, %v2209, %v2243
          %vm2451 = vcmask 1041408
          %v2452 = vsel %vm2451, %v2449, %v2270
          %v2453 = vsel %vm2451, %v2450, %v2277
          %v2454 = vsel %vm1174, %v2452, %v2304
          %v2455 = vsel %vm1174, %v2453, %v2311
          %vm2456 = vcmask 1043456
          %v2457 = vsel %vm2456, %v2454, %v2338
          %v2458 = vsel %vm2456, %v2455, %v2345
          %v2459 = vsel %vm1356, %v2457, %v2372
          %v2460 = vsel %vm1356, %v2458, %v2379
          %v2461 = vsel %vm1307, %v2459, %v2406
          %v2462 = vsel %vm1307, %v2460, %v2413
          %v2463 = vsel %vm1258, %v2461, %v2440
          %v2464 = vsel %vm1258, %v2462, %v2447
          %s2465 = smul.addr %s1809, 8
          %s2466 = scalar_lea.vmem [#allocation7], %s2465
          %2467 = vst [vmem:[%s2466] sm:$0xff] %v2463
          %2468 = vst [vmem:[%s2466 + $0x8] sm:$0xff] %v2464
        $region121: #{tpu_custom_call.1} parent=75 // loop_footer
          %s1801 = sadd.s32 1, %s1797
        $region122: #{tpu_custom_call.1} parent=75 // loop_footer_branch
          %1796 = sbr.rel target = $region118
        $region123: #{tpu_custom_call.1} parent=75 // loop_exit
          _
        %v2469 = vld [vmem:[#allocation7] sm:$0xff]
        %v2470 = vld [vmem:[#allocation7 + $0x8] sm:$0xff]
        %v2471 = vld [vmem:[#allocation7 + $0x10] sm:$0xff]
        %v2472 = vld [vmem:[#allocation7 + $0x18] sm:$0xff]
        %v2473 = vld [vmem:[%s825] sm:$0x3]
        %v2475 = vlaneseq
        %v2476 = vshrl.u32 %v2475, 7
        %v2477 = vsub.s32 0, %v2476
        %v2478 = vrot.slane %v2473, %v2477
        %v2479 = vlaneseq
        %v2480 = vshrl.u32 %v2479, 7
        %v2481 = vsub.s32 1, %v2480
        %v2482 = vrot.slane %v2473, %v2481
        %v2485 = vmul.f32 %v1399, %v2478
        %v2486 = vmul.f32 %v1400, %v2482
        %v2487 = vmul.f32 %v1401, %v2478
        %v2488 = vmul.f32 %v1402, %v2482
        %v2489 = vadd.f32 %v2469, %v2485
        %v2490 = vadd.f32 %v2470, %v2486
        %v2491 = vadd.f32 %v2471, %v2487
        %v2492 = vadd.f32 %v2472, %v2488
        %v2493 = vsub.f32 0.0, %v1161
        %v2494 = vsub.f32 0.0, %v1163
        %v2495 = vsub.f32 0.0, %v1165
        %v2496 = vsub.f32 0.0, %v1167
        %v2497 = vmul.f32 %v2493, 1.442695
        %v2498 = vpow.pop %v2497
        %v2499 = vmul.f32 %v2494, 1.442695
        %v2500 = vpow.pop %v2499
        %v2501 = vmul.f32 %v2495, 1.442695
        %v2502 = vpow.pop %v2501
        %v2503 = vmul.f32 %v2496, 1.442695
        %v2504 = vpow.pop %v2503
        %v2505 = vadd.f32 %v2498, 1.0
        %v2506 = vadd.f32 %v2500, 1.0
        %v2507 = vadd.f32 %v2502, 1.0
        %v2508 = vadd.f32 %v2504, 1.0
        %v2509 = vrcp.pop %v2505
        %v2510 = vmul.f32 1.0, %v2509
        %v2511 = vrcp.pop %v2506
        %v2512 = vmul.f32 1.0, %v2511
        %v2513 = vrcp.pop %v2507
        %v2514 = vmul.f32 1.0, %v2513
        %v2515 = vrcp.pop %v2508
        %v2516 = vmul.f32 1.0, %v2515
        %v2517 = vmul.f32 %v1161, %v2510
        %v2518 = vmul.f32 %v1163, %v2512
        %v2519 = vmul.f32 %v1165, %v2514
        %v2520 = vmul.f32 %v1167, %v2516
        %v2521 = vmul.f32 %v2489, %v2517
        %v2522 = vmul.f32 %v2490, %v2518
        %v2523 = vmul.f32 %v2491, %v2519
        %v2524 = vmul.f32 %v2492, %v2520
        %v2525 = vpack.c.bf16 %v2523, %v2521
        %v2526 = vpack.c.bf16 %v2524, %v2522
        %v2527 = vld [vmem:[%s717] sm:$0xf]
        %v2528 = vld [vmem:[%s717 + $0x4] sm:$0xf]
        %v2529 = vld [vmem:[%s717 + $0x8] sm:$0xf]
        %v2530 = vld [vmem:[%s717 + $0xc] sm:$0xf]
        %v2531 = vld [vmem:[%s717 + $0x10] sm:$0xf]
        %v2532 = vld [vmem:[%s717 + $0x14] sm:$0xf]
        %v2533 = vld [vmem:[%s717 + $0x18] sm:$0xf]
        %v2534 = vld [vmem:[%s717 + $0x1c] sm:$0xf]
        %v2535 = vld [vmem:[%s717 + $0x20] sm:$0xf]
        %v2536 = vld [vmem:[%s717 + $0x24] sm:$0xf]
        %v2537 = vld [vmem:[%s717 + $0x28] sm:$0xf]
        %v2538 = vld [vmem:[%s717 + $0x2c] sm:$0xf]
        %v2539 = vld [vmem:[%s717 + $0x30] sm:$0xf]
        %v2540 = vld [vmem:[%s717 + $0x34] sm:$0xf]
        %v2541 = vld [vmem:[%s717 + $0x38] sm:$0xf]
        %v2542 = vld [vmem:[%s717 + $0x3c] sm:$0xf]
        %v2543 = vld [vmem:[%s717 + $0x40] sm:$0xf]
        %v2544 = vld [vmem:[%s717 + $0x44] sm:$0xf]
        %v2545 = vld [vmem:[%s717 + $0x48] sm:$0xf]
        %v2546 = vld [vmem:[%s717 + $0x4c] sm:$0xf]
        %v2547 = vld [vmem:[%s717 + $0x50] sm:$0xf]
        %v2548 = vld [vmem:[%s717 + $0x54] sm:$0xf]
        %v2549 = vld [vmem:[%s717 + $0x58] sm:$0xf]
        %v2550 = vld [vmem:[%s717 + $0x5c] sm:$0xf]
        %v2551 = vld [vmem:[%s717 + $0x60] sm:$0xf]
        %v2552 = vld [vmem:[%s717 + $0x64] sm:$0xf]
        %v2553 = vld [vmem:[%s717 + $0x68] sm:$0xf]
        %v2554 = vld [vmem:[%s717 + $0x6c] sm:$0xf]
        %v2555 = vld [vmem:[%s717 + $0x70] sm:$0xf]
        %v2556 = vld [vmem:[%s717 + $0x74] sm:$0xf]
        %v2557 = vld [vmem:[%s717 + $0x78] sm:$0xf]
        %v2558 = vld [vmem:[%s717 + $0x7c] sm:$0xf]
        %v2591 = vunpack.c.l.b16 %v2527
        %v2592 = vunpack.c.l.b16 %v2528
        %v2593 = vunpack.c.l.b16 %v2529
        %v2594 = vunpack.c.l.b16 %v2530
        %v2595 = vunpack.c.l.b16 %v2531
        %v2596 = vunpack.c.l.b16 %v2532
        %v2597 = vunpack.c.l.b16 %v2533
        %v2598 = vunpack.c.l.b16 %v2534
        %v2599 = vunpack.c.l.b16 %v2535
        %v2600 = vunpack.c.l.b16 %v2536
        %v2601 = vunpack.c.l.b16 %v2537
        %v2602 = vunpack.c.l.b16 %v2538
        %v2603 = vunpack.c.l.b16 %v2539
        %v2604 = vunpack.c.l.b16 %v2540
        %v2605 = vunpack.c.l.b16 %v2541
        %v2606 = vunpack.c.l.b16 %v2542
        %v2607 = vunpack.c.l.b16 %v2543
        %v2608 = vunpack.c.l.b16 %v2544
        %v2609 = vunpack.c.l.b16 %v2545
        %v2610 = vunpack.c.l.b16 %v2546
        %v2611 = vunpack.c.l.b16 %v2547
        %v2612 = vunpack.c.l.b16 %v2548
        %v2613 = vunpack.c.l.b16 %v2549
        %v2614 = vunpack.c.l.b16 %v2550
        %v2615 = vunpack.c.l.b16 %v2551
        %v2616 = vunpack.c.l.b16 %v2552
        %v2617 = vunpack.c.l.b16 %v2553
        %v2618 = vunpack.c.l.b16 %v2554
        %v2619 = vunpack.c.l.b16 %v2555
        %v2620 = vunpack.c.l.b16 %v2556
        %v2621 = vunpack.c.l.b16 %v2557
        %v2622 = vunpack.c.l.b16 %v2558
        %v2623 = vpack.c.b16 %v2592, %v2591
        %v2624 = vpack.c.b16 %v2594, %v2593
        %v2625 = vpack.c.b16 %v2596, %v2595
        %v2626 = vpack.c.b16 %v2598, %v2597
        %v2627 = vpack.c.b16 %v2600, %v2599
        %v2628 = vpack.c.b16 %v2602, %v2601
        %v2629 = vpack.c.b16 %v2604, %v2603
        %v2630 = vpack.c.b16 %v2606, %v2605
        %v2631 = vpack.c.b16 %v2608, %v2607
        %v2632 = vpack.c.b16 %v2610, %v2609
        %v2633 = vpack.c.b16 %v2612, %v2611
        %v2634 = vpack.c.b16 %v2614, %v2613
        %v2635 = vpack.c.b16 %v2616, %v2615
        %v2636 = vpack.c.b16 %v2618, %v2617
        %v2637 = vpack.c.b16 %v2620, %v2619
        %v2638 = vpack.c.b16 %v2622, %v2621
        %2655 = vmatprep.subr.bf16.mxu0 0
        %2656 = vmatpush1.bf16.msra.mxu0 %v2623
        %2657 = vmatprep.subr.bf16.mxu0 0
        %2658 = vmatpush1.bf16.msra.mxu0 %v2624
        %2659 = vmatprep.subr.bf16.mxu0 0
        %2660 = vmatpush1.bf16.msra.mxu0 %v2625
        %2661 = vmatprep.subr.bf16.mxu0 0
        %2662 = vmatpush1.bf16.msra.mxu0 %v2626
        %2663 = vmatprep.subr.bf16.mxu0 0
        %2664 = vmatpush1.bf16.msra.mxu0 %v2627
        %2665 = vmatprep.subr.bf16.mxu0 0
        %2666 = vmatpush1.bf16.msra.mxu0 %v2628
        %2667 = vmatprep.subr.bf16.mxu0 0
        %2668 = vmatpush1.bf16.msra.mxu0 %v2629
        %2669 = vmatprep.subr.bf16.mxu0 0
        %2670 = vmatpush1.bf16.msra.mxu0 %v2630
        %2671 = vmatprep.subr.bf16.mxu0 0
        %2672 = vmatpush1.bf16.msra.mxu0 %v2631
        %2673 = vmatprep.subr.bf16.mxu0 0
        %2674 = vmatpush1.bf16.msra.mxu0 %v2632
        %2675 = vmatprep.subr.bf16.mxu0 0
        %2676 = vmatpush1.bf16.msra.mxu0 %v2633
        %2677 = vmatprep.subr.bf16.mxu0 0
        %2678 = vmatpush1.bf16.msra.mxu0 %v2634
        %2679 = vmatprep.subr.bf16.mxu0 0
        %2680 = vmatpush1.bf16.msra.mxu0 %v2635
        %2681 = vmatprep.subr.bf16.mxu0 0
        %2682 = vmatpush1.bf16.msra.mxu0 %v2636
        %2683 = vmatprep.subr.bf16.mxu0 0
        %2684 = vmatpush1.bf16.msra.mxu0 %v2637
        %2685 = vmatprep.subr.bf16.mxu0 0
        %2686 = vmatpush1.bf16.msra.mxu0 %v2638
        %2687 = vmatprep.mubr.bf16.mxu0 %v2526
        %2688 = vmatmul.mubr.bf16.gmra.mrb[0].mxu0 %v2525
        %v2689 = vpop.f32.mrb[0].mxu0
        %v2690 = vadd.f32 0.0, %v2689
        %v2691 = vpop.f32.mrb[0].mxu0
        %v2692 = vpop.f32.mrb[0].mxu0
        %v2693 = vadd.f32 0.0, %v2692
        %v2694 = vpop.f32.mrb[0].mxu0
        %2695 = vdwg.mxu0
        %2696 = vst [vmem:[#allocation3] sm:$0xff] %v2690
        %2697 = vst [vmem:[#allocation3 + $0x8] sm:$0xff] %v2693
        %p2698 = scmp.eq.s32.totalorder %s48, 1
        // Predicated region
        $region124: #{tpu_custom_call.1} parent=75 // pred_check
          %p2699 = pneg %p2698
        $region125: #{tpu_custom_call.1} parent=75 // pred_check_branch
          %2701 = sbr.rel (%p2699) target = $region127
        $region126: #{tpu_custom_call.1} parent=75 // pred_region
          %v2702 = vadd.f32 %v2690, %v847
          %v2703 = vadd.f32 %v2693, %v848
          %2704 = vadd.xlane.f32.xlu0 %v2702
          %v2705 = vpop.xlane.xlu0 %2704
          %2706 = vadd.xlane.f32.xlu0 %v2703
          %v2707 = vpop.xlane.xlu0 %2706
          %v2708 = vmul.f32 %v2705, %v853
          %v2709 = vmul.f32 %v2707, %v853
          %v2710 = vsub.f32 %v2702, %v2708
          %v2711 = vsub.f32 %v2703, %v2709
          %v2712 = vmul.f32 %v2710, %v2710
          %v2713 = vmul.f32 %v2711, %v2711
          %2714 = vadd.xlane.f32.xlu0 %v2712
          %v2715 = vpop.xlane.xlu0 %2714
          %2716 = vadd.xlane.f32.xlu0 %v2713
          %v2717 = vpop.xlane.xlu0 %2716
          %v2718 = vmul.f32 %v2715, %v853
          %v2719 = vmul.f32 %v2717, %v853
          %v2720 = vadd.f32 %v2718, 1e-05
          %v2721 = vadd.f32 %v2719, 1e-05
          %v2722 = vrsqrt.pop %v2720
          %v2723 = vrsqrt.pop %v2721
          %v2724 = vmul.f32 %v2710, %v2722
          %v2725 = vmul.f32 %v2711, %v2723
          %v2726 = vld [vmem:[%s12] sm:$0x1]
          %v2728 = vlaneseq
          %v2729 = vshrl.u32 %v2728, 7
          %v2730 = vsub.s32 0, %v2729
          %v2731 = vrot.slane %v2726, %v2730
          %v2733 = vmul.f32 %v2724, %v2731
          %v2734 = vmul.f32 %v2725, %v2731
          %v2735 = vld [vmem:[%s13] sm:$0x1]
          %v2737 = vlaneseq
          %v2738 = vshrl.u32 %v2737, 7
          %v2739 = vsub.s32 0, %v2738
          %v2740 = vrot.slane %v2735, %v2739
          %v2742 = vadd.f32 %v2733, %v2740
          %v2743 = vadd.f32 %v2734, %v2740
          %2744 = vst [vmem:[%s810] sm:$0xff] %v2742
          %2745 = vst [vmem:[%s810 + $0x8] sm:$0xff] %v2743
        $region127: #{tpu_custom_call.1} parent=75 // pred_fallthru
          _
        %s2746 = sand.u32 %s417, 1
        %s2747 = scalar_lea.sflag [#allocation10], %s2746
        %s2748 = sand.u32 %s417, 1
        %s2749 = smul.addr %s2748, 16
        %s2750 = scalar_lea.vmem [#allocation22], %s2749
        // Predicated region
        $region128: #{tpu_custom_call.1} parent=75 // pred_check
          %p2751 = pneg %p427
        $region129: #{tpu_custom_call.1} parent=75 // pred_check_branch
          %2753 = sbr.rel (%p2751) target = $region131
        $region130: #{tpu_custom_call.1} parent=75 // pred_region
          %s2755 = ssub.s32 256, 256
          %2756 = vsyncadd %s2747, %s2755
          %s2757 = smul.addr %s47, 2
          %s2758 = smul.addr %s2757, 128
          %s2759 = scalar_lea.hbm %s14, %s2758
          %s2760 = sshll.u32 %s2750, 4
          %s2761 = int_to_ptr.vmem [resolvable:$true] %s2760
          %2766 = dma.vmem_to_hbm [thread:$0]  %s2761, 256, %s2759, %s2747, 128, 128, 8
        $region131: #{tpu_custom_call.1} parent=75 // pred_fallthru
          _
      $region76: #{tpu_custom_call.1} parent=5 // pred_fallthru
        _
      %p2767 = scmp.le.s32.totalorder 2, %s38
      // Predicated region
      $region132: #{tpu_custom_call.1} parent=5 // pred_check
        %p2768 = pneg %p2767
      $region133: #{tpu_custom_call.1} parent=5 // pred_check_branch
        %2770 = sbr.rel (%p2768) target = $region135
      $region134: #{tpu_custom_call.1} parent=5 // pred_region
        %s2771 = ssub.s32 %s38, 2
        // Predicated region
        $region136: #{tpu_custom_call.1} parent=134 // pred_check
          %p2772 = pneg %p433
        $region137: #{tpu_custom_call.1} parent=134 // pred_check_branch
          %2774 = sbr.rel (%p2772) target = $region139
        $region138: #{tpu_custom_call.1} parent=134 // pred_region
          %s2775 = sand.u32 %s418, 1
          %s2776 = scalar_lea.sflag [#allocation10], %s2775
          %s2777 = sand.u32 %s418, 1
          %s2778 = smul.addr %s2777, 16
          %s2779 = scalar_lea.vmem [#allocation22], %s2778
          %2780 = dma.done %s2776, 256
        $region139: #{tpu_custom_call.1} parent=134 // pred_fallthru
          _
      $region135: #{tpu_custom_call.1} parent=5 // pred_fallthru
        _
    $region6: #{tpu_custom_call.1} parent=1 // loop_footer
      %s42 = sadd.s32 1, %s38
    $region7: #{tpu_custom_call.1} parent=1 // loop_footer_branch
      %37 = sbr.rel target = $region3
    $region8: #{tpu_custom_call.1} parent=1 // loop_exit
      _
    %2781 = vsyncpa [#allocation9], 1
    %s2782 = scalar_lea.sflag [#allocation9], 1
    %2783 = vsyncpa %s2782, 1
    %2784 = vsyncpa [#allocation12], 1
    %s2785 = scalar_lea.sflag [#allocation12], 1
    %2786 = vsyncpa %s2785, 1
    %2787 = vsyncpa [#allocation15], 1
    %s2788 = scalar_lea.sflag [#allocation15], 1
    %2789 = vsyncpa %s2788, 1
    %2790 = vsyncpa [#allocation18], 1
    %s2791 = scalar_lea.sflag [#allocation18], 1
    %2792 = vsyncpa %s2791, 1
    %2793 = vsyncpa [#allocation21], 1
    %s2794 = scalar_lea.sflag [#allocation21], 1
    %2795 = vsyncpa %s2794, 1
    %2796 = vsyncpa [#allocation10], 1
    %s2797 = scalar_lea.sflag [#allocation10], 1
    %2798 = vsyncpa %s2797, 1

</llo_original>
